<compile_context>
chip_gen: v7x
topology: tpu7x:2x2x1
jax: 0.10.0
libtpu: 0.0.40
codegen_flags: <defaults>
</compile_context>

<pallas_src>
import functools

import numpy as np
import jax
import jax.numpy as jnp
from jax import lax
from jax.experimental import pallas as pl
from jax.experimental.pallas import tpu as pltpu


def _deconv_kernel(x_ref, e_ref, w_ref, b_ref, o_ref, xflat_ref, *, tap_offsets, lx):
    """Per-batch fused (upsample+dilate+pad via E) -> tap matmuls -> bias -> ReLU.

    x_ref     : (1, Cin, H*W)   raw input pixels for batch n
    e_ref     : (H*W, Lpad)     constant 0/1 expansion matrix (grid-resident)
    w_ref     : (T, Cout, Cin)  spatially-flipped weight per tap (grid-resident)
    b_ref     : (Cout, 1)       bias (grid-resident)
    o_ref     : (1, Cout, Lx)   lane-dense output, Lx = Ho * Wp
    xflat_ref : (Cin, Lpad)     VMEM scratch: upsampled+padded input, flat (row stride Wp)
    """
    # Fused upsample + stride-dilation + zero-pad + flatten, done on the MXU.
    xflat_ref[...] = jnp.dot(
        x_ref[0], e_ref[...], preferred_element_type=jnp.float32
    )

    cout = o_ref.shape[1]
    acc = jnp.zeros((cout, lx), jnp.float32)
    # T (= KH*KW, e.g. 9) is small & static -> fully unrolled; the LLO scheduler
    # interleaves the MXU pushes with the VPU accumulate.
    for t, d in enumerate(tap_offsets):
        window = xflat_ref[:, pl.ds(d, lx)]                       # (Cin, Lx)
        acc = acc + jnp.dot(
            w_ref[t], window, preferred_element_type=jnp.float32
        )
    o_ref[0] = jnp.maximum(acc + b_ref[...], 0.0).astype(o_ref.dtype)


def _build_expansion_matrix(H, W, pool, stride, padding, output_padding, KH, KW):
    """Constant 0/1 matrix E (H*W, Lpad) s.t. x.reshape(Cin,H*W) @ E is the
    nearest-upsampled, stride-dilated, zero-padded image flattened with row
    stride Wp (plus KW-1 tail zeros so every tap window is in-bounds)."""
    ph_pool, pw_pool = pool
    sh, sw = stride
    ph, pw = padding
    oph, opw = output_padding
    Hu, Wu = H * ph_pool, W * pw_pool
    pad_top, pad_left = KH - 1 - ph, KW - 1 - pw
    Hp = (Hu - 1) * sh + 1 + pad_top + (KH - 1 - ph + oph)
    Wp = (Wu - 1) * sw + 1 + pad_left + (KW - 1 - pw + opw)
    Ho, Wo = Hp - KH + 1, Wp - KW + 1
    Lx = Ho * Wp
    Lpad = Hp * Wp + (KW - 1)

    E = np.zeros((H * W, Lpad), np.float32)
    for h in range(H):
        for w in range(W):
            p = h * W + w
            for ih in range(ph_pool):
                r = pad_top + sh * (ph_pool * h + ih)
                for iw in range(pw_pool):
                    s = pad_left + sw * (pw_pool * w + iw)
                    E[p, r * Wp + s] = 1.0
    return E, Hp, Wp, Ho, Wo, Lx, Lpad


@functools.partial(
    jax.jit,
    static_argnames=("pool", "stride", "padding", "output_padding"),
)
def deconv_block_forward(
    x,
    weight,
    bias,
    *,
    pool=(2, 2),
    stride=(1, 1),
    padding=(0, 0),
    output_padding=(0, 0),
):
    """Pallas implementation of DeconvBlock.forward.

    x      : (N, Cin, H, W)      float32, NCHW (PyTorch convention)
    weight : (Cin, Cout, KH, KW) float32 (PyTorch ConvTranspose2d layout)
    bias   : (Cout,)             float32
    returns: (N, Cout, Ho, Wo)   float32, NCHW
    """
    N, Cin, H, W = x.shape
    Cin_w, Cout, KH, KW = weight.shape
    assert Cin == Cin_w
    ph, pw = padding
    assert KH - 1 - ph >= 0 and KW - 1 - pw >= 0, "padding > kernel-1 unsupported"

    E_np, Hp, Wp, Ho, Wo, Lx, Lpad = _build_expansion_matrix(
        H, W, pool, stride, padding, output_padding, KH, KW
    )
    T = KH * KW
    HW = H * W

    e_const = jnp.asarray(E_np)           # compile-time constant, ~H*W x Lpad f32
    x_in = x.reshape(N, Cin, HW)          # free: NCHW is contiguous

    # Per-tap flipped weights, oriented for lane-dense output:
    # w_taps[kh*KW+kw, co, ci] = weight[ci, co, KH-1-kh, KW-1-kw]
    w_taps = jnp.transpose(weight[:, :, ::-1, ::-1], (2, 3, 1, 0)).reshape(
        T, Cout, Cin
    )
    b2 = bias.reshape(Cout, 1)
    tap_offsets = tuple(kh * Wp + kw for kh in range(KH) for kw in range(KW))

    out_flat = pl.pallas_call(
        functools.partial(_deconv_kernel, tap_offsets=tap_offsets, lx=Lx),
        out_shape=jax.ShapeDtypeStruct((N, Cout, Lx), jnp.float32),
        grid_spec=pltpu.PrefetchScalarGridSpec(
            num_scalar_prefetch=0,
            grid=(N,),
            in_specs=[
                pl.BlockSpec((1, Cin, HW), lambda n: (n, 0, 0)),
                pl.BlockSpec((HW, Lpad), lambda n: (0, 0)),        # grid-resident
                pl.BlockSpec((T, Cout, Cin), lambda n: (0, 0, 0)),  # grid-resident
                pl.BlockSpec((Cout, 1), lambda n: (0, 0)),          # grid-resident
            ],
            out_specs=pl.BlockSpec((1, Cout, Lx), lambda n: (n, 0, 0)),
            scratch_shapes=[pltpu.VMEM((Cin, Lpad), jnp.float32)],
        ),
        compiler_params=pltpu.CompilerParams(
            dimension_semantics=("parallel",)   # N>=2 feeds both v7x TensorCores
        ),
    )(x_in, e_const, w_taps, b2)

    # Flat output has row stride Wp; drop the KW-1 wraparound junk columns.
    # (A consumer tolerating Wp row stride could skip this crop entirely.)
    out = out_flat.reshape(N, Cout, Ho, Wp)[:, :, :, :Wo]
    return out


def _reference_forward(x, weight, bias, *, pool, stride, padding, output_padding):
    """Plain-JAX/XLA reference (lax.conv_general_dilated) for the same math."""
    N, Cin, H, W = x.shape
    _, Cout, KH, KW = weight.shape
    sh, sw = stride
    ph, pw = padding
    oph, opw = output_padding

    x_up = jnp.repeat(jnp.repeat(x, pool[0], axis=2), pool[1], axis=3)
    x_nhwc = jnp.transpose(x_up, (0, 2, 3, 1))
    w_hwio = jnp.transpose(weight[:, :, ::-1, ::-1], (2, 3, 0, 1))  # (KH,KW,Cin,Cout)
    out = lax.conv_general_dilated(
        x_nhwc,
        w_hwio,
        window_strides=(1, 1),
        padding=[(KH - 1 - ph, KH - 1 - ph + oph), (KW - 1 - pw, KW - 1 - pw + opw)],
        lhs_dilation=(sh, sw),
        dimension_numbers=("NHWC", "HWIO", "NHWC"),
    )
    out = jnp.maximum(out + bias, 0.0)
    return jnp.transpose(out, (0, 3, 1, 2))


if __name__ == "__main__":
    key = jax.random.PRNGKey(0)
    # DeconvBlock(channels_in=4, channels_out=8, conv_kernel_shape=(3,3),
    #             pool_kernel_shape=(2,2), stride=(1,1), padding=(0,0))
    N, Cin, H, W = 2, 4, 16, 16
    Cout, KH, KW = 8, 3, 3
    pool = (2, 2)
    stride = (1, 1)
    padding = (0, 0)
    output_padding = (0, 0)

    k_x, k_w, k_b = jax.random.split(key, 3)
    x = jax.random.normal(k_x, (N, Cin, H, W), dtype=jnp.float32)

    # Deterministic kaiming_uniform_-style init for ConvTranspose2d weight
    # (weight shape (Cin, Cout, KH, KW); torch fan_in = Cout*KH*KW).
    fan_in = Cout * KH * KW
    w_bound = (6.0 / fan_in) ** 0.5
    weight = jax.random.uniform(
        k_w, (Cin, Cout, KH, KW), jnp.float32, minval=-w_bound, maxval=w_bound
    )
    b_bound = 1.0 / (fan_in ** 0.5)
    bias = jax.random.uniform(
        k_b, (Cout,), jnp.float32, minval=-b_bound, maxval=b_bound
    )

    out = deconv_block_forward(
        x, weight, bias,
        pool=pool, stride=stride, padding=padding, output_padding=output_padding,
    )
    out = jax.block_until_ready(out)

    ref = _reference_forward(
        x, weight, bias,
        pool=pool, stride=stride, padding=padding, output_padding=output_padding,
    )

    expected_shape = (
        N,
        Cout,
        (H * pool[0] - 1) * stride[0] - 2 * padding[0] + KH + output_padding[0],
        (W * pool[1] - 1) * stride[1] - 2 * padding[1] + KW + output_padding[1],
    )
    assert out.shape == expected_shape, (out.shape, expected_shape)
    assert bool(jnp.allclose(out, ref, atol=1e-5, rtol=1e-5)), "mismatch vs reference"
    print("KERNEL_OK")
</pallas_src>

<mosaic_0001>
module attributes {stable_mosaic.version = 11 : i64} {
  func.func @_deconv_kernel(%arg0: i32, %arg1: memref<1x4x256xf32, #tpu.memory_space<vmem>>, %arg2: memref<256x1298xf32, #tpu.memory_space<vmem>>, %arg3: memref<9x8x4xf32, #tpu.memory_space<vmem>>, %arg4: memref<8x1xf32, #tpu.memory_space<vmem>>, %arg5: memref<1x8x1224xf32, #tpu.memory_space<vmem>>, %arg6: memref<4x1298xf32, #tpu.memory_space<vmem>>) attributes {dimension_semantics = [#tpu.dimension_semantics<parallel>], iteration_bounds = array<i64: 2>, scalar_prefetch = 0 : i64, scratch_operands = 1 : i64, tpu.core_type = #tpu.core_type<tc>, window_params = [{transform_indices = @transform_0, window_bounds = array<i64: 1, 4, 256>}, {pipeline_mode = #tpu.pipeline_mode<synchronous>, transform_indices = @transform_1, window_bounds = array<i64: 256, 1298>}, {pipeline_mode = #tpu.pipeline_mode<synchronous>, transform_indices = @transform_2, window_bounds = array<i64: 9, 8, 4>}, {pipeline_mode = #tpu.pipeline_mode<synchronous>, transform_indices = @transform_3, window_bounds = array<i64: 8, 1>}, {transform_indices = @transform_4, window_bounds = array<i64: 1, 8, 1224>}]} {
    %c0 = arith.constant 0 : index
    %c0_0 = arith.constant 0 : index
    %c0_1 = arith.constant 0 : index
    %0 = vector.load %arg1[%c0, %c0_0, %c0_1] : memref<1x4x256xf32, #tpu.memory_space<vmem>>, vector<1x4x256xf32>
    %1 = vector.shape_cast %0 : vector<1x4x256xf32> to vector<4x256xf32>
    %c0_2 = arith.constant 0 : index
    %c0_3 = arith.constant 0 : index
    %2 = vector.load %arg2[%c0_2, %c0_3] : memref<256x1298xf32, #tpu.memory_space<vmem>>, vector<256x1298xf32>
    %cst = arith.constant dense<0.000000e+00> : vector<4x1298xf32>
    %3 = tpu.matmul %1, %2, %cst {dimension_numbers = #tpu.dot_dimension_numbers<[1], [0], [0], [1], [0, 0, 1, 1], [], []>} : vector<4x256xf32>, vector<256x1298xf32>, vector<4x1298xf32> -> vector<4x1298xf32>
    %c0_4 = arith.constant 0 : index
    %c0_5 = arith.constant 0 : index
    %4 = vector.load %arg6[%c0_4, %c0_5] : memref<4x1298xf32, #tpu.memory_space<vmem>>, vector<4x1298xf32>
    tpu.vector_store %arg6[%c0_4, %c0_5], %3 {strides = array<i32>} : memref<4x1298xf32, #tpu.memory_space<vmem>>, vector<4x1298xf32>,
    %cst_6 = arith.constant 0.000000e+00 : f32
    %5 = vector.broadcast %cst_6 : f32 to vector<8x1224xf32>
    %c0_7 = arith.constant 0 : index
    %c0_8 = arith.constant 0 : index
    %6 = vector.load %arg6[%c0_7, %c0_8] : memref<4x1298xf32, #tpu.memory_space<vmem>>, vector<4x1224xf32>
    %c0_9 = arith.constant 0 : index
    %c0_10 = arith.constant 0 : index
    %c0_11 = arith.constant 0 : index
    %7 = vector.load %arg3[%c0_9, %c0_10, %c0_11] : memref<9x8x4xf32, #tpu.memory_space<vmem>>, vector<1x8x4xf32>
    %8 = vector.shape_cast %7 : vector<1x8x4xf32> to vector<8x4xf32>
    %cst_12 = arith.constant dense<0.000000e+00> : vector<8x1224xf32>
    %9 = tpu.matmul %8, %6, %cst_12 {dimension_numbers = #tpu.dot_dimension_numbers<[1], [0], [0], [1], [0, 0, 1, 1], [], []>} : vector<8x4xf32>, vector<4x1224xf32>, vector<8x1224xf32> -> vector<8x1224xf32>
    %10 = arith.addf %5, %9 : vector<8x1224xf32>
    %c0_13 = arith.constant 0 : index
    %c1 = arith.constant 1 : index
    %11 = vector.load %arg6[%c0_13, %c1] : memref<4x1298xf32, #tpu.memory_space<vmem>>, vector<4x1224xf32>
    %c1_14 = arith.constant 1 : index
    %c0_15 = arith.constant 0 : index
    %c0_16 = arith.constant 0 : index
    %12 = vector.load %arg3[%c1_14, %c0_15, %c0_16] : memref<9x8x4xf32, #tpu.memory_space<vmem>>, vector<1x8x4xf32>
    %13 = vector.shape_cast %12 : vector<1x8x4xf32> to vector<8x4xf32>
    %cst_17 = arith.constant dense<0.000000e+00> : vector<8x1224xf32>
    %14 = tpu.matmul %13, %11, %cst_17 {dimension_numbers = #tpu.dot_dimension_numbers<[1], [0], [0], [1], [0, 0, 1, 1], [], []>} : vector<8x4xf32>, vector<4x1224xf32>, vector<8x1224xf32> -> vector<8x1224xf32>
    %15 = arith.addf %10, %14 : vector<8x1224xf32>
    %c0_18 = arith.constant 0 : index
    %c2 = arith.constant 2 : index
    %16 = vector.load %arg6[%c0_18, %c2] : memref<4x1298xf32, #tpu.memory_space<vmem>>, vector<4x1224xf32>
    %c2_19 = arith.constant 2 : index
    %c0_20 = arith.constant 0 : index
    %c0_21 = arith.constant 0 : index
    %17 = vector.load %arg3[%c2_19, %c0_20, %c0_21] : memref<9x8x4xf32, #tpu.memory_space<vmem>>, vector<1x8x4xf32>
    %18 = vector.shape_cast %17 : vector<1x8x4xf32> to vector<8x4xf32>
    %cst_22 = arith.constant dense<0.000000e+00> : vector<8x1224xf32>
    %19 = tpu.matmul %18, %16, %cst_22 {dimension_numbers = #tpu.dot_dimension_numbers<[1], [0], [0], [1], [0, 0, 1, 1], [], []>} : vector<8x4xf32>, vector<4x1224xf32>, vector<8x1224xf32> -> vector<8x1224xf32>
    %20 = arith.addf %15, %19 : vector<8x1224xf32>
    %c0_23 = arith.constant 0 : index
    %c36 = arith.constant 36 : index
    %21 = vector.load %arg6[%c0_23, %c36] : memref<4x1298xf32, #tpu.memory_space<vmem>>, vector<4x1224xf32>
    %c3 = arith.constant 3 : index
    %c0_24 = arith.constant 0 : index
    %c0_25 = arith.constant 0 : index
    %22 = vector.load %arg3[%c3, %c0_24, %c0_25] : memref<9x8x4xf32, #tpu.memory_space<vmem>>, vector<1x8x4xf32>
    %23 = vector.shape_cast %22 : vector<1x8x4xf32> to vector<8x4xf32>
    %cst_26 = arith.constant dense<0.000000e+00> : vector<8x1224xf32>
    %24 = tpu.matmul %23, %21, %cst_26 {dimension_numbers = #tpu.dot_dimension_numbers<[1], [0], [0], [1], [0, 0, 1, 1], [], []>} : vector<8x4xf32>, vector<4x1224xf32>, vector<8x1224xf32> -> vector<8x1224xf32>
    %25 = arith.addf %20, %24 : vector<8x1224xf32>
    %c0_27 = arith.constant 0 : index
    %c37 = arith.constant 37 : index
    %26 = vector.load %arg6[%c0_27, %c37] : memref<4x1298xf32, #tpu.memory_space<vmem>>, vector<4x1224xf32>
    %c4 = arith.constant 4 : index
    %c0_28 = arith.constant 0 : index
    %c0_29 = arith.constant 0 : index
    %27 = vector.load %arg3[%c4, %c0_28, %c0_29] : memref<9x8x4xf32, #tpu.memory_space<vmem>>, vector<1x8x4xf32>
    %28 = vector.shape_cast %27 : vector<1x8x4xf32> to vector<8x4xf32>
    %cst_30 = arith.constant dense<0.000000e+00> : vector<8x1224xf32>
    %29 = tpu.matmul %28, %26, %cst_30 {dimension_numbers = #tpu.dot_dimension_numbers<[1], [0], [0], [1], [0, 0, 1, 1], [], []>} : vector<8x4xf32>, vector<4x1224xf32>, vector<8x1224xf32> -> vector<8x1224xf32>
    %30 = arith.addf %25, %29 : vector<8x1224xf32>
    %c0_31 = arith.constant 0 : index
    %c38 = arith.constant 38 : index
    %31 = vector.load %arg6[%c0_31, %c38] : memref<4x1298xf32, #tpu.memory_space<vmem>>, vector<4x1224xf32>
    %c5 = arith.constant 5 : index
    %c0_32 = arith.constant 0 : index
    %c0_33 = arith.constant 0 : index
    %32 = vector.load %arg3[%c5, %c0_32, %c0_33] : memref<9x8x4xf32, #tpu.memory_space<vmem>>, vector<1x8x4xf32>
    %33 = vector.shape_cast %32 : vector<1x8x4xf32> to vector<8x4xf32>
    %cst_34 = arith.constant dense<0.000000e+00> : vector<8x1224xf32>
    %34 = tpu.matmul %33, %31, %cst_34 {dimension_numbers = #tpu.dot_dimension_numbers<[1], [0], [0], [1], [0, 0, 1, 1], [], []>} : vector<8x4xf32>, vector<4x1224xf32>, vector<8x1224xf32> -> vector<8x1224xf32>
    %35 = arith.addf %30, %34 : vector<8x1224xf32>
    %c0_35 = arith.constant 0 : index
    %c72 = arith.constant 72 : index
    %36 = vector.load %arg6[%c0_35, %c72] : memref<4x1298xf32, #tpu.memory_space<vmem>>, vector<4x1224xf32>
    %c6 = arith.constant 6 : index
    %c0_36 = arith.constant 0 : index
    %c0_37 = arith.constant 0 : index
    %37 = vector.load %arg3[%c6, %c0_36, %c0_37] : memref<9x8x4xf32, #tpu.memory_space<vmem>>, vector<1x8x4xf32>
    %38 = vector.shape_cast %37 : vector<1x8x4xf32> to vector<8x4xf32>
    %cst_38 = arith.constant dense<0.000000e+00> : vector<8x1224xf32>
    %39 = tpu.matmul %38, %36, %cst_38 {dimension_numbers = #tpu.dot_dimension_numbers<[1], [0], [0], [1], [0, 0, 1, 1], [], []>} : vector<8x4xf32>, vector<4x1224xf32>, vector<8x1224xf32> -> vector<8x1224xf32>
    %40 = arith.addf %35, %39 : vector<8x1224xf32>
    %c0_39 = arith.constant 0 : index
    %c73 = arith.constant 73 : index
    %41 = vector.load %arg6[%c0_39, %c73] : memref<4x1298xf32, #tpu.memory_space<vmem>>, vector<4x1224xf32>
    %c7 = arith.constant 7 : index
    %c0_40 = arith.constant 0 : index
    %c0_41 = arith.constant 0 : index
    %42 = vector.load %arg3[%c7, %c0_40, %c0_41] : memref<9x8x4xf32, #tpu.memory_space<vmem>>, vector<1x8x4xf32>
    %43 = vector.shape_cast %42 : vector<1x8x4xf32> to vector<8x4xf32>
    %cst_42 = arith.constant dense<0.000000e+00> : vector<8x1224xf32>
    %44 = tpu.matmul %43, %41, %cst_42 {dimension_numbers = #tpu.dot_dimension_numbers<[1], [0], [0], [1], [0, 0, 1, 1], [], []>} : vector<8x4xf32>, vector<4x1224xf32>, vector<8x1224xf32> -> vector<8x1224xf32>
    %45 = arith.addf %40, %44 : vector<8x1224xf32>
    %c0_43 = arith.constant 0 : index
    %c74 = arith.constant 74 : index
    %46 = vector.load %arg6[%c0_43, %c74] : memref<4x1298xf32, #tpu.memory_space<vmem>>, vector<4x1224xf32>
    %c8 = arith.constant 8 : index
    %c0_44 = arith.constant 0 : index
    %c0_45 = arith.constant 0 : index
    %47 = vector.load %arg3[%c8, %c0_44, %c0_45] : memref<9x8x4xf32, #tpu.memory_space<vmem>>, vector<1x8x4xf32>
    %48 = vector.shape_cast %47 : vector<1x8x4xf32> to vector<8x4xf32>
    %cst_46 = arith.constant dense<0.000000e+00> : vector<8x1224xf32>
    %49 = tpu.matmul %48, %46, %cst_46 {dimension_numbers = #tpu.dot_dimension_numbers<[1], [0], [0], [1], [0, 0, 1, 1], [], []>} : vector<8x4xf32>, vector<4x1224xf32>, vector<8x1224xf32> -> vector<8x1224xf32>
    %50 = arith.addf %45, %49 : vector<8x1224xf32>
    %c0_47 = arith.constant 0 : index
    %c0_48 = arith.constant 0 : index
    %51 = vector.load %arg4[%c0_47, %c0_48] : memref<8x1xf32, #tpu.memory_space<vmem>>, vector<8x1xf32>
    %52 = vector.broadcast %51 : vector<8x1xf32> to vector<8x1224xf32>
    %53 = arith.addf %50, %52 : vector<8x1224xf32>
    %cst_49 = arith.constant 0.000000e+00 : f32
    %54 = vector.broadcast %cst_49 : f32 to vector<8x1224xf32>
    %55 = arith.maximumf %53, %54 : vector<8x1224xf32>
    %c0_50 = arith.constant 0 : index
    %c0_51 = arith.constant 0 : index
    %c0_52 = arith.constant 0 : index
    %56 = vector.load %arg5[%c0_50, %c0_51, %c0_52] : memref<1x8x1224xf32, #tpu.memory_space<vmem>>, vector<1x8x1224xf32>
    %57 = vector.shape_cast %56 : vector<1x8x1224xf32> to vector<8x1224xf32>
    %58 = vector.shape_cast %55 : vector<8x1224xf32> to vector<1x8x1224xf32>
    tpu.vector_store %arg5[%c0_50, %c0_51, %c0_52], %58 {strides = array<i32>} : memref<1x8x1224xf32, #tpu.memory_space<vmem>>, vector<1x8x1224xf32>,
    return
  }
  func.func @transform_0(%arg0: i32) -> (i32, i32, i32) {
    %c0_i32 = arith.constant 0 : i32
    %c0_i32_0 = arith.constant 0 : i32
    %c0_i32_1 = arith.constant 0 : i32
    return %arg0, %c0_i32, %c0_i32_0 : i32, i32, i32
  }
  func.func @transform_1(%arg0: i32) -> (i32, i32) {
    %c0_i32 = arith.constant 0 : i32
    %c0_i32_0 = arith.constant 0 : i32
    %c0_i32_1 = arith.constant 0 : i32
    return %c0_i32, %c0_i32_0 : i32, i32
  }
  func.func @transform_2(%arg0: i32) -> (i32, i32, i32) {
    %c0_i32 = arith.constant 0 : i32
    %c0_i32_0 = arith.constant 0 : i32
    %c0_i32_1 = arith.constant 0 : i32
    %c0_i32_2 = arith.constant 0 : i32
    return %c0_i32, %c0_i32_0, %c0_i32_1 : i32, i32, i32
  }
  func.func @transform_3(%arg0: i32) -> (i32, i32) {
    %c0_i32 = arith.constant 0 : i32
    %c0_i32_0 = arith.constant 0 : i32
    %c0_i32_1 = arith.constant 0 : i32
    return %c0_i32, %c0_i32_0 : i32, i32
  }
  func.func @transform_4(%arg0: i32) -> (i32, i32, i32) {
    %c0_i32 = arith.constant 0 : i32
    %c0_i32_0 = arith.constant 0 : i32
    %c0_i32_1 = arith.constant 0 : i32
    return %arg0, %c0_i32, %c0_i32_0 : i32, i32, i32
  }
}

</mosaic_0001>

<llo_original>
// kernel: deconv_block_forward.1
$region0: #{deconv_block_forward.1}
  #allocation0 [shape = 'u32[]', space=smem, size = 0x4, offset = 0x4, fixed_abs, tag = 'smem constant byte address 0x4 - core index']
  #allocation1 [shape = 'u32[144,128]{1,0:T(1,128)}', space=vmem, size = 0x12000, scoped, tag = 'internal scratch']
  #allocation2 [shape = 'f32[4,1298]{1,0:T(4,128)}', space=vmem, size = 0x5800, scoped, tag = 'scratch operand']
  %s0 = inlined_call_operand.vmem [shape: f32[2,4,256], index: 0, kind: input, shape index: {}]
  %s1 = inlined_call_operand.hbm [shape: f32[256,1298], index: 1, kind: input, shape index: {}]
  %s2 = inlined_call_operand.vmem [shape: f32[9,8,4], index: 2, kind: input, shape index: {}]
  %s3 = inlined_call_operand.vmem [shape: f32[8,1], index: 3, kind: input, shape index: {}]
  %s4 = inlined_call_operand.vmem [shape: f32[2,8,1224], index: 4, kind: output, shape index: {}]
  %s5 = sld [smem:[#allocation0]]
  $region53: #{deconv_block_forward.1} parent=0
    _
  %s7 = ssub.s32 1, %s5
  %s8 = scalar_select 0, %s7, %s5
  $region1: #{deconv_block_forward.1} parent=0
    #allocation3 [shape = 'u8[1441792]{0}', space=vmem, size = 0x160000, scoped, tag = 'input window, operand 1, single buffered']
    #allocation4 [shape = 's32[2]{0}', space=sflag, size = 0x8, scoped, tag = 'scoped memory for deconv_block_forward.1']
    %9 = vsyncpa [#allocation4], 0
    loop: start=0, step=1, limit=4
    $region2: #{deconv_block_forward.1} parent=1 // loop_pre_header
      _
    $region3: #{deconv_block_forward.1} parent=1 // loop_header
      %s11 = sphi 0, %s15
      %p12 = scmp.ge.s32.totalorder %s11, 4
      %s21 = sphi 0, %s23
      %s24 = sphi 0, %s21
      %s25 = sphi 0, %s24
      %s41 = sphi 0, %s25
      %s45 = sphi 0, %s45
      %s47 = sphi 0, %s45
      %s48 = sphi 0, %s47
      %s62 = sphi 0, %s48
      %s66 = sphi 0, %s66
      %s68 = sphi 0, %s66
      %s69 = sphi 0, %s68
      %s83 = sphi 0, %s69
      %s87 = sphi 0, %s87
      %s89 = sphi 0, %s87
      %s90 = sphi 0, %s89
      %s104 = sphi 0, %s90
      %s110 = sphi 0, %s112
      %s113 = sphi 0, %s110
      %s114 = sphi 0, %s113
      %s130 = sphi 0, %s114
    $region4: #{deconv_block_forward.1} parent=1 // loop_header_branch
      %14 = sbr.rel (%p12) target = $region8
    $region5: #{deconv_block_forward.1} parent=1 // loop_body
      %s16 = ssub.s32 %s11, 1
      %s17 = ssub.s32 %s11, 2
      %s18 = sadd.s32 %s11, 1
      %s19 = ssub.s32 %s11, %s18
      %p20 = scmp.eq.s32.totalorder %s19, 0
      %s22 = sadd.s32 %s21, 1
      %s23 = scalar_select %p20, %s21, %s22
      %p26 = pneg %p20
      %p27 = scmp.eq.s32.totalorder %s11, 1
      %p28 = por %p26, %p27
      %p29 = scmp.ne.s32.totalorder %s21, %s24
      %p30 = scmp.eq.s32.totalorder %s11, 0
      %p31 = por %p29, %p30
      %p32 = scmp.ne.s32.totalorder %s21, %s24
      %p33 = scmp.eq.s32.totalorder %s16, 1
      %p34 = por %p32, %p33
      %p35 = scmp.ne.s32.totalorder %s24, %s25
      %p36 = scmp.eq.s32.totalorder %s16, 0
      %p37 = por %p35, %p36
      %p38 = scmp.ne.s32.totalorder %s24, %s25
      %p39 = scmp.eq.s32.totalorder %s17, 1
      %p40 = por %p38, %p39
      %p42 = scmp.ne.s32.totalorder %s25, %s41
      %p43 = scmp.eq.s32.totalorder %s17, 0
      %p44 = por %p42, %p43
      %s46 = sadd.s32 %s45, 1
      %p49 = scmp.eq.s32.totalorder %s11, 1
      %p50 = scmp.ne.s32.totalorder %s45, %s47
      %p51 = scmp.eq.s32.totalorder %s11, 0
      %p52 = por %p50, %p51
      %p53 = scmp.ne.s32.totalorder %s45, %s47
      %p54 = scmp.eq.s32.totalorder %s16, 1
      %p55 = por %p53, %p54
      %p56 = scmp.ne.s32.totalorder %s47, %s48
      %p57 = scmp.eq.s32.totalorder %s16, 0
      %p58 = por %p56, %p57
      %p59 = scmp.ne.s32.totalorder %s47, %s48
      %p60 = scmp.eq.s32.totalorder %s17, 1
      %p61 = por %p59, %p60
      %p63 = scmp.ne.s32.totalorder %s48, %s62
      %p64 = scmp.eq.s32.totalorder %s17, 0
      %p65 = por %p63, %p64
      %s67 = sadd.s32 %s66, 1
      %p70 = scmp.eq.s32.totalorder %s11, 1
      %p71 = scmp.ne.s32.totalorder %s66, %s68
      %p72 = scmp.eq.s32.totalorder %s11, 0
      %p73 = por %p71, %p72
      %p74 = scmp.ne.s32.totalorder %s66, %s68
      %p75 = scmp.eq.s32.totalorder %s16, 1
      %p76 = por %p74, %p75
      %p77 = scmp.ne.s32.totalorder %s68, %s69
      %p78 = scmp.eq.s32.totalorder %s16, 0
      %p79 = por %p77, %p78
      %p80 = scmp.ne.s32.totalorder %s68, %s69
      %p81 = scmp.eq.s32.totalorder %s17, 1
      %p82 = por %p80, %p81
      %p84 = scmp.ne.s32.totalorder %s69, %s83
      %p85 = scmp.eq.s32.totalorder %s17, 0
      %p86 = por %p84, %p85
      %s88 = sadd.s32 %s87, 1
      %p91 = scmp.eq.s32.totalorder %s11, 1
      %p92 = scmp.ne.s32.totalorder %s87, %s89
      %p93 = scmp.eq.s32.totalorder %s11, 0
      %p94 = por %p92, %p93
      %p95 = scmp.ne.s32.totalorder %s87, %s89
      %p96 = scmp.eq.s32.totalorder %s16, 1
      %p97 = por %p95, %p96
      %p98 = scmp.ne.s32.totalorder %s89, %s90
      %p99 = scmp.eq.s32.totalorder %s16, 0
      %p100 = por %p98, %p99
      %p101 = scmp.ne.s32.totalorder %s89, %s90
      %p102 = scmp.eq.s32.totalorder %s17, 1
      %p103 = por %p101, %p102
      %p105 = scmp.ne.s32.totalorder %s90, %s104
      %p106 = scmp.eq.s32.totalorder %s17, 0
      %p107 = por %p105, %p106
      %s108 = ssub.s32 %s11, %s18
      %p109 = scmp.eq.s32.totalorder %s108, 0
      %s111 = sadd.s32 %s110, 1
      %s112 = scalar_select %p109, %s110, %s111
      %p115 = pneg %p109
      %p116 = scmp.eq.s32.totalorder %s11, 1
      %p117 = por %p115, %p116
      %p118 = scmp.ne.s32.totalorder %s110, %s113
      %p119 = scmp.eq.s32.totalorder %s11, 0
      %p120 = por %p118, %p119
      %p121 = scmp.ne.s32.totalorder %s110, %s113
      %p122 = scmp.eq.s32.totalorder %s16, 1
      %p123 = por %p121, %p122
      %p124 = scmp.ne.s32.totalorder %s113, %s114
      %p125 = scmp.eq.s32.totalorder %s16, 0
      %p126 = por %p124, %p125
      %p127 = scmp.ne.s32.totalorder %s113, %s114
      %p128 = scmp.eq.s32.totalorder %s17, 1
      %p129 = por %p127, %p128
      %p131 = scmp.ne.s32.totalorder %s114, %s130
      %p132 = scmp.eq.s32.totalorder %s17, 0
      %p133 = por %p131, %p132
      %p134 = scmp.le.s32.totalorder 1, %s11
      %p135 = scmp.lt.s32.totalorder %s11, 3
      %p136 = pnand %p134, %p135
      %p137 = pneg %p136
      // Predicated region
      $region9: #{deconv_block_forward.1} parent=5 // pred_check
        _
      $region10: #{deconv_block_forward.1} parent=5 // pred_check_branch
        %139 = sbr.rel (%p136) target = $region12
      $region11: #{deconv_block_forward.1} parent=5 // pred_region
        %s140 = ssub.s32 %s11, 1
        // Predicated region
        $region13: #{deconv_block_forward.1} parent=11 // pred_check
          %p141 = pneg %p58
        $region14: #{deconv_block_forward.1} parent=11 // pred_check_branch
          %143 = sbr.rel (%p141) target = $region16
        $region15: #{deconv_block_forward.1} parent=11 // pred_region
          %s145 = ssub.s32 45056, 45056
          %146 = vsyncadd [#allocation4], %s145
          %s147 = sshll.u32 [#allocation3], 4
          %s148 = int_to_ptr.vmem [resolvable:$true] %s147
          %153 = dma.hbm_to_vmem [thread:$0]  %s1, 45056, %s148, [#allocation4], 1408, 1408, 88
        $region16: #{deconv_block_forward.1} parent=11 // pred_fallthru
          _
        // Predicated region
        $region17: #{deconv_block_forward.1} parent=11 // pred_check
          %p154 = pneg %p79
        $region18: #{deconv_block_forward.1} parent=11 // pred_check_branch
          %156 = sbr.rel (%p154) target = $region20
        $region19: #{deconv_block_forward.1} parent=11 // pred_region
          _
        $region20: #{deconv_block_forward.1} parent=11 // pred_fallthru
          _
        // Predicated region
        $region21: #{deconv_block_forward.1} parent=11 // pred_check
          %p157 = pneg %p100
        $region22: #{deconv_block_forward.1} parent=11 // pred_check_branch
          %159 = sbr.rel (%p157) target = $region24
        $region23: #{deconv_block_forward.1} parent=11 // pred_region
          _
        $region24: #{deconv_block_forward.1} parent=11 // pred_fallthru
          _
      $region12: #{deconv_block_forward.1} parent=5 // pred_fallthru
        _
      %p160 = scmp.lt.s32.totalorder %s11, 2
      // Predicated region
      $region25: #{deconv_block_forward.1} parent=5 // pred_check
        %p161 = pneg %p160
      $region26: #{deconv_block_forward.1} parent=5 // pred_check_branch
        %163 = sbr.rel (%p161) target = $region28
      $region27: #{deconv_block_forward.1} parent=5 // pred_region
        // Predicated region
        $region29: #{deconv_block_forward.1} parent=27 // pred_check
          %p164 = pneg %p31
        $region30: #{deconv_block_forward.1} parent=27 // pred_check_branch
          %166 = sbr.rel (%p164) target = $region32
        $region31: #{deconv_block_forward.1} parent=27 // pred_region
          %p167 = scmp.lt.s32.totalorder %s11, 1
          %s168 = scalar_select %p167, %s11, 1
          %s169 = smul.addr %s168, 2
          %s170 = smul.addr %s169, 4
          %s171 = scalar_lea.vmem %s0, %s170
        $region32: #{deconv_block_forward.1} parent=27 // pred_fallthru
          _
      $region28: #{deconv_block_forward.1} parent=5 // pred_fallthru
        _
      %p172 = scmp.le.s32.totalorder 1, %s11
      %p173 = scmp.lt.s32.totalorder %s11, 3
      %p174 = pnand %p172, %p173
      %p175 = pneg %p174
      // Predicated region
      $region33: #{deconv_block_forward.1} parent=5 // pred_check
        _
      $region34: #{deconv_block_forward.1} parent=5 // pred_check_branch
        %177 = sbr.rel (%p174) target = $region36
      $region35: #{deconv_block_forward.1} parent=5 // pred_region
        %s178 = ssub.s32 %s11, 1
        // Predicated region
        $region37: #{deconv_block_forward.1} parent=35 // pred_check
          %p179 = pneg %p58
        $region38: #{deconv_block_forward.1} parent=35 // pred_check_branch
          %181 = sbr.rel (%p179) target = $region40
        $region39: #{deconv_block_forward.1} parent=35 // pred_region
          %182 = dma.done [#allocation4], 45056
        $region40: #{deconv_block_forward.1} parent=35 // pred_fallthru
          _
        %p183 = scmp.lt.s32.totalorder %s16, 1
        %s184 = scalar_select %p183, %s16, 1
        %s185 = smul.addr %s184, 2
        %s186 = smul.addr %s185, 4
        %s187 = scalar_lea.vmem %s0, %s186
        %p188 = pneg %p37
        %p189 = pneg %p34
        %p190 = pneg %p58
        %p191 = pneg %p55
        %p192 = pneg %p79
        %p193 = pneg %p76
        %p194 = pneg %p100
        %p195 = pneg %p97
        %p196 = pneg %p126
        %p197 = pneg %p123
        %p198 = scmp.lt.s32.totalorder %s16, 1
        %s199 = scalar_select %p198, %s16, 1
        %s200 = smul.addr %s199, 10
        %s201 = smul.addr %s200, 8
        %s202 = scalar_lea.vmem %s4, %s201
        %p203 = scmp.lt.s32.totalorder %s16, 1
        %s204 = scalar_select %p203, %s16, 1
        %s205 = smul.addr %s204, 2
        %s206 = smul.addr %s205, 4
        %s207 = scalar_lea.vmem %s0, %s206
        %p208 = scmp.lt.s32.totalorder %s16, 1
        %s209 = scalar_select %p208, %s16, 1
        %s210 = smul.addr %s209, 10
        %s211 = smul.addr %s210, 8
        %s212 = scalar_lea.vmem %s4, %s211
        %v213 = vld [vmem:[%s207] sm:$0xff]
        %v214 = vld [vmem:[#allocation3] sm:$0xff]
        %v215 = vld [vmem:[#allocation3 + $0x8] sm:$0xff]
        %v216 = vld [vmem:[#allocation3 + $0x10] sm:$0xff]
        %v217 = vld [vmem:[#allocation3 + $0x18] sm:$0xff]
        %v218 = vld [vmem:[#allocation3 + $0x20] sm:$0xff]
        %v219 = vld [vmem:[#allocation3 + $0x28] sm:$0xff]
        %v220 = vld [vmem:[#allocation3 + $0x30] sm:$0xff]
        %v221 = vld [vmem:[#allocation3 + $0x38] sm:$0xff]
        %v222 = vld [vmem:[#allocation3 + $0x40] sm:$0xff]
        %v223 = vld [vmem:[#allocation3 + $0x48] sm:$0xff]
        %v224 = vld [vmem:[#allocation3 + $0x50] sm:$0xff]
        %v225 = vld [vmem:[#allocation3 + $0x58] sm:$0xff]
        %v226 = vld [vmem:[#allocation3 + $0x60] sm:$0xff]
        %v227 = vld [vmem:[#allocation3 + $0x68] sm:$0xff]
        %v228 = vld [vmem:[#allocation3 + $0x70] sm:$0xff]
        %v229 = vld [vmem:[#allocation3 + $0x78] sm:$0xff]
        %v230 = vld [vmem:[#allocation3 + $0x80] sm:$0xff]
        %v231 = vld [vmem:[#allocation3 + $0x88] sm:$0xff]
        %v232 = vld [vmem:[#allocation3 + $0x90] sm:$0xff]
        %v233 = vld [vmem:[#allocation3 + $0x98] sm:$0xff]
        %v234 = vld [vmem:[#allocation3 + $0xa0] sm:$0xff]
        %v235 = vld [vmem:[#allocation3 + $0xa8] sm:$0xff]
        %v236 = vld [vmem:[#allocation3 + $0xb0] sm:$0xff]
        %v237 = vld [vmem:[#allocation3 + $0xb8] sm:$0xff]
        %v238 = vld [vmem:[#allocation3 + $0xc0] sm:$0xff]
        %v239 = vld [vmem:[#allocation3 + $0xc8] sm:$0xff]
        %v240 = vld [vmem:[#allocation3 + $0xd0] sm:$0xff]
        %v241 = vld [vmem:[#allocation3 + $0xd8] sm:$0xff]
        %v242 = vld [vmem:[#allocation3 + $0xe0] sm:$0xff]
        %v243 = vld [vmem:[#allocation3 + $0xe8] sm:$0xff]
        %v244 = vld [vmem:[#allocation3 + $0xf0] sm:$0xff]
        %v245 = vld [vmem:[#allocation3 + $0xf8] sm:$0xff]
        %v246 = vld [vmem:[#allocation3 + $0x100] sm:$0xff]
        %v247 = vld [vmem:[#allocation3 + $0x108] sm:$0xff]
        %v248 = vld [vmem:[#allocation3 + $0x110] sm:$0xff]
        %v249 = vld [vmem:[#allocation3 + $0x118] sm:$0xff]
        %v250 = vld [vmem:[#allocation3 + $0x120] sm:$0xff]
        %v251 = vld [vmem:[#allocation3 + $0x128] sm:$0xff]
        %v252 = vld [vmem:[#allocation3 + $0x130] sm:$0xff]
        %v253 = vld [vmem:[#allocation3 + $0x138] sm:$0xff]
        %v254 = vld [vmem:[#allocation3 + $0x140] sm:$0xff]
        %v255 = vld [vmem:[#allocation3 + $0x148] sm:$0xff]
        %v256 = vld [vmem:[#allocation3 + $0x150] sm:$0xff]
        %v257 = vld [vmem:[#allocation3 + $0x158] sm:$0xff]
        %v258 = vld [vmem:[#allocation3 + $0x160] sm:$0xff]
        %v259 = vld [vmem:[#allocation3 + $0x168] sm:$0xff]
        %v260 = vld [vmem:[#allocation3 + $0x170] sm:$0xff]
        %v261 = vld [vmem:[#allocation3 + $0x178] sm:$0xff]
        %v262 = vld [vmem:[#allocation3 + $0x180] sm:$0xff]
        %v263 = vld [vmem:[#allocation3 + $0x188] sm:$0xff]
        %v264 = vld [vmem:[#allocation3 + $0x190] sm:$0xff]
        %v265 = vld [vmem:[#allocation3 + $0x198] sm:$0xff]
        %v266 = vld [vmem:[#allocation3 + $0x1a0] sm:$0xff]
        %v267 = vld [vmem:[#allocation3 + $0x1a8] sm:$0xff]
        %v268 = vld [vmem:[#allocation3 + $0x1b0] sm:$0xff]
        %v269 = vld [vmem:[#allocation3 + $0x1b8] sm:$0xff]
        %v270 = vld [vmem:[#allocation3 + $0x1c0] sm:$0xff]
        %v271 = vld [vmem:[#allocation3 + $0x1c8] sm:$0xff]
        %v272 = vld [vmem:[#allocation3 + $0x1d0] sm:$0xff]
        %v273 = vld [vmem:[#allocation3 + $0x1d8] sm:$0xff]
        %v274 = vld [vmem:[#allocation3 + $0x1e0] sm:$0xff]
        %v275 = vld [vmem:[#allocation3 + $0x1e8] sm:$0xff]
        %v276 = vld [vmem:[#allocation3 + $0x1f0] sm:$0xff]
        %v277 = vld [vmem:[#allocation3 + $0x1f8] sm:$0xff]
        %v278 = vld [vmem:[#allocation3 + $0x200] sm:$0xff]
        %v279 = vld [vmem:[#allocation3 + $0x208] sm:$0xff]
        %v280 = vld [vmem:[#allocation3 + $0x210] sm:$0xff]
        %v281 = vld [vmem:[#allocation3 + $0x218] sm:$0xff]
        %v282 = vld [vmem:[#allocation3 + $0x220] sm:$0xff]
        %v283 = vld [vmem:[#allocation3 + $0x228] sm:$0xff]
        %v284 = vld [vmem:[#allocation3 + $0x230] sm:$0xff]
        %v285 = vld [vmem:[#allocation3 + $0x238] sm:$0xff]
        %v286 = vld [vmem:[#allocation3 + $0x240] sm:$0xff]
        %v287 = vld [vmem:[#allocation3 + $0x248] sm:$0xff]
        %v288 = vld [vmem:[#allocation3 + $0x250] sm:$0xff]
        %v289 = vld [vmem:[#allocation3 + $0x258] sm:$0xff]
        %v290 = vld [vmem:[#allocation3 + $0x260] sm:$0xff]
        %v291 = vld [vmem:[#allocation3 + $0x268] sm:$0xff]
        %v292 = vld [vmem:[#allocation3 + $0x270] sm:$0xff]
        %v293 = vld [vmem:[#allocation3 + $0x278] sm:$0xff]
        %v294 = vld [vmem:[#allocation3 + $0x280] sm:$0xff]
        %v295 = vld [vmem:[#allocation3 + $0x288] sm:$0xff]
        %v296 = vld [vmem:[#allocation3 + $0x290] sm:$0xff]
        %v297 = vld [vmem:[#allocation3 + $0x298] sm:$0xff]
        %v298 = vld [vmem:[#allocation3 + $0x2a0] sm:$0xff]
        %v299 = vld [vmem:[#allocation3 + $0x2a8] sm:$0xff]
        %v300 = vld [vmem:[#allocation3 + $0x2b0] sm:$0xff]
        %v301 = vld [vmem:[#allocation3 + $0x2b8] sm:$0xff]
        %v302 = vld [vmem:[#allocation3 + $0x2c0] sm:$0xff]
        %v303 = vld [vmem:[#allocation3 + $0x2c8] sm:$0xff]
        %v304 = vld [vmem:[#allocation3 + $0x2d0] sm:$0xff]
        %v305 = vld [vmem:[#allocation3 + $0x2d8] sm:$0xff]
        %v306 = vld [vmem:[#allocation3 + $0x2e0] sm:$0xff]
        %v307 = vld [vmem:[#allocation3 + $0x2e8] sm:$0xff]
        %v308 = vld [vmem:[#allocation3 + $0x2f0] sm:$0xff]
        %v309 = vld [vmem:[#allocation3 + $0x2f8] sm:$0xff]
        %v310 = vld [vmem:[#allocation3 + $0x300] sm:$0xff]
        %v311 = vld [vmem:[#allocation3 + $0x308] sm:$0xff]
        %v312 = vld [vmem:[#allocation3 + $0x310] sm:$0xff]
        %v313 = vld [vmem:[#allocation3 + $0x318] sm:$0xff]
        %v314 = vld [vmem:[#allocation3 + $0x320] sm:$0xff]
        %v315 = vld [vmem:[#allocation3 + $0x328] sm:$0xff]
        %v316 = vld [vmem:[#allocation3 + $0x330] sm:$0xff]
        %v317 = vld [vmem:[#allocation3 + $0x338] sm:$0xff]
        %v318 = vld [vmem:[#allocation3 + $0x340] sm:$0xff]
        %v319 = vld [vmem:[#allocation3 + $0x348] sm:$0xff]
        %v320 = vld [vmem:[#allocation3 + $0x350] sm:$0xff]
        %v321 = vld [vmem:[#allocation3 + $0x358] sm:$0xff]
        %v322 = vld [vmem:[#allocation3 + $0x360] sm:$0xff]
        %v323 = vld [vmem:[#allocation3 + $0x368] sm:$0xff]
        %v324 = vld [vmem:[#allocation3 + $0x370] sm:$0xff]
        %v325 = vld [vmem:[#allocation3 + $0x378] sm:$0xff]
        %v326 = vld [vmem:[#allocation3 + $0x380] sm:$0xff]
        %v327 = vld [vmem:[#allocation3 + $0x388] sm:$0xff]
        %v328 = vld [vmem:[#allocation3 + $0x390] sm:$0xff]
        %v329 = vld [vmem:[#allocation3 + $0x398] sm:$0xff]
        %v330 = vld [vmem:[#allocation3 + $0x3a0] sm:$0xff]
        %v331 = vld [vmem:[#allocation3 + $0x3a8] sm:$0xff]
        %v332 = vld [vmem:[#allocation3 + $0x3b0] sm:$0xff]
        %v333 = vld [vmem:[#allocation3 + $0x3b8] sm:$0xff]
        %v334 = vld [vmem:[#allocation3 + $0x3c0] sm:$0xff]
        %v335 = vld [vmem:[#allocation3 + $0x3c8] sm:$0xff]
        %v336 = vld [vmem:[#allocation3 + $0x3d0] sm:$0xff]
        %v337 = vld [vmem:[#allocation3 + $0x3d8] sm:$0xff]
        %v338 = vld [vmem:[#allocation3 + $0x3e0] sm:$0xff]
        %v339 = vld [vmem:[#allocation3 + $0x3e8] sm:$0xff]
        %v340 = vld [vmem:[#allocation3 + $0x3f0] sm:$0xff]
        %v341 = vld [vmem:[#allocation3 + $0x3f8] sm:$0xff]
        %v342 = vld [vmem:[#allocation3 + $0x400] sm:$0xff]
        %v343 = vld [vmem:[#allocation3 + $0x408] sm:$0xff]
        %v344 = vld [vmem:[#allocation3 + $0x410] sm:$0xff]
        %v345 = vld [vmem:[#allocation3 + $0x418] sm:$0xff]
        %v346 = vld [vmem:[#allocation3 + $0x420] sm:$0xff]
        %v347 = vld [vmem:[#allocation3 + $0x428] sm:$0xff]
        %v348 = vld [vmem:[#allocation3 + $0x430] sm:$0xff]
        %v349 = vld [vmem:[#allocation3 + $0x438] sm:$0xff]
        %v350 = vld [vmem:[#allocation3 + $0x440] sm:$0xff]
        %v351 = vld [vmem:[#allocation3 + $0x448] sm:$0xff]
        %v352 = vld [vmem:[#allocation3 + $0x450] sm:$0xff]
        %v353 = vld [vmem:[#allocation3 + $0x458] sm:$0xff]
        %v354 = vld [vmem:[#allocation3 + $0x460] sm:$0xff]
        %v355 = vld [vmem:[#allocation3 + $0x468] sm:$0xff]
        %v356 = vld [vmem:[#allocation3 + $0x470] sm:$0xff]
        %v357 = vld [vmem:[#allocation3 + $0x478] sm:$0xff]
        %v358 = vld [vmem:[#allocation3 + $0x480] sm:$0xff]
        %v359 = vld [vmem:[#allocation3 + $0x488] sm:$0xff]
        %v360 = vld [vmem:[#allocation3 + $0x490] sm:$0xff]
        %v361 = vld [vmem:[#allocation3 + $0x498] sm:$0xff]
        %v362 = vld [vmem:[#allocation3 + $0x4a0] sm:$0xff]
        %v363 = vld [vmem:[#allocation3 + $0x4a8] sm:$0xff]
        %v364 = vld [vmem:[#allocation3 + $0x4b0] sm:$0xff]
        %v365 = vld [vmem:[#allocation3 + $0x4b8] sm:$0xff]
        %v366 = vld [vmem:[#allocation3 + $0x4c0] sm:$0xff]
        %v367 = vld [vmem:[#allocation3 + $0x4c8] sm:$0xff]
        %v368 = vld [vmem:[#allocation3 + $0x4d0] sm:$0xff]
        %v369 = vld [vmem:[#allocation3 + $0x4d8] sm:$0xff]
        %v370 = vld [vmem:[#allocation3 + $0x4e0] sm:$0xff]
        %v371 = vld [vmem:[#allocation3 + $0x4e8] sm:$0xff]
        %v372 = vld [vmem:[#allocation3 + $0x4f0] sm:$0xff]
        %v373 = vld [vmem:[#allocation3 + $0x4f8] sm:$0xff]
        %v374 = vld [vmem:[#allocation3 + $0x500] sm:$0xff]
        %v375 = vld [vmem:[#allocation3 + $0x508] sm:$0xff]
        %v376 = vld [vmem:[#allocation3 + $0x510] sm:$0xff]
        %v377 = vld [vmem:[#allocation3 + $0x518] sm:$0xff]
        %v378 = vld [vmem:[#allocation3 + $0x520] sm:$0xff]
        %v379 = vld [vmem:[#allocation3 + $0x528] sm:$0xff]
        %v380 = vld [vmem:[#allocation3 + $0x530] sm:$0xff]
        %v381 = vld [vmem:[#allocation3 + $0x538] sm:$0xff]
        %v382 = vld [vmem:[#allocation3 + $0x540] sm:$0xff]
        %v383 = vld [vmem:[#allocation3 + $0x548] sm:$0xff]
        %v384 = vld [vmem:[#allocation3 + $0x550] sm:$0xff]
        %v385 = vld [vmem:[#allocation3 + $0x558] sm:$0xff]
        %v386 = vld [vmem:[#allocation3 + $0x560] sm:$0xff]
        %v387 = vld [vmem:[#allocation3 + $0x568] sm:$0xff]
        %v388 = vld [vmem:[#allocation3 + $0x570] sm:$0xff]
        %v389 = vld [vmem:[#allocation3 + $0x578] sm:$0xff]
        %v390 = vld [vmem:[#allocation3 + $0x580] sm:$0xff]
        %v391 = vld [vmem:[#allocation3 + $0x588] sm:$0xff]
        %v392 = vld [vmem:[#allocation3 + $0x590] sm:$0xff]
        %v393 = vld [vmem:[#allocation3 + $0x598] sm:$0xff]
        %v394 = vld [vmem:[#allocation3 + $0x5a0] sm:$0xff]
        %v395 = vld [vmem:[#allocation3 + $0x5a8] sm:$0xff]
        %v396 = vld [vmem:[#allocation3 + $0x5b0] sm:$0xff]
        %v397 = vld [vmem:[#allocation3 + $0x5b8] sm:$0xff]
        %v398 = vld [vmem:[#allocation3 + $0x5c0] sm:$0xff]
        %v399 = vld [vmem:[#allocation3 + $0x5c8] sm:$0xff]
        %v400 = vld [vmem:[#allocation3 + $0x5d0] sm:$0xff]
        %v401 = vld [vmem:[#allocation3 + $0x5d8] sm:$0xff]
        %v402 = vld [vmem:[#allocation3 + $0x5e0] sm:$0xff]
        %v403 = vld [vmem:[#allocation3 + $0x5e8] sm:$0xff]
        %v404 = vld [vmem:[#allocation3 + $0x5f0] sm:$0xff]
        %v405 = vld [vmem:[#allocation3 + $0x5f8] sm:$0xff]
        %v406 = vld [vmem:[#allocation3 + $0x600] sm:$0xff]
        %v407 = vld [vmem:[#allocation3 + $0x608] sm:$0xff]
        %v408 = vld [vmem:[#allocation3 + $0x610] sm:$0xff]
        %v409 = vld [vmem:[#allocation3 + $0x618] sm:$0xff]
        %v410 = vld [vmem:[#allocation3 + $0x620] sm:$0xff]
        %v411 = vld [vmem:[#allocation3 + $0x628] sm:$0xff]
        %v412 = vld [vmem:[#allocation3 + $0x630] sm:$0xff]
        %v413 = vld [vmem:[#allocation3 + $0x638] sm:$0xff]
        %v414 = vld [vmem:[#allocation3 + $0x640] sm:$0xff]
        %v415 = vld [vmem:[#allocation3 + $0x648] sm:$0xff]
        %v416 = vld [vmem:[#allocation3 + $0x650] sm:$0xff]
        %v417 = vld [vmem:[#allocation3 + $0x658] sm:$0xff]
        %v418 = vld [vmem:[#allocation3 + $0x660] sm:$0xff]
        %v419 = vld [vmem:[#allocation3 + $0x668] sm:$0xff]
        %v420 = vld [vmem:[#allocation3 + $0x670] sm:$0xff]
        %v421 = vld [vmem:[#allocation3 + $0x678] sm:$0xff]
        %v422 = vld [vmem:[#allocation3 + $0x680] sm:$0xff]
        %v423 = vld [vmem:[#allocation3 + $0x688] sm:$0xff]
        %v424 = vld [vmem:[#allocation3 + $0x690] sm:$0xff]
        %v425 = vld [vmem:[#allocation3 + $0x698] sm:$0xff]
        %v426 = vld [vmem:[#allocation3 + $0x6a0] sm:$0xff]
        %v427 = vld [vmem:[#allocation3 + $0x6a8] sm:$0xff]
        %v428 = vld [vmem:[#allocation3 + $0x6b0] sm:$0xff]
        %v429 = vld [vmem:[#allocation3 + $0x6b8] sm:$0xff]
        %v430 = vld [vmem:[#allocation3 + $0x6c0] sm:$0xff]
        %v431 = vld [vmem:[#allocation3 + $0x6c8] sm:$0xff]
        %v432 = vld [vmem:[#allocation3 + $0x6d0] sm:$0xff]
        %v433 = vld [vmem:[#allocation3 + $0x6d8] sm:$0xff]
        %v434 = vld [vmem:[#allocation3 + $0x6e0] sm:$0xff]
        %v435 = vld [vmem:[#allocation3 + $0x6e8] sm:$0xff]
        %v436 = vld [vmem:[#allocation3 + $0x6f0] sm:$0xff]
        %v437 = vld [vmem:[#allocation3 + $0x6f8] sm:$0xff]
        %v438 = vld [vmem:[#allocation3 + $0x700] sm:$0xff]
        %v439 = vld [vmem:[#allocation3 + $0x708] sm:$0xff]
        %v440 = vld [vmem:[#allocation3 + $0x710] sm:$0xff]
        %v441 = vld [vmem:[#allocation3 + $0x718] sm:$0xff]
        %v442 = vld [vmem:[#allocation3 + $0x720] sm:$0xff]
        %v443 = vld [vmem:[#allocation3 + $0x728] sm:$0xff]
        %v444 = vld [vmem:[#allocation3 + $0x730] sm:$0xff]
        %v445 = vld [vmem:[#allocation3 + $0x738] sm:$0xff]
        %v446 = vld [vmem:[#allocation3 + $0x740] sm:$0xff]
        %v447 = vld [vmem:[#allocation3 + $0x748] sm:$0xff]
        %v448 = vld [vmem:[#allocation3 + $0x750] sm:$0xff]
        %v449 = vld [vmem:[#allocation3 + $0x758] sm:$0xff]
        %v450 = vld [vmem:[#allocation3 + $0x760] sm:$0xff]
        %v451 = vld [vmem:[#allocation3 + $0x768] sm:$0xff]
        %v452 = vld [vmem:[#allocation3 + $0x770] sm:$0xff]
        %v453 = vld [vmem:[#allocation3 + $0x778] sm:$0xff]
        %v454 = vld [vmem:[#allocation3 + $0x780] sm:$0xff]
        %v455 = vld [vmem:[#allocation3 + $0x788] sm:$0xff]
        %v456 = vld [vmem:[#allocation3 + $0x790] sm:$0xff]
        %v457 = vld [vmem:[#allocation3 + $0x798] sm:$0xff]
        %v458 = vld [vmem:[#allocation3 + $0x7a0] sm:$0xff]
        %v459 = vld [vmem:[#allocation3 + $0x7a8] sm:$0xff]
        %v460 = vld [vmem:[#allocation3 + $0x7b0] sm:$0xff]
        %v461 = vld [vmem:[#allocation3 + $0x7b8] sm:$0xff]
        %v462 = vld [vmem:[#allocation3 + $0x7c0] sm:$0xff]
        %v463 = vld [vmem:[#allocation3 + $0x7c8] sm:$0xff]
        %v464 = vld [vmem:[#allocation3 + $0x7d0] sm:$0xff]
        %v465 = vld [vmem:[#allocation3 + $0x7d8] sm:$0xff]
        %v466 = vld [vmem:[#allocation3 + $0x7e0] sm:$0xff]
        %v467 = vld [vmem:[#allocation3 + $0x7e8] sm:$0xff]
        %v468 = vld [vmem:[#allocation3 + $0x7f0] sm:$0xff]
        %v469 = vld [vmem:[#allocation3 + $0x7f8] sm:$0xff]
        %v470 = vld [vmem:[#allocation3 + $0x800] sm:$0xff]
        %v471 = vld [vmem:[#allocation3 + $0x808] sm:$0xff]
        %v472 = vld [vmem:[#allocation3 + $0x810] sm:$0xff]
        %v473 = vld [vmem:[#allocation3 + $0x818] sm:$0xff]
        %v474 = vld [vmem:[#allocation3 + $0x820] sm:$0xff]
        %v475 = vld [vmem:[#allocation3 + $0x828] sm:$0xff]
        %v476 = vld [vmem:[#allocation3 + $0x830] sm:$0xff]
        %v477 = vld [vmem:[#allocation3 + $0x838] sm:$0xff]
        %v478 = vld [vmem:[#allocation3 + $0x840] sm:$0xff]
        %v479 = vld [vmem:[#allocation3 + $0x848] sm:$0xff]
        %v480 = vld [vmem:[#allocation3 + $0x850] sm:$0xff]
        %v481 = vld [vmem:[#allocation3 + $0x858] sm:$0xff]
        %v482 = vld [vmem:[#allocation3 + $0x860] sm:$0xff]
        %v483 = vld [vmem:[#allocation3 + $0x868] sm:$0xff]
        %v484 = vld [vmem:[#allocation3 + $0x870] sm:$0xff]
        %v485 = vld [vmem:[#allocation3 + $0x878] sm:$0xff]
        %v486 = vld [vmem:[#allocation3 + $0x880] sm:$0xff]
        %v487 = vld [vmem:[#allocation3 + $0x888] sm:$0xff]
        %v488 = vld [vmem:[#allocation3 + $0x890] sm:$0xff]
        %v489 = vld [vmem:[#allocation3 + $0x898] sm:$0xff]
        %v490 = vld [vmem:[#allocation3 + $0x8a0] sm:$0xff]
        %v491 = vld [vmem:[#allocation3 + $0x8a8] sm:$0xff]
        %v492 = vld [vmem:[#allocation3 + $0x8b0] sm:$0xff]
        %v493 = vld [vmem:[#allocation3 + $0x8b8] sm:$0xff]
        %v494 = vld [vmem:[#allocation3 + $0x8c0] sm:$0xff]
        %v495 = vld [vmem:[#allocation3 + $0x8c8] sm:$0xff]
        %v496 = vld [vmem:[#allocation3 + $0x8d0] sm:$0xff]
        %v497 = vld [vmem:[#allocation3 + $0x8d8] sm:$0xff]
        %v498 = vld [vmem:[#allocation3 + $0x8e0] sm:$0xff]
        %v499 = vld [vmem:[#allocation3 + $0x8e8] sm:$0xff]
        %v500 = vld [vmem:[#allocation3 + $0x8f0] sm:$0xff]
        %v501 = vld [vmem:[#allocation3 + $0x8f8] sm:$0xff]
        %v502 = vld [vmem:[#allocation3 + $0x900] sm:$0xff]
        %v503 = vld [vmem:[#allocation3 + $0x908] sm:$0xff]
        %v504 = vld [vmem:[#allocation3 + $0x910] sm:$0xff]
        %v505 = vld [vmem:[#allocation3 + $0x918] sm:$0xff]
        %v506 = vld [vmem:[#allocation3 + $0x920] sm:$0xff]
        %v507 = vld [vmem:[#allocation3 + $0x928] sm:$0xff]
        %v508 = vld [vmem:[#allocation3 + $0x930] sm:$0xff]
        %v509 = vld [vmem:[#allocation3 + $0x938] sm:$0xff]
        %v510 = vld [vmem:[#allocation3 + $0x940] sm:$0xff]
        %v511 = vld [vmem:[#allocation3 + $0x948] sm:$0xff]
        %v512 = vld [vmem:[#allocation3 + $0x950] sm:$0xff]
        %v513 = vld [vmem:[#allocation3 + $0x958] sm:$0xff]
        %v514 = vld [vmem:[#allocation3 + $0x960] sm:$0xff]
        %v515 = vld [vmem:[#allocation3 + $0x968] sm:$0xff]
        %v516 = vld [vmem:[#allocation3 + $0x970] sm:$0xff]
        %v517 = vld [vmem:[#allocation3 + $0x978] sm:$0xff]
        %v518 = vld [vmem:[#allocation3 + $0x980] sm:$0xff]
        %v519 = vld [vmem:[#allocation3 + $0x988] sm:$0xff]
        %v520 = vld [vmem:[#allocation3 + $0x990] sm:$0xff]
        %v521 = vld [vmem:[#allocation3 + $0x998] sm:$0xff]
        %v522 = vld [vmem:[#allocation3 + $0x9a0] sm:$0xff]
        %v523 = vld [vmem:[#allocation3 + $0x9a8] sm:$0xff]
        %v524 = vld [vmem:[#allocation3 + $0x9b0] sm:$0xff]
        %v525 = vld [vmem:[#allocation3 + $0x9b8] sm:$0xff]
        %v526 = vld [vmem:[#allocation3 + $0x9c0] sm:$0xff]
        %v527 = vld [vmem:[#allocation3 + $0x9c8] sm:$0xff]
        %v528 = vld [vmem:[#allocation3 + $0x9d0] sm:$0xff]
        %v529 = vld [vmem:[#allocation3 + $0x9d8] sm:$0xff]
        %v530 = vld [vmem:[#allocation3 + $0x9e0] sm:$0xff]
        %v531 = vld [vmem:[#allocation3 + $0x9e8] sm:$0xff]
        %v532 = vld [vmem:[#allocation3 + $0x9f0] sm:$0xff]
        %v533 = vld [vmem:[#allocation3 + $0x9f8] sm:$0xff]
        %v534 = vld [vmem:[#allocation3 + $0xa00] sm:$0xff]
        %v535 = vld [vmem:[#allocation3 + $0xa08] sm:$0xff]
        %v536 = vld [vmem:[#allocation3 + $0xa10] sm:$0xff]
        %v537 = vld [vmem:[#allocation3 + $0xa18] sm:$0xff]
        %v538 = vld [vmem:[#allocation3 + $0xa20] sm:$0xff]
        %v539 = vld [vmem:[#allocation3 + $0xa28] sm:$0xff]
        %v540 = vld [vmem:[#allocation3 + $0xa30] sm:$0xff]
        %v541 = vld [vmem:[#allocation3 + $0xa38] sm:$0xff]
        %v542 = vld [vmem:[#allocation3 + $0xa40] sm:$0xff]
        %v543 = vld [vmem:[#allocation3 + $0xa48] sm:$0xff]
        %v544 = vld [vmem:[#allocation3 + $0xa50] sm:$0xff]
        %v545 = vld [vmem:[#allocation3 + $0xa58] sm:$0xff]
        %v546 = vld [vmem:[#allocation3 + $0xa60] sm:$0xff]
        %v547 = vld [vmem:[#allocation3 + $0xa68] sm:$0xff]
        %v548 = vld [vmem:[#allocation3 + $0xa70] sm:$0xff]
        %v549 = vld [vmem:[#allocation3 + $0xa78] sm:$0xff]
        %v550 = vld [vmem:[#allocation3 + $0xa80] sm:$0xff]
        %v551 = vld [vmem:[#allocation3 + $0xa88] sm:$0xff]
        %v552 = vld [vmem:[#allocation3 + $0xa90] sm:$0xff]
        %v553 = vld [vmem:[#allocation3 + $0xa98] sm:$0xff]
        %v554 = vld [vmem:[#allocation3 + $0xaa0] sm:$0xff]
        %v555 = vld [vmem:[#allocation3 + $0xaa8] sm:$0xff]
        %v556 = vld [vmem:[#allocation3 + $0xab0] sm:$0xff]
        %v557 = vld [vmem:[#allocation3 + $0xab8] sm:$0xff]
        %v558 = vld [vmem:[#allocation3 + $0xac0] sm:$0xff]
        %v559 = vld [vmem:[#allocation3 + $0xac8] sm:$0xff]
        %v560 = vld [vmem:[#allocation3 + $0xad0] sm:$0xff]
        %v561 = vld [vmem:[#allocation3 + $0xad8] sm:$0xff]
        %v562 = vld [vmem:[#allocation3 + $0xae0] sm:$0xff]
        %v563 = vld [vmem:[#allocation3 + $0xae8] sm:$0xff]
        %v564 = vld [vmem:[#allocation3 + $0xaf0] sm:$0xff]
        %v565 = vld [vmem:[#allocation3 + $0xaf8] sm:$0xff]
        %v567 = vcombine.high %v213, %v213
        %569 = vmatprep.subr.mxu0 %v215
        %570 = vmatpush1.msra.mxu0 %v214
        %571 = vmatprep.subr.mxu0 %v226
        %572 = vmatpush1.msra.mxu0 %v225
        %573 = vmatprep.subr.mxu0 %v237
        %574 = vmatpush1.msra.mxu0 %v236
        %575 = vmatprep.subr.mxu0 %v248
        %576 = vmatpush1.msra.mxu0 %v247
        %577 = vmatprep.subr.mxu0 %v259
        %578 = vmatpush1.msra.mxu0 %v258
        %579 = vmatprep.subr.mxu0 %v270
        %580 = vmatpush1.msra.mxu0 %v269
        %581 = vmatprep.subr.mxu0 %v281
        %582 = vmatpush1.msra.mxu0 %v280
        %583 = vmatprep.subr.mxu0 %v292
        %584 = vmatpush1.msra.mxu0 %v291
        %585 = vmatprep.subr.mxu0 %v303
        %586 = vmatpush1.msra.mxu0 %v302
        %587 = vmatprep.subr.mxu0 %v314
        %588 = vmatpush1.msra.mxu0 %v313
        %589 = vmatprep.subr.mxu0 %v325
        %590 = vmatpush1.msra.mxu0 %v324
        %591 = vmatprep.subr.mxu0 %v336
        %592 = vmatpush1.msra.mxu0 %v335
        %593 = vmatprep.subr.mxu0 %v347
        %594 = vmatpush1.msra.mxu0 %v346
        %595 = vmatprep.subr.mxu0 %v358
        %596 = vmatpush1.msra.mxu0 %v357
        %597 = vmatprep.subr.mxu0 %v369
        %598 = vmatpush1.msra.mxu0 %v368
        %599 = vmatprep.subr.mxu0 %v380
        %600 = vmatpush1.msra.mxu0 %v379
        %601 = vmatprep.subr.mxu0 %v391
        %602 = vmatpush1.msra.mxu0 %v390
        %603 = vmatprep.subr.mxu0 %v402
        %604 = vmatpush1.msra.mxu0 %v401
        %605 = vmatprep.subr.mxu0 %v413
        %606 = vmatpush1.msra.mxu0 %v412
        %607 = vmatprep.subr.mxu0 %v424
        %608 = vmatpush1.msra.mxu0 %v423
        %609 = vmatprep.subr.mxu0 %v435
        %610 = vmatpush1.msra.mxu0 %v434
        %611 = vmatprep.subr.mxu0 %v446
        %612 = vmatpush1.msra.mxu0 %v445
        %613 = vmatprep.subr.mxu0 %v457
        %614 = vmatpush1.msra.mxu0 %v456
        %615 = vmatprep.subr.mxu0 %v468
        %616 = vmatpush1.msra.mxu0 %v467
        %617 = vmatprep.subr.mxu0 %v479
        %618 = vmatpush1.msra.mxu0 %v478
        %619 = vmatprep.subr.mxu0 %v490
        %620 = vmatpush1.msra.mxu0 %v489
        %621 = vmatprep.subr.mxu0 %v501
        %622 = vmatpush1.msra.mxu0 %v500
        %623 = vmatprep.subr.mxu0 %v512
        %624 = vmatpush1.msra.mxu0 %v511
        %625 = vmatprep.subr.mxu0 %v523
        %626 = vmatpush1.msra.mxu0 %v522
        %627 = vmatprep.subr.mxu0 %v534
        %628 = vmatpush1.msra.mxu0 %v533
        %629 = vmatprep.subr.mxu0 %v545
        %630 = vmatpush1.msra.mxu0 %v544
        %631 = vmatprep.subr.mxu0 %v556
        %632 = vmatpush1.msra.mxu0 %v555
        %633 = vmatprep.mubr.f32.mxu0 %v567
        %634 = vmatmul.mubr.f32.gmra.mrb[0].mxu0 %v213
        %v635 = vpop.f32.mrb[0].mxu0
        %v636 = vadd.f32 0.0, %v635
        %v637 = vpop.f32.mrb[0].mxu0
        %v638 = vadd.f32 0.0, %v637
        %639 = vdwg.mxu0
        %640 = vmatprep.subr.mxu0 %v217
        %641 = vmatpush1.msra.mxu0 %v216
        %642 = vmatprep.subr.mxu0 %v228
        %643 = vmatpush1.msra.mxu0 %v227
        %644 = vmatprep.subr.mxu0 %v239
        %645 = vmatpush1.msra.mxu0 %v238
        %646 = vmatprep.subr.mxu0 %v250
        %647 = vmatpush1.msra.mxu0 %v249
        %648 = vmatprep.subr.mxu0 %v261
        %649 = vmatpush1.msra.mxu0 %v260
        %650 = vmatprep.subr.mxu0 %v272
        %651 = vmatpush1.msra.mxu0 %v271
        %652 = vmatprep.subr.mxu0 %v283
        %653 = vmatpush1.msra.mxu0 %v282
        %654 = vmatprep.subr.mxu0 %v294
        %655 = vmatpush1.msra.mxu0 %v293
        %656 = vmatprep.subr.mxu0 %v305
        %657 = vmatpush1.msra.mxu0 %v304
        %658 = vmatprep.subr.mxu0 %v316
        %659 = vmatpush1.msra.mxu0 %v315
        %660 = vmatprep.subr.mxu0 %v327
        %661 = vmatpush1.msra.mxu0 %v326
        %662 = vmatprep.subr.mxu0 %v338
        %663 = vmatpush1.msra.mxu0 %v337
        %664 = vmatprep.subr.mxu0 %v349
        %665 = vmatpush1.msra.mxu0 %v348
        %666 = vmatprep.subr.mxu0 %v360
        %667 = vmatpush1.msra.mxu0 %v359
        %668 = vmatprep.subr.mxu0 %v371
        %669 = vmatpush1.msra.mxu0 %v370
        %670 = vmatprep.subr.mxu0 %v382
        %671 = vmatpush1.msra.mxu0 %v381
        %672 = vmatprep.subr.mxu0 %v393
        %673 = vmatpush1.msra.mxu0 %v392
        %674 = vmatprep.subr.mxu0 %v404
        %675 = vmatpush1.msra.mxu0 %v403
        %676 = vmatprep.subr.mxu0 %v415
        %677 = vmatpush1.msra.mxu0 %v414
        %678 = vmatprep.subr.mxu0 %v426
        %679 = vmatpush1.msra.mxu0 %v425
        %680 = vmatprep.subr.mxu0 %v437
        %681 = vmatpush1.msra.mxu0 %v436
        %682 = vmatprep.subr.mxu0 %v448
        %683 = vmatpush1.msra.mxu0 %v447
        %684 = vmatprep.subr.mxu0 %v459
        %685 = vmatpush1.msra.mxu0 %v458
        %686 = vmatprep.subr.mxu0 %v470
        %687 = vmatpush1.msra.mxu0 %v469
        %688 = vmatprep.subr.mxu0 %v481
        %689 = vmatpush1.msra.mxu0 %v480
        %690 = vmatprep.subr.mxu0 %v492
        %691 = vmatpush1.msra.mxu0 %v491
        %692 = vmatprep.subr.mxu0 %v503
        %693 = vmatpush1.msra.mxu0 %v502
        %694 = vmatprep.subr.mxu0 %v514
        %695 = vmatpush1.msra.mxu0 %v513
        %696 = vmatprep.subr.mxu0 %v525
        %697 = vmatpush1.msra.mxu0 %v524
        %698 = vmatprep.subr.mxu0 %v536
        %699 = vmatpush1.msra.mxu0 %v535
        %700 = vmatprep.subr.mxu0 %v547
        %701 = vmatpush1.msra.mxu0 %v546
        %702 = vmatprep.subr.mxu0 %v558
        %703 = vmatpush1.msra.mxu0 %v557
        %704 = vmatprep.mubr.f32.mxu0 %v567
        %705 = vmatmul.mubr.f32.gmra.mrb[0].mxu0 %v213
        %v706 = vpop.f32.mrb[0].mxu0
        %v707 = vadd.f32 0.0, %v706
        %v708 = vpop.f32.mrb[0].mxu0
        %v709 = vadd.f32 0.0, %v708
        %710 = vdwg.mxu0
        %711 = vmatprep.subr.mxu0 %v219
        %712 = vmatpush1.msra.mxu0 %v218
        %713 = vmatprep.subr.mxu0 %v230
        %714 = vmatpush1.msra.mxu0 %v229
        %715 = vmatprep.subr.mxu0 %v241
        %716 = vmatpush1.msra.mxu0 %v240
        %717 = vmatprep.subr.mxu0 %v252
        %718 = vmatpush1.msra.mxu0 %v251
        %719 = vmatprep.subr.mxu0 %v263
        %720 = vmatpush1.msra.mxu0 %v262
        %721 = vmatprep.subr.mxu0 %v274
        %722 = vmatpush1.msra.mxu0 %v273
        %723 = vmatprep.subr.mxu0 %v285
        %724 = vmatpush1.msra.mxu0 %v284
        %725 = vmatprep.subr.mxu0 %v296
        %726 = vmatpush1.msra.mxu0 %v295
        %727 = vmatprep.subr.mxu0 %v307
        %728 = vmatpush1.msra.mxu0 %v306
        %729 = vmatprep.subr.mxu0 %v318
        %730 = vmatpush1.msra.mxu0 %v317
        %731 = vmatprep.subr.mxu0 %v329
        %732 = vmatpush1.msra.mxu0 %v328
        %733 = vmatprep.subr.mxu0 %v340
        %734 = vmatpush1.msra.mxu0 %v339
        %735 = vmatprep.subr.mxu0 %v351
        %736 = vmatpush1.msra.mxu0 %v350
        %737 = vmatprep.subr.mxu0 %v362
        %738 = vmatpush1.msra.mxu0 %v361
        %739 = vmatprep.subr.mxu0 %v373
        %740 = vmatpush1.msra.mxu0 %v372
        %741 = vmatprep.subr.mxu0 %v384
        %742 = vmatpush1.msra.mxu0 %v383
        %743 = vmatprep.subr.mxu0 %v395
        %744 = vmatpush1.msra.mxu0 %v394
        %745 = vmatprep.subr.mxu0 %v406
        %746 = vmatpush1.msra.mxu0 %v405
        %747 = vmatprep.subr.mxu0 %v417
        %748 = vmatpush1.msra.mxu0 %v416
        %749 = vmatprep.subr.mxu0 %v428
        %750 = vmatpush1.msra.mxu0 %v427
        %751 = vmatprep.subr.mxu0 %v439
        %752 = vmatpush1.msra.mxu0 %v438
        %753 = vmatprep.subr.mxu0 %v450
        %754 = vmatpush1.msra.mxu0 %v449
        %755 = vmatprep.subr.mxu0 %v461
        %756 = vmatpush1.msra.mxu0 %v460
        %757 = vmatprep.subr.mxu0 %v472
        %758 = vmatpush1.msra.mxu0 %v471
        %759 = vmatprep.subr.mxu0 %v483
        %760 = vmatpush1.msra.mxu0 %v482
        %761 = vmatprep.subr.mxu0 %v494
        %762 = vmatpush1.msra.mxu0 %v493
        %763 = vmatprep.subr.mxu0 %v505
        %764 = vmatpush1.msra.mxu0 %v504
        %765 = vmatprep.subr.mxu0 %v516
        %766 = vmatpush1.msra.mxu0 %v515
        %767 = vmatprep.subr.mxu0 %v527
        %768 = vmatpush1.msra.mxu0 %v526
        %769 = vmatprep.subr.mxu0 %v538
        %770 = vmatpush1.msra.mxu0 %v537
        %771 = vmatprep.subr.mxu0 %v549
        %772 = vmatpush1.msra.mxu0 %v548
        %773 = vmatprep.subr.mxu0 %v560
        %774 = vmatpush1.msra.mxu0 %v559
        %775 = vmatprep.mubr.f32.mxu0 %v567
        %776 = vmatmul.mubr.f32.gmra.mrb[0].mxu0 %v213
        %v777 = vpop.f32.mrb[0].mxu0
        %v778 = vadd.f32 0.0, %v777
        %v779 = vpop.f32.mrb[0].mxu0
        %v780 = vadd.f32 0.0, %v779
        %781 = vdwg.mxu0
        %782 = vmatprep.subr.mxu0 %v221
        %783 = vmatpush1.msra.mxu0 %v220
        %784 = vmatprep.subr.mxu0 %v232
        %785 = vmatpush1.msra.mxu0 %v231
        %786 = vmatprep.subr.mxu0 %v243
        %787 = vmatpush1.msra.mxu0 %v242
        %788 = vmatprep.subr.mxu0 %v254
        %789 = vmatpush1.msra.mxu0 %v253
        %790 = vmatprep.subr.mxu0 %v265
        %791 = vmatpush1.msra.mxu0 %v264
        %792 = vmatprep.subr.mxu0 %v276
        %793 = vmatpush1.msra.mxu0 %v275
        %794 = vmatprep.subr.mxu0 %v287
        %795 = vmatpush1.msra.mxu0 %v286
        %796 = vmatprep.subr.mxu0 %v298
        %797 = vmatpush1.msra.mxu0 %v297
        %798 = vmatprep.subr.mxu0 %v309
        %799 = vmatpush1.msra.mxu0 %v308
        %800 = vmatprep.subr.mxu0 %v320
        %801 = vmatpush1.msra.mxu0 %v319
        %802 = vmatprep.subr.mxu0 %v331
        %803 = vmatpush1.msra.mxu0 %v330
        %804 = vmatprep.subr.mxu0 %v342
        %805 = vmatpush1.msra.mxu0 %v341
        %806 = vmatprep.subr.mxu0 %v353
        %807 = vmatpush1.msra.mxu0 %v352
        %808 = vmatprep.subr.mxu0 %v364
        %809 = vmatpush1.msra.mxu0 %v363
        %810 = vmatprep.subr.mxu0 %v375
        %811 = vmatpush1.msra.mxu0 %v374
        %812 = vmatprep.subr.mxu0 %v386
        %813 = vmatpush1.msra.mxu0 %v385
        %814 = vmatprep.subr.mxu0 %v397
        %815 = vmatpush1.msra.mxu0 %v396
        %816 = vmatprep.subr.mxu0 %v408
        %817 = vmatpush1.msra.mxu0 %v407
        %818 = vmatprep.subr.mxu0 %v419
        %819 = vmatpush1.msra.mxu0 %v418
        %820 = vmatprep.subr.mxu0 %v430
        %821 = vmatpush1.msra.mxu0 %v429
        %822 = vmatprep.subr.mxu0 %v441
        %823 = vmatpush1.msra.mxu0 %v440
        %824 = vmatprep.subr.mxu0 %v452
        %825 = vmatpush1.msra.mxu0 %v451
        %826 = vmatprep.subr.mxu0 %v463
        %827 = vmatpush1.msra.mxu0 %v462
        %828 = vmatprep.subr.mxu0 %v474
        %829 = vmatpush1.msra.mxu0 %v473
        %830 = vmatprep.subr.mxu0 %v485
        %831 = vmatpush1.msra.mxu0 %v484
        %832 = vmatprep.subr.mxu0 %v496
        %833 = vmatpush1.msra.mxu0 %v495
        %834 = vmatprep.subr.mxu0 %v507
        %835 = vmatpush1.msra.mxu0 %v506
        %836 = vmatprep.subr.mxu0 %v518
        %837 = vmatpush1.msra.mxu0 %v517
        %838 = vmatprep.subr.mxu0 %v529
        %839 = vmatpush1.msra.mxu0 %v528
        %840 = vmatprep.subr.mxu0 %v540
        %841 = vmatpush1.msra.mxu0 %v539
        %842 = vmatprep.subr.mxu0 %v551
        %843 = vmatpush1.msra.mxu0 %v550
        %844 = vmatprep.subr.mxu0 %v562
        %845 = vmatpush1.msra.mxu0 %v561
        %846 = vmatprep.mubr.f32.mxu0 %v567
        %847 = vmatmul.mubr.f32.gmra.mrb[0].mxu0 %v213
        %v848 = vpop.f32.mrb[0].mxu0
        %v849 = vadd.f32 0.0, %v848
        %v850 = vpop.f32.mrb[0].mxu0
        %v851 = vadd.f32 0.0, %v850
        %852 = vdwg.mxu0
        %853 = vmatprep.subr.mxu0 %v223
        %854 = vmatpush1.msra.mxu0 %v222
        %855 = vmatprep.subr.mxu0 %v234
        %856 = vmatpush1.msra.mxu0 %v233
        %857 = vmatprep.subr.mxu0 %v245
        %858 = vmatpush1.msra.mxu0 %v244
        %859 = vmatprep.subr.mxu0 %v256
        %860 = vmatpush1.msra.mxu0 %v255
        %861 = vmatprep.subr.mxu0 %v267
        %862 = vmatpush1.msra.mxu0 %v266
        %863 = vmatprep.subr.mxu0 %v278
        %864 = vmatpush1.msra.mxu0 %v277
        %865 = vmatprep.subr.mxu0 %v289
        %866 = vmatpush1.msra.mxu0 %v288
        %867 = vmatprep.subr.mxu0 %v300
        %868 = vmatpush1.msra.mxu0 %v299
        %869 = vmatprep.subr.mxu0 %v311
        %870 = vmatpush1.msra.mxu0 %v310
        %871 = vmatprep.subr.mxu0 %v322
        %872 = vmatpush1.msra.mxu0 %v321
        %873 = vmatprep.subr.mxu0 %v333
        %874 = vmatpush1.msra.mxu0 %v332
        %875 = vmatprep.subr.mxu0 %v344
        %876 = vmatpush1.msra.mxu0 %v343
        %877 = vmatprep.subr.mxu0 %v355
        %878 = vmatpush1.msra.mxu0 %v354
        %879 = vmatprep.subr.mxu0 %v366
        %880 = vmatpush1.msra.mxu0 %v365
        %881 = vmatprep.subr.mxu0 %v377
        %882 = vmatpush1.msra.mxu0 %v376
        %883 = vmatprep.subr.mxu0 %v388
        %884 = vmatpush1.msra.mxu0 %v387
        %885 = vmatprep.subr.mxu0 %v399
        %886 = vmatpush1.msra.mxu0 %v398
        %887 = vmatprep.subr.mxu0 %v410
        %888 = vmatpush1.msra.mxu0 %v409
        %889 = vmatprep.subr.mxu0 %v421
        %890 = vmatpush1.msra.mxu0 %v420
        %891 = vmatprep.subr.mxu0 %v432
        %892 = vmatpush1.msra.mxu0 %v431
        %893 = vmatprep.subr.mxu0 %v443
        %894 = vmatpush1.msra.mxu0 %v442
        %895 = vmatprep.subr.mxu0 %v454
        %896 = vmatpush1.msra.mxu0 %v453
        %897 = vmatprep.subr.mxu0 %v465
        %898 = vmatpush1.msra.mxu0 %v464
        %899 = vmatprep.subr.mxu0 %v476
        %900 = vmatpush1.msra.mxu0 %v475
        %901 = vmatprep.subr.mxu0 %v487
        %902 = vmatpush1.msra.mxu0 %v486
        %903 = vmatprep.subr.mxu0 %v498
        %904 = vmatpush1.msra.mxu0 %v497
        %905 = vmatprep.subr.mxu0 %v509
        %906 = vmatpush1.msra.mxu0 %v508
        %907 = vmatprep.subr.mxu0 %v520
        %908 = vmatpush1.msra.mxu0 %v519
        %909 = vmatprep.subr.mxu0 %v531
        %910 = vmatpush1.msra.mxu0 %v530
        %911 = vmatprep.subr.mxu0 %v542
        %912 = vmatpush1.msra.mxu0 %v541
        %913 = vmatprep.subr.mxu0 %v553
        %914 = vmatpush1.msra.mxu0 %v552
        %915 = vmatprep.subr.mxu0 %v564
        %916 = vmatpush1.msra.mxu0 %v563
        %917 = vmatprep.mubr.f32.mxu0 %v567
        %918 = vmatmul.mubr.f32.gmra.mrb[0].mxu0 %v213
        %v919 = vpop.f32.mrb[0].mxu0
        %v920 = vadd.f32 0.0, %v919
        %v921 = vpop.f32.mrb[0].mxu0
        %v922 = vadd.f32 0.0, %v921
        %923 = vdwg.mxu0
        %924 = vmatprep.subr.mxu0 0.0
        %925 = vmatpush1.msra.mxu0 %v224
        %926 = vmatprep.subr.mxu0 0.0
        %927 = vmatpush1.msra.mxu0 %v235
        %928 = vmatprep.subr.mxu0 0.0
        %929 = vmatpush1.msra.mxu0 %v246
        %930 = vmatprep.subr.mxu0 0.0
        %931 = vmatpush1.msra.mxu0 %v257
        %932 = vmatprep.subr.mxu0 0.0
        %933 = vmatpush1.msra.mxu0 %v268
        %934 = vmatprep.subr.mxu0 0.0
        %935 = vmatpush1.msra.mxu0 %v279
        %936 = vmatprep.subr.mxu0 0.0
        %937 = vmatpush1.msra.mxu0 %v290
        %938 = vmatprep.subr.mxu0 0.0
        %939 = vmatpush1.msra.mxu0 %v301
        %940 = vmatprep.subr.mxu0 0.0
        %941 = vmatpush1.msra.mxu0 %v312
        %942 = vmatprep.subr.mxu0 0.0
        %943 = vmatpush1.msra.mxu0 %v323
        %944 = vmatprep.subr.mxu0 0.0
        %945 = vmatpush1.msra.mxu0 %v334
        %946 = vmatprep.subr.mxu0 0.0
        %947 = vmatpush1.msra.mxu0 %v345
        %948 = vmatprep.subr.mxu0 0.0
        %949 = vmatpush1.msra.mxu0 %v356
        %950 = vmatprep.subr.mxu0 0.0
        %951 = vmatpush1.msra.mxu0 %v367
        %952 = vmatprep.subr.mxu0 0.0
        %953 = vmatpush1.msra.mxu0 %v378
        %954 = vmatprep.subr.mxu0 0.0
        %955 = vmatpush1.msra.mxu0 %v389
        %956 = vmatprep.subr.mxu0 0.0
        %957 = vmatpush1.msra.mxu0 %v400
        %958 = vmatprep.subr.mxu0 0.0
        %959 = vmatpush1.msra.mxu0 %v411
        %960 = vmatprep.subr.mxu0 0.0
        %961 = vmatpush1.msra.mxu0 %v422
        %962 = vmatprep.subr.mxu0 0.0
        %963 = vmatpush1.msra.mxu0 %v433
        %964 = vmatprep.subr.mxu0 0.0
        %965 = vmatpush1.msra.mxu0 %v444
        %966 = vmatprep.subr.mxu0 0.0
        %967 = vmatpush1.msra.mxu0 %v455
        %968 = vmatprep.subr.mxu0 0.0
        %969 = vmatpush1.msra.mxu0 %v466
        %970 = vmatprep.subr.mxu0 0.0
        %971 = vmatpush1.msra.mxu0 %v477
        %972 = vmatprep.subr.mxu0 0.0
        %973 = vmatpush1.msra.mxu0 %v488
        %974 = vmatprep.subr.mxu0 0.0
        %975 = vmatpush1.msra.mxu0 %v499
        %976 = vmatprep.subr.mxu0 0.0
        %977 = vmatpush1.msra.mxu0 %v510
        %978 = vmatprep.subr.mxu0 0.0
        %979 = vmatpush1.msra.mxu0 %v521
        %980 = vmatprep.subr.mxu0 0.0
        %981 = vmatpush1.msra.mxu0 %v532
        %982 = vmatprep.subr.mxu0 0.0
        %983 = vmatpush1.msra.mxu0 %v543
        %984 = vmatprep.subr.mxu0 0.0
        %985 = vmatpush1.msra.mxu0 %v554
        %986 = vmatprep.subr.mxu0 0.0
        %987 = vmatpush1.msra.mxu0 %v565
        %988 = vmatprep.mubr.f32.mxu0 %v567
        %989 = vmatmul.mubr.f32.gmra.mrb[0].mxu0 %v213
        %v990 = vpop.f32.mrb[0].mxu0
        %v991 = vadd.f32 0.0, %v990
        %v992 = vpop.f32.mrb[0].mxu0
        %993 = vdwg.mxu0
        %v1004 = vcombine.low %v636, %v638
        %v1005 = vcombine.low %v707, %v709
        %v1006 = vcombine.low %v778, %v780
        %v1007 = vcombine.low %v849, %v851
        %v1008 = vcombine.low %v920, %v922
        %1014 = vst [vmem:[#allocation2] sm:$0xff] %v1004
        %1015 = vst [vmem:[#allocation2 + $0x8] sm:$0xff] %v1005
        %1016 = vst [vmem:[#allocation2 + $0x10] sm:$0xff] %v1006
        %1017 = vst [vmem:[#allocation2 + $0x18] sm:$0xff] %v1007
        %1018 = vst [vmem:[#allocation2 + $0x20] sm:$0xff] %v1008
        %vm1019 = vcmask 142336
        %1020 = vst.msk [vmem:[#allocation2 + $0x28] sm:$0xf] %vm1019, %v991
        %v1021 = vld [vmem:[#allocation2] sm:$0xff]
        %v1022 = vld [vmem:[#allocation2 + $0x8] sm:$0xff]
        %v1023 = vld [vmem:[#allocation2 + $0x10] sm:$0xff]
        %v1024 = vld [vmem:[#allocation2 + $0x18] sm:$0xff]
        %v1025 = vld [vmem:[#allocation2 + $0x20] sm:$0xff]
        %v1026 = vld [vmem:[%s2] sm:$0xff]
        %s1027 = scalar_lea.vmem %s2, 8
        %v1028 = vld [vmem:[%s1027] sm:$0xff]
        %v1034 = vcombine.high %v1021, %v1021
        %v1035 = vcombine.high %v1022, %v1022
        %v1036 = vcombine.high %v1023, %v1023
        %v1037 = vcombine.high %v1024, %v1024
        %v1038 = vcombine.high %v1025, %v1025
        %1039 = vrot.lane.b32.xlu0 %v1021, 127
        %v1040 = vpop.permute.xlu0 %1039
        %1041 = vrot.lane.b32.xlu0 %v1034, 127
        %v1042 = vpop.permute.xlu0 %1041
        %1043 = vrot.lane.b32.xlu0 %v1022, 127
        %v1044 = vpop.permute.xlu0 %1043
        %1045 = vrot.lane.b32.xlu0 %v1035, 127
        %v1046 = vpop.permute.xlu0 %1045
        %1047 = vrot.lane.b32.xlu0 %v1023, 127
        %v1048 = vpop.permute.xlu0 %1047
        %1049 = vrot.lane.b32.xlu0 %v1036, 127
        %v1050 = vpop.permute.xlu0 %1049
        %1051 = vrot.lane.b32.xlu0 %v1024, 127
        %v1052 = vpop.permute.xlu0 %1051
        %1053 = vrot.lane.b32.xlu0 %v1037, 127
        %v1054 = vpop.permute.xlu0 %1053
        %1055 = vrot.lane.b32.xlu0 %v1025, 127
        %v1056 = vpop.permute.xlu0 %1055
        %1057 = vrot.lane.b32.xlu0 %v1038, 127
        %v1058 = vpop.permute.xlu0 %1057
        %vm1059 = vcmask 1039360
        %v1060 = vsel %vm1059, %v1040, %v1042
        %v1061 = vsel %vm1059, %v1042, %v1044
        %v1062 = vsel %vm1059, %v1044, %v1046
        %v1063 = vsel %vm1059, %v1046, %v1048
        %v1064 = vsel %vm1059, %v1048, %v1050
        %v1065 = vsel %vm1059, %v1050, %v1052
        %v1066 = vsel %vm1059, %v1052, %v1054
        %v1067 = vsel %vm1059, %v1054, %v1056
        %v1068 = vsel %vm1059, %v1056, %v1058
        %vm1069 = vcmask 31744
        %v1071 = vsel %vm1069, %v1028, 0
        %vm1073 = vcmask 1043456
        %v1074 = vsel %vm1073, %v1060, 0
        %v1076 = vsel %vm1073, %v1061, 0
        %v1078 = vsel %vm1073, %v1062, 0
        %v1080 = vsel %vm1073, %v1063, 0
        %v1082 = vsel %vm1073, %v1064, 0
        %v1084 = vsel %vm1073, %v1065, 0
        %v1086 = vsel %vm1073, %v1066, 0
        %v1088 = vsel %vm1073, %v1067, 0
        %v1090 = vsel %vm1073, %v1068, 0
        %v1092 = vsel %vm1073, %v1058, 0
        %1094 = vmatprep.subr.mxu0 %v1076
        %1095 = vmatpush1.msra.mxu0 %v1074
        %1096 = vmatprep.subr.mxu0 0.0
        %1097 = vmatpush1.msra.mxu0 0.0
        %1098 = vmatprep.subr.mxu0 0.0
        %1099 = vmatpush1.msra.mxu0 0.0
        %1100 = vmatprep.subr.mxu0 0.0
        %1101 = vmatpush1.msra.mxu0 0.0
        %1102 = vmatprep.subr.mxu0 0.0
        %1103 = vmatpush1.msra.mxu0 0.0
        %1104 = vmatprep.subr.mxu0 0.0
        %1105 = vmatpush1.msra.mxu0 0.0
        %1106 = vmatprep.subr.mxu0 0.0
        %1107 = vmatpush1.msra.mxu0 0.0
        %1108 = vmatprep.subr.mxu0 0.0
        %1109 = vmatpush1.msra.mxu0 0.0
        %1110 = vmatprep.subr.mxu0 0.0
        %1111 = vmatpush1.msra.mxu0 0.0
        %1112 = vmatprep.subr.mxu0 0.0
        %1113 = vmatpush1.msra.mxu0 0.0
        %1114 = vmatprep.subr.mxu0 0.0
        %1115 = vmatpush1.msra.mxu0 0.0
        %1116 = vmatprep.subr.mxu0 0.0
        %1117 = vmatpush1.msra.mxu0 0.0
        %1118 = vmatprep.subr.mxu0 0.0
        %1119 = vmatpush1.msra.mxu0 0.0
        %1120 = vmatprep.subr.mxu0 0.0
        %1121 = vmatpush1.msra.mxu0 0.0
        %1122 = vmatprep.subr.mxu0 0.0
        %1123 = vmatpush1.msra.mxu0 0.0
        %1124 = vmatprep.subr.mxu0 0.0
        %1125 = vmatpush1.msra.mxu0 0.0
        %1126 = vmatprep.subr.mxu0 0.0
        %1127 = vmatpush1.msra.mxu0 0.0
        %1128 = vmatprep.subr.mxu0 0.0
        %1129 = vmatpush1.msra.mxu0 0.0
        %1130 = vmatprep.subr.mxu0 0.0
        %1131 = vmatpush1.msra.mxu0 0.0
        %1132 = vmatprep.subr.mxu0 0.0
        %1133 = vmatpush1.msra.mxu0 0.0
        %1134 = vmatprep.subr.mxu0 0.0
        %1135 = vmatpush1.msra.mxu0 0.0
        %1136 = vmatprep.subr.mxu0 0.0
        %1137 = vmatpush1.msra.mxu0 0.0
        %1138 = vmatprep.subr.mxu0 0.0
        %1139 = vmatpush1.msra.mxu0 0.0
        %1140 = vmatprep.subr.mxu0 0.0
        %1141 = vmatpush1.msra.mxu0 0.0
        %1142 = vmatprep.subr.mxu0 0.0
        %1143 = vmatpush1.msra.mxu0 0.0
        %1144 = vmatprep.subr.mxu0 0.0
        %1145 = vmatpush1.msra.mxu0 0.0
        %1146 = vmatprep.subr.mxu0 0.0
        %1147 = vmatpush1.msra.mxu0 0.0
        %1148 = vmatprep.subr.mxu0 0.0
        %1149 = vmatpush1.msra.mxu0 0.0
        %1150 = vmatprep.subr.mxu0 0.0
        %1151 = vmatpush1.msra.mxu0 0.0
        %1152 = vmatprep.subr.mxu0 0.0
        %1153 = vmatpush1.msra.mxu0 0.0
        %1154 = vmatprep.subr.mxu0 0.0
        %1155 = vmatpush1.msra.mxu0 0.0
        %1156 = vmatprep.subr.mxu0 0.0
        %1157 = vmatpush1.msra.mxu0 0.0
        %1158 = vmatprep.mubr.f32.mxu0 0.0
        %1159 = vmatmul.mubr.f32.gmra.mrb[0].mxu0 %v1071
        %v1160 = vpop.f32.mrb[0].mxu0
        %v1161 = vadd.f32 0.0, %v1160
        %v1162 = vpop.f32.mrb[0].mxu0
        %v1163 = vadd.f32 0.0, %v1162
        %1164 = vdwg.mxu0
        %1165 = vmatprep.subr.mxu0 %v1080
        %1166 = vmatpush1.msra.mxu0 %v1078
        %1167 = vmatprep.subr.mxu0 0.0
        %1168 = vmatpush1.msra.mxu0 0.0
        %1169 = vmatprep.subr.mxu0 0.0
        %1170 = vmatpush1.msra.mxu0 0.0
        %1171 = vmatprep.subr.mxu0 0.0
        %1172 = vmatpush1.msra.mxu0 0.0
        %1173 = vmatprep.subr.mxu0 0.0
        %1174 = vmatpush1.msra.mxu0 0.0
        %1175 = vmatprep.subr.mxu0 0.0
        %1176 = vmatpush1.msra.mxu0 0.0
        %1177 = vmatprep.subr.mxu0 0.0
        %1178 = vmatpush1.msra.mxu0 0.0
        %1179 = vmatprep.subr.mxu0 0.0
        %1180 = vmatpush1.msra.mxu0 0.0
        %1181 = vmatprep.subr.mxu0 0.0
        %1182 = vmatpush1.msra.mxu0 0.0
        %1183 = vmatprep.subr.mxu0 0.0
        %1184 = vmatpush1.msra.mxu0 0.0
        %1185 = vmatprep.subr.mxu0 0.0
        %1186 = vmatpush1.msra.mxu0 0.0
        %1187 = vmatprep.subr.mxu0 0.0
        %1188 = vmatpush1.msra.mxu0 0.0
        %1189 = vmatprep.subr.mxu0 0.0
        %1190 = vmatpush1.msra.mxu0 0.0
        %1191 = vmatprep.subr.mxu0 0.0
        %1192 = vmatpush1.msra.mxu0 0.0
        %1193 = vmatprep.subr.mxu0 0.0
        %1194 = vmatpush1.msra.mxu0 0.0
        %1195 = vmatprep.subr.mxu0 0.0
        %1196 = vmatpush1.msra.mxu0 0.0
        %1197 = vmatprep.subr.mxu0 0.0
        %1198 = vmatpush1.msra.mxu0 0.0
        %1199 = vmatprep.subr.mxu0 0.0
        %1200 = vmatpush1.msra.mxu0 0.0
        %1201 = vmatprep.subr.mxu0 0.0
        %1202 = vmatpush1.msra.mxu0 0.0
        %1203 = vmatprep.subr.mxu0 0.0
        %1204 = vmatpush1.msra.mxu0 0.0
        %1205 = vmatprep.subr.mxu0 0.0
        %1206 = vmatpush1.msra.mxu0 0.0
        %1207 = vmatprep.subr.mxu0 0.0
        %1208 = vmatpush1.msra.mxu0 0.0
        %1209 = vmatprep.subr.mxu0 0.0
        %1210 = vmatpush1.msra.mxu0 0.0
        %1211 = vmatprep.subr.mxu0 0.0
        %1212 = vmatpush1.msra.mxu0 0.0
        %1213 = vmatprep.subr.mxu0 0.0
        %1214 = vmatpush1.msra.mxu0 0.0
        %1215 = vmatprep.subr.mxu0 0.0
        %1216 = vmatpush1.msra.mxu0 0.0
        %1217 = vmatprep.subr.mxu0 0.0
        %1218 = vmatpush1.msra.mxu0 0.0
        %1219 = vmatprep.subr.mxu0 0.0
        %1220 = vmatpush1.msra.mxu0 0.0
        %1221 = vmatprep.subr.mxu0 0.0
        %1222 = vmatpush1.msra.mxu0 0.0
        %1223 = vmatprep.subr.mxu0 0.0
        %1224 = vmatpush1.msra.mxu0 0.0
        %1225 = vmatprep.subr.mxu0 0.0
        %1226 = vmatpush1.msra.mxu0 0.0
        %1227 = vmatprep.subr.mxu0 0.0
        %1228 = vmatpush1.msra.mxu0 0.0
        %1229 = vmatprep.mubr.f32.mxu0 0.0
        %1230 = vmatmul.mubr.f32.gmra.mrb[0].mxu0 %v1071
        %v1231 = vpop.f32.mrb[0].mxu0
        %v1232 = vadd.f32 0.0, %v1231
        %v1233 = vpop.f32.mrb[0].mxu0
        %v1234 = vadd.f32 0.0, %v1233
        %1235 = vdwg.mxu0
        %1236 = vmatprep.subr.mxu0 %v1084
        %1237 = vmatpush1.msra.mxu0 %v1082
        %1238 = vmatprep.subr.mxu0 0.0
        %1239 = vmatpush1.msra.mxu0 0.0
        %1240 = vmatprep.subr.mxu0 0.0
        %1241 = vmatpush1.msra.mxu0 0.0
        %1242 = vmatprep.subr.mxu0 0.0
        %1243 = vmatpush1.msra.mxu0 0.0
        %1244 = vmatprep.subr.mxu0 0.0
        %1245 = vmatpush1.msra.mxu0 0.0
        %1246 = vmatprep.subr.mxu0 0.0
        %1247 = vmatpush1.msra.mxu0 0.0
        %1248 = vmatprep.subr.mxu0 0.0
        %1249 = vmatpush1.msra.mxu0 0.0
        %1250 = vmatprep.subr.mxu0 0.0
        %1251 = vmatpush1.msra.mxu0 0.0
        %1252 = vmatprep.subr.mxu0 0.0
        %1253 = vmatpush1.msra.mxu0 0.0
        %1254 = vmatprep.subr.mxu0 0.0
        %1255 = vmatpush1.msra.mxu0 0.0
        %1256 = vmatprep.subr.mxu0 0.0
        %1257 = vmatpush1.msra.mxu0 0.0
        %1258 = vmatprep.subr.mxu0 0.0
        %1259 = vmatpush1.msra.mxu0 0.0
        %1260 = vmatprep.subr.mxu0 0.0
        %1261 = vmatpush1.msra.mxu0 0.0
        %1262 = vmatprep.subr.mxu0 0.0
        %1263 = vmatpush1.msra.mxu0 0.0
        %1264 = vmatprep.subr.mxu0 0.0
        %1265 = vmatpush1.msra.mxu0 0.0
        %1266 = vmatprep.subr.mxu0 0.0
        %1267 = vmatpush1.msra.mxu0 0.0
        %1268 = vmatprep.subr.mxu0 0.0
        %1269 = vmatpush1.msra.mxu0 0.0
        %1270 = vmatprep.subr.mxu0 0.0
        %1271 = vmatpush1.msra.mxu0 0.0
        %1272 = vmatprep.subr.mxu0 0.0
        %1273 = vmatpush1.msra.mxu0 0.0
        %1274 = vmatprep.subr.mxu0 0.0
        %1275 = vmatpush1.msra.mxu0 0.0
        %1276 = vmatprep.subr.mxu0 0.0
        %1277 = vmatpush1.msra.mxu0 0.0
        %1278 = vmatprep.subr.mxu0 0.0
        %1279 = vmatpush1.msra.mxu0 0.0
        %1280 = vmatprep.subr.mxu0 0.0
        %1281 = vmatpush1.msra.mxu0 0.0
        %1282 = vmatprep.subr.mxu0 0.0
        %1283 = vmatpush1.msra.mxu0 0.0
        %1284 = vmatprep.subr.mxu0 0.0
        %1285 = vmatpush1.msra.mxu0 0.0
        %1286 = vmatprep.subr.mxu0 0.0
        %1287 = vmatpush1.msra.mxu0 0.0
        %1288 = vmatprep.subr.mxu0 0.0
        %1289 = vmatpush1.msra.mxu0 0.0
        %1290 = vmatprep.subr.mxu0 0.0
        %1291 = vmatpush1.msra.mxu0 0.0
        %1292 = vmatprep.subr.mxu0 0.0
        %1293 = vmatpush1.msra.mxu0 0.0
        %1294 = vmatprep.subr.mxu0 0.0
        %1295 = vmatpush1.msra.mxu0 0.0
        %1296 = vmatprep.subr.mxu0 0.0
        %1297 = vmatpush1.msra.mxu0 0.0
        %1298 = vmatprep.subr.mxu0 0.0
        %1299 = vmatpush1.msra.mxu0 0.0
        %1300 = vmatprep.mubr.f32.mxu0 0.0
        %1301 = vmatmul.mubr.f32.gmra.mrb[0].mxu0 %v1071
        %v1302 = vpop.f32.mrb[0].mxu0
        %v1303 = vadd.f32 0.0, %v1302
        %v1304 = vpop.f32.mrb[0].mxu0
        %v1305 = vadd.f32 0.0, %v1304
        %1306 = vdwg.mxu0
        %1307 = vmatprep.subr.mxu0 %v1088
        %1308 = vmatpush1.msra.mxu0 %v1086
        %1309 = vmatprep.subr.mxu0 0.0
        %1310 = vmatpush1.msra.mxu0 0.0
        %1311 = vmatprep.subr.mxu0 0.0
        %1312 = vmatpush1.msra.mxu0 0.0
        %1313 = vmatprep.subr.mxu0 0.0
        %1314 = vmatpush1.msra.mxu0 0.0
        %1315 = vmatprep.subr.mxu0 0.0
        %1316 = vmatpush1.msra.mxu0 0.0
        %1317 = vmatprep.subr.mxu0 0.0
        %1318 = vmatpush1.msra.mxu0 0.0
        %1319 = vmatprep.subr.mxu0 0.0
        %1320 = vmatpush1.msra.mxu0 0.0
        %1321 = vmatprep.subr.mxu0 0.0
        %1322 = vmatpush1.msra.mxu0 0.0
        %1323 = vmatprep.subr.mxu0 0.0
        %1324 = vmatpush1.msra.mxu0 0.0
        %1325 = vmatprep.subr.mxu0 0.0
        %1326 = vmatpush1.msra.mxu0 0.0
        %1327 = vmatprep.subr.mxu0 0.0
        %1328 = vmatpush1.msra.mxu0 0.0
        %1329 = vmatprep.subr.mxu0 0.0
        %1330 = vmatpush1.msra.mxu0 0.0
        %1331 = vmatprep.subr.mxu0 0.0
        %1332 = vmatpush1.msra.mxu0 0.0
        %1333 = vmatprep.subr.mxu0 0.0
        %1334 = vmatpush1.msra.mxu0 0.0
        %1335 = vmatprep.subr.mxu0 0.0
        %1336 = vmatpush1.msra.mxu0 0.0
        %1337 = vmatprep.subr.mxu0 0.0
        %1338 = vmatpush1.msra.mxu0 0.0
        %1339 = vmatprep.subr.mxu0 0.0
        %1340 = vmatpush1.msra.mxu0 0.0
        %1341 = vmatprep.subr.mxu0 0.0
        %1342 = vmatpush1.msra.mxu0 0.0
        %1343 = vmatprep.subr.mxu0 0.0
        %1344 = vmatpush1.msra.mxu0 0.0
        %1345 = vmatprep.subr.mxu0 0.0
        %1346 = vmatpush1.msra.mxu0 0.0
        %1347 = vmatprep.subr.mxu0 0.0
        %1348 = vmatpush1.msra.mxu0 0.0
        %1349 = vmatprep.subr.mxu0 0.0
        %1350 = vmatpush1.msra.mxu0 0.0
        %1351 = vmatprep.subr.mxu0 0.0
        %1352 = vmatpush1.msra.mxu0 0.0
        %1353 = vmatprep.subr.mxu0 0.0
        %1354 = vmatpush1.msra.mxu0 0.0
        %1355 = vmatprep.subr.mxu0 0.0
        %1356 = vmatpush1.msra.mxu0 0.0
        %1357 = vmatprep.subr.mxu0 0.0
        %1358 = vmatpush1.msra.mxu0 0.0
        %1359 = vmatprep.subr.mxu0 0.0
        %1360 = vmatpush1.msra.mxu0 0.0
        %1361 = vmatprep.subr.mxu0 0.0
        %1362 = vmatpush1.msra.mxu0 0.0
        %1363 = vmatprep.subr.mxu0 0.0
        %1364 = vmatpush1.msra.mxu0 0.0
        %1365 = vmatprep.subr.mxu0 0.0
        %1366 = vmatpush1.msra.mxu0 0.0
        %1367 = vmatprep.subr.mxu0 0.0
        %1368 = vmatpush1.msra.mxu0 0.0
        %1369 = vmatprep.subr.mxu0 0.0
        %1370 = vmatpush1.msra.mxu0 0.0
        %1371 = vmatprep.mubr.f32.mxu0 0.0
        %1372 = vmatmul.mubr.f32.gmra.mrb[0].mxu0 %v1071
        %v1373 = vpop.f32.mrb[0].mxu0
        %v1374 = vadd.f32 0.0, %v1373
        %v1375 = vpop.f32.mrb[0].mxu0
        %v1376 = vadd.f32 0.0, %v1375
        %1377 = vdwg.mxu0
        %1378 = vmatprep.subr.mxu0 %v1092
        %1379 = vmatpush1.msra.mxu0 %v1090
        %1380 = vmatprep.subr.mxu0 0.0
        %1381 = vmatpush1.msra.mxu0 0.0
        %1382 = vmatprep.subr.mxu0 0.0
        %1383 = vmatpush1.msra.mxu0 0.0
        %1384 = vmatprep.subr.mxu0 0.0
        %1385 = vmatpush1.msra.mxu0 0.0
        %1386 = vmatprep.subr.mxu0 0.0
        %1387 = vmatpush1.msra.mxu0 0.0
        %1388 = vmatprep.subr.mxu0 0.0
        %1389 = vmatpush1.msra.mxu0 0.0
        %1390 = vmatprep.subr.mxu0 0.0
        %1391 = vmatpush1.msra.mxu0 0.0
        %1392 = vmatprep.subr.mxu0 0.0
        %1393 = vmatpush1.msra.mxu0 0.0
        %1394 = vmatprep.subr.mxu0 0.0
        %1395 = vmatpush1.msra.mxu0 0.0
        %1396 = vmatprep.subr.mxu0 0.0
        %1397 = vmatpush1.msra.mxu0 0.0
        %1398 = vmatprep.subr.mxu0 0.0
        %1399 = vmatpush1.msra.mxu0 0.0
        %1400 = vmatprep.subr.mxu0 0.0
        %1401 = vmatpush1.msra.mxu0 0.0
        %1402 = vmatprep.subr.mxu0 0.0
        %1403 = vmatpush1.msra.mxu0 0.0
        %1404 = vmatprep.subr.mxu0 0.0
        %1405 = vmatpush1.msra.mxu0 0.0
        %1406 = vmatprep.subr.mxu0 0.0
        %1407 = vmatpush1.msra.mxu0 0.0
        %1408 = vmatprep.subr.mxu0 0.0
        %1409 = vmatpush1.msra.mxu0 0.0
        %1410 = vmatprep.subr.mxu0 0.0
        %1411 = vmatpush1.msra.mxu0 0.0
        %1412 = vmatprep.subr.mxu0 0.0
        %1413 = vmatpush1.msra.mxu0 0.0
        %1414 = vmatprep.subr.mxu0 0.0
        %1415 = vmatpush1.msra.mxu0 0.0
        %1416 = vmatprep.subr.mxu0 0.0
        %1417 = vmatpush1.msra.mxu0 0.0
        %1418 = vmatprep.subr.mxu0 0.0
        %1419 = vmatpush1.msra.mxu0 0.0
        %1420 = vmatprep.subr.mxu0 0.0
        %1421 = vmatpush1.msra.mxu0 0.0
        %1422 = vmatprep.subr.mxu0 0.0
        %1423 = vmatpush1.msra.mxu0 0.0
        %1424 = vmatprep.subr.mxu0 0.0
        %1425 = vmatpush1.msra.mxu0 0.0
        %1426 = vmatprep.subr.mxu0 0.0
        %1427 = vmatpush1.msra.mxu0 0.0
        %1428 = vmatprep.subr.mxu0 0.0
        %1429 = vmatpush1.msra.mxu0 0.0
        %1430 = vmatprep.subr.mxu0 0.0
        %1431 = vmatpush1.msra.mxu0 0.0
        %1432 = vmatprep.subr.mxu0 0.0
        %1433 = vmatpush1.msra.mxu0 0.0
        %1434 = vmatprep.subr.mxu0 0.0
        %1435 = vmatpush1.msra.mxu0 0.0
        %1436 = vmatprep.subr.mxu0 0.0
        %1437 = vmatpush1.msra.mxu0 0.0
        %1438 = vmatprep.subr.mxu0 0.0
        %1439 = vmatpush1.msra.mxu0 0.0
        %1440 = vmatprep.subr.mxu0 0.0
        %1441 = vmatpush1.msra.mxu0 0.0
        %1442 = vmatprep.mubr.f32.mxu0 0.0
        %1443 = vmatmul.mubr.f32.gmra.mrb[0].mxu0 %v1071
        %v1444 = vpop.f32.mrb[0].mxu0
        %v1445 = vadd.f32 0.0, %v1444
        %v1446 = vpop.f32.mrb[0].mxu0
        %v1447 = vadd.f32 0.0, %v1446
        %1448 = vdwg.mxu0
        %v1450 = vsel %vm1069, %v1026, 0
        %v1452 = vsel %vm1073, %v1021, 0
        %v1454 = vsel %vm1073, %v1034, 0
        %v1456 = vsel %vm1073, %v1022, 0
        %v1458 = vsel %vm1073, %v1035, 0
        %v1460 = vsel %vm1073, %v1023, 0
        %v1462 = vsel %vm1073, %v1036, 0
        %v1464 = vsel %vm1073, %v1024, 0
        %v1466 = vsel %vm1073, %v1037, 0
        %v1468 = vsel %vm1073, %v1025, 0
        %v1470 = vsel %vm1073, %v1038, 0
        %1472 = vmatprep.subr.mxu0 %v1454
        %1473 = vmatpush1.msra.mxu0 %v1452
        %1474 = vmatprep.subr.mxu0 0.0
        %1475 = vmatpush1.msra.mxu0 0.0
        %1476 = vmatprep.subr.mxu0 0.0
        %1477 = vmatpush1.msra.mxu0 0.0
        %1478 = vmatprep.subr.mxu0 0.0
        %1479 = vmatpush1.msra.mxu0 0.0
        %1480 = vmatprep.subr.mxu0 0.0
        %1481 = vmatpush1.msra.mxu0 0.0
        %1482 = vmatprep.subr.mxu0 0.0
        %1483 = vmatpush1.msra.mxu0 0.0
        %1484 = vmatprep.subr.mxu0 0.0
        %1485 = vmatpush1.msra.mxu0 0.0
        %1486 = vmatprep.subr.mxu0 0.0
        %1487 = vmatpush1.msra.mxu0 0.0
        %1488 = vmatprep.subr.mxu0 0.0
        %1489 = vmatpush1.msra.mxu0 0.0
        %1490 = vmatprep.subr.mxu0 0.0
        %1491 = vmatpush1.msra.mxu0 0.0
        %1492 = vmatprep.subr.mxu0 0.0
        %1493 = vmatpush1.msra.mxu0 0.0
        %1494 = vmatprep.subr.mxu0 0.0
        %1495 = vmatpush1.msra.mxu0 0.0
        %1496 = vmatprep.subr.mxu0 0.0
        %1497 = vmatpush1.msra.mxu0 0.0
        %1498 = vmatprep.subr.mxu0 0.0
        %1499 = vmatpush1.msra.mxu0 0.0
        %1500 = vmatprep.subr.mxu0 0.0
        %1501 = vmatpush1.msra.mxu0 0.0
        %1502 = vmatprep.subr.mxu0 0.0
        %1503 = vmatpush1.msra.mxu0 0.0
        %1504 = vmatprep.subr.mxu0 0.0
        %1505 = vmatpush1.msra.mxu0 0.0
        %1506 = vmatprep.subr.mxu0 0.0
        %1507 = vmatpush1.msra.mxu0 0.0
        %1508 = vmatprep.subr.mxu0 0.0
        %1509 = vmatpush1.msra.mxu0 0.0
        %1510 = vmatprep.subr.mxu0 0.0
        %1511 = vmatpush1.msra.mxu0 0.0
        %1512 = vmatprep.subr.mxu0 0.0
        %1513 = vmatpush1.msra.mxu0 0.0
        %1514 = vmatprep.subr.mxu0 0.0
        %1515 = vmatpush1.msra.mxu0 0.0
        %1516 = vmatprep.subr.mxu0 0.0
        %1517 = vmatpush1.msra.mxu0 0.0
        %1518 = vmatprep.subr.mxu0 0.0
        %1519 = vmatpush1.msra.mxu0 0.0
        %1520 = vmatprep.subr.mxu0 0.0
        %1521 = vmatpush1.msra.mxu0 0.0
        %1522 = vmatprep.subr.mxu0 0.0
        %1523 = vmatpush1.msra.mxu0 0.0
        %1524 = vmatprep.subr.mxu0 0.0
        %1525 = vmatpush1.msra.mxu0 0.0
        %1526 = vmatprep.subr.mxu0 0.0
        %1527 = vmatpush1.msra.mxu0 0.0
        %1528 = vmatprep.subr.mxu0 0.0
        %1529 = vmatpush1.msra.mxu0 0.0
        %1530 = vmatprep.subr.mxu0 0.0
        %1531 = vmatpush1.msra.mxu0 0.0
        %1532 = vmatprep.subr.mxu0 0.0
        %1533 = vmatpush1.msra.mxu0 0.0
        %1534 = vmatprep.subr.mxu0 0.0
        %1535 = vmatpush1.msra.mxu0 0.0
        %1536 = vmatprep.mubr.f32.mxu0 0.0
        %1537 = vmatmul.mubr.f32.gmra.mrb[0].mxu0 %v1450
        %v1538 = vpop.f32.mrb[0].mxu0
        %v1539 = vadd.f32 %v1161, %v1538
        %v1540 = vpop.f32.mrb[0].mxu0
        %v1541 = vadd.f32 %v1163, %v1540
        %1542 = vdwg.mxu0
        %1543 = vmatprep.subr.mxu0 %v1458
        %1544 = vmatpush1.msra.mxu0 %v1456
        %1545 = vmatprep.subr.mxu0 0.0
        %1546 = vmatpush1.msra.mxu0 0.0
        %1547 = vmatprep.subr.mxu0 0.0
        %1548 = vmatpush1.msra.mxu0 0.0
        %1549 = vmatprep.subr.mxu0 0.0
        %1550 = vmatpush1.msra.mxu0 0.0
        %1551 = vmatprep.subr.mxu0 0.0
        %1552 = vmatpush1.msra.mxu0 0.0
        %1553 = vmatprep.subr.mxu0 0.0
        %1554 = vmatpush1.msra.mxu0 0.0
        %1555 = vmatprep.subr.mxu0 0.0
        %1556 = vmatpush1.msra.mxu0 0.0
        %1557 = vmatprep.subr.mxu0 0.0
        %1558 = vmatpush1.msra.mxu0 0.0
        %1559 = vmatprep.subr.mxu0 0.0
        %1560 = vmatpush1.msra.mxu0 0.0
        %1561 = vmatprep.subr.mxu0 0.0
        %1562 = vmatpush1.msra.mxu0 0.0
        %1563 = vmatprep.subr.mxu0 0.0
        %1564 = vmatpush1.msra.mxu0 0.0
        %1565 = vmatprep.subr.mxu0 0.0
        %1566 = vmatpush1.msra.mxu0 0.0
        %1567 = vmatprep.subr.mxu0 0.0
        %1568 = vmatpush1.msra.mxu0 0.0
        %1569 = vmatprep.subr.mxu0 0.0
        %1570 = vmatpush1.msra.mxu0 0.0
        %1571 = vmatprep.subr.mxu0 0.0
        %1572 = vmatpush1.msra.mxu0 0.0
        %1573 = vmatprep.subr.mxu0 0.0
        %1574 = vmatpush1.msra.mxu0 0.0
        %1575 = vmatprep.subr.mxu0 0.0
        %1576 = vmatpush1.msra.mxu0 0.0
        %1577 = vmatprep.subr.mxu0 0.0
        %1578 = vmatpush1.msra.mxu0 0.0
        %1579 = vmatprep.subr.mxu0 0.0
        %1580 = vmatpush1.msra.mxu0 0.0
        %1581 = vmatprep.subr.mxu0 0.0
        %1582 = vmatpush1.msra.mxu0 0.0
        %1583 = vmatprep.subr.mxu0 0.0
        %1584 = vmatpush1.msra.mxu0 0.0
        %1585 = vmatprep.subr.mxu0 0.0
        %1586 = vmatpush1.msra.mxu0 0.0
        %1587 = vmatprep.subr.mxu0 0.0
        %1588 = vmatpush1.msra.mxu0 0.0
        %1589 = vmatprep.subr.mxu0 0.0
        %1590 = vmatpush1.msra.mxu0 0.0
        %1591 = vmatprep.subr.mxu0 0.0
        %1592 = vmatpush1.msra.mxu0 0.0
        %1593 = vmatprep.subr.mxu0 0.0
        %1594 = vmatpush1.msra.mxu0 0.0
        %1595 = vmatprep.subr.mxu0 0.0
        %1596 = vmatpush1.msra.mxu0 0.0
        %1597 = vmatprep.subr.mxu0 0.0
        %1598 = vmatpush1.msra.mxu0 0.0
        %1599 = vmatprep.subr.mxu0 0.0
        %1600 = vmatpush1.msra.mxu0 0.0
        %1601 = vmatprep.subr.mxu0 0.0
        %1602 = vmatpush1.msra.mxu0 0.0
        %1603 = vmatprep.subr.mxu0 0.0
        %1604 = vmatpush1.msra.mxu0 0.0
        %1605 = vmatprep.subr.mxu0 0.0
        %1606 = vmatpush1.msra.mxu0 0.0
        %1607 = vmatprep.mubr.f32.mxu0 0.0
        %1608 = vmatmul.mubr.f32.gmra.mrb[0].mxu0 %v1450
        %v1609 = vpop.f32.mrb[0].mxu0
        %v1610 = vadd.f32 %v1232, %v1609
        %v1611 = vpop.f32.mrb[0].mxu0
        %v1612 = vadd.f32 %v1234, %v1611
        %1613 = vdwg.mxu0
        %1614 = vmatprep.subr.mxu0 %v1462
        %1615 = vmatpush1.msra.mxu0 %v1460
        %1616 = vmatprep.subr.mxu0 0.0
        %1617 = vmatpush1.msra.mxu0 0.0
        %1618 = vmatprep.subr.mxu0 0.0
        %1619 = vmatpush1.msra.mxu0 0.0
        %1620 = vmatprep.subr.mxu0 0.0
        %1621 = vmatpush1.msra.mxu0 0.0
        %1622 = vmatprep.subr.mxu0 0.0
        %1623 = vmatpush1.msra.mxu0 0.0
        %1624 = vmatprep.subr.mxu0 0.0
        %1625 = vmatpush1.msra.mxu0 0.0
        %1626 = vmatprep.subr.mxu0 0.0
        %1627 = vmatpush1.msra.mxu0 0.0
        %1628 = vmatprep.subr.mxu0 0.0
        %1629 = vmatpush1.msra.mxu0 0.0
        %1630 = vmatprep.subr.mxu0 0.0
        %1631 = vmatpush1.msra.mxu0 0.0
        %1632 = vmatprep.subr.mxu0 0.0
        %1633 = vmatpush1.msra.mxu0 0.0
        %1634 = vmatprep.subr.mxu0 0.0
        %1635 = vmatpush1.msra.mxu0 0.0
        %1636 = vmatprep.subr.mxu0 0.0
        %1637 = vmatpush1.msra.mxu0 0.0
        %1638 = vmatprep.subr.mxu0 0.0
        %1639 = vmatpush1.msra.mxu0 0.0
        %1640 = vmatprep.subr.mxu0 0.0
        %1641 = vmatpush1.msra.mxu0 0.0
        %1642 = vmatprep.subr.mxu0 0.0
        %1643 = vmatpush1.msra.mxu0 0.0
        %1644 = vmatprep.subr.mxu0 0.0
        %1645 = vmatpush1.msra.mxu0 0.0
        %1646 = vmatprep.subr.mxu0 0.0
        %1647 = vmatpush1.msra.mxu0 0.0
        %1648 = vmatprep.subr.mxu0 0.0
        %1649 = vmatpush1.msra.mxu0 0.0
        %1650 = vmatprep.subr.mxu0 0.0
        %1651 = vmatpush1.msra.mxu0 0.0
        %1652 = vmatprep.subr.mxu0 0.0
        %1653 = vmatpush1.msra.mxu0 0.0
        %1654 = vmatprep.subr.mxu0 0.0
        %1655 = vmatpush1.msra.mxu0 0.0
        %1656 = vmatprep.subr.mxu0 0.0
        %1657 = vmatpush1.msra.mxu0 0.0
        %1658 = vmatprep.subr.mxu0 0.0
        %1659 = vmatpush1.msra.mxu0 0.0
        %1660 = vmatprep.subr.mxu0 0.0
        %1661 = vmatpush1.msra.mxu0 0.0
        %1662 = vmatprep.subr.mxu0 0.0
        %1663 = vmatpush1.msra.mxu0 0.0
        %1664 = vmatprep.subr.mxu0 0.0
        %1665 = vmatpush1.msra.mxu0 0.0
        %1666 = vmatprep.subr.mxu0 0.0
        %1667 = vmatpush1.msra.mxu0 0.0
        %1668 = vmatprep.subr.mxu0 0.0
        %1669 = vmatpush1.msra.mxu0 0.0
        %1670 = vmatprep.subr.mxu0 0.0
        %1671 = vmatpush1.msra.mxu0 0.0
        %1672 = vmatprep.subr.mxu0 0.0
        %1673 = vmatpush1.msra.mxu0 0.0
        %1674 = vmatprep.subr.mxu0 0.0
        %1675 = vmatpush1.msra.mxu0 0.0
        %1676 = vmatprep.subr.mxu0 0.0
        %1677 = vmatpush1.msra.mxu0 0.0
        %1678 = vmatprep.mubr.f32.mxu0 0.0
        %1679 = vmatmul.mubr.f32.gmra.mrb[0].mxu0 %v1450
        %v1680 = vpop.f32.mrb[0].mxu0
        %v1681 = vadd.f32 %v1303, %v1680
        %v1682 = vpop.f32.mrb[0].mxu0
        %v1683 = vadd.f32 %v1305, %v1682
        %1684 = vdwg.mxu0
        %1685 = vmatprep.subr.mxu0 %v1466
        %1686 = vmatpush1.msra.mxu0 %v1464
        %1687 = vmatprep.subr.mxu0 0.0
        %1688 = vmatpush1.msra.mxu0 0.0
        %1689 = vmatprep.subr.mxu0 0.0
        %1690 = vmatpush1.msra.mxu0 0.0
        %1691 = vmatprep.subr.mxu0 0.0
        %1692 = vmatpush1.msra.mxu0 0.0
        %1693 = vmatprep.subr.mxu0 0.0
        %1694 = vmatpush1.msra.mxu0 0.0
        %1695 = vmatprep.subr.mxu0 0.0
        %1696 = vmatpush1.msra.mxu0 0.0
        %1697 = vmatprep.subr.mxu0 0.0
        %1698 = vmatpush1.msra.mxu0 0.0
        %1699 = vmatprep.subr.mxu0 0.0
        %1700 = vmatpush1.msra.mxu0 0.0
        %1701 = vmatprep.subr.mxu0 0.0
        %1702 = vmatpush1.msra.mxu0 0.0
        %1703 = vmatprep.subr.mxu0 0.0
        %1704 = vmatpush1.msra.mxu0 0.0
        %1705 = vmatprep.subr.mxu0 0.0
        %1706 = vmatpush1.msra.mxu0 0.0
        %1707 = vmatprep.subr.mxu0 0.0
        %1708 = vmatpush1.msra.mxu0 0.0
        %1709 = vmatprep.subr.mxu0 0.0
        %1710 = vmatpush1.msra.mxu0 0.0
        %1711 = vmatprep.subr.mxu0 0.0
        %1712 = vmatpush1.msra.mxu0 0.0
        %1713 = vmatprep.subr.mxu0 0.0
        %1714 = vmatpush1.msra.mxu0 0.0
        %1715 = vmatprep.subr.mxu0 0.0
        %1716 = vmatpush1.msra.mxu0 0.0
        %1717 = vmatprep.subr.mxu0 0.0
        %1718 = vmatpush1.msra.mxu0 0.0
        %1719 = vmatprep.subr.mxu0 0.0
        %1720 = vmatpush1.msra.mxu0 0.0
        %1721 = vmatprep.subr.mxu0 0.0
        %1722 = vmatpush1.msra.mxu0 0.0
        %1723 = vmatprep.subr.mxu0 0.0
        %1724 = vmatpush1.msra.mxu0 0.0
        %1725 = vmatprep.subr.mxu0 0.0
        %1726 = vmatpush1.msra.mxu0 0.0
        %1727 = vmatprep.subr.mxu0 0.0
        %1728 = vmatpush1.msra.mxu0 0.0
        %1729 = vmatprep.subr.mxu0 0.0
        %1730 = vmatpush1.msra.mxu0 0.0
        %1731 = vmatprep.subr.mxu0 0.0
        %1732 = vmatpush1.msra.mxu0 0.0
        %1733 = vmatprep.subr.mxu0 0.0
        %1734 = vmatpush1.msra.mxu0 0.0
        %1735 = vmatprep.subr.mxu0 0.0
        %1736 = vmatpush1.msra.mxu0 0.0
        %1737 = vmatprep.subr.mxu0 0.0
        %1738 = vmatpush1.msra.mxu0 0.0
        %1739 = vmatprep.subr.mxu0 0.0
        %1740 = vmatpush1.msra.mxu0 0.0
        %1741 = vmatprep.subr.mxu0 0.0
        %1742 = vmatpush1.msra.mxu0 0.0
        %1743 = vmatprep.subr.mxu0 0.0
        %1744 = vmatpush1.msra.mxu0 0.0
        %1745 = vmatprep.subr.mxu0 0.0
        %1746 = vmatpush1.msra.mxu0 0.0
        %1747 = vmatprep.subr.mxu0 0.0
        %1748 = vmatpush1.msra.mxu0 0.0
        %1749 = vmatprep.mubr.f32.mxu0 0.0
        %1750 = vmatmul.mubr.f32.gmra.mrb[0].mxu0 %v1450
        %v1751 = vpop.f32.mrb[0].mxu0
        %v1752 = vadd.f32 %v1374, %v1751
        %v1753 = vpop.f32.mrb[0].mxu0
        %v1754 = vadd.f32 %v1376, %v1753
        %1755 = vdwg.mxu0
        %1756 = vmatprep.subr.mxu0 %v1470
        %1757 = vmatpush1.msra.mxu0 %v1468
        %1758 = vmatprep.subr.mxu0 0.0
        %1759 = vmatpush1.msra.mxu0 0.0
        %1760 = vmatprep.subr.mxu0 0.0
        %1761 = vmatpush1.msra.mxu0 0.0
        %1762 = vmatprep.subr.mxu0 0.0
        %1763 = vmatpush1.msra.mxu0 0.0
        %1764 = vmatprep.subr.mxu0 0.0
        %1765 = vmatpush1.msra.mxu0 0.0
        %1766 = vmatprep.subr.mxu0 0.0
        %1767 = vmatpush1.msra.mxu0 0.0
        %1768 = vmatprep.subr.mxu0 0.0
        %1769 = vmatpush1.msra.mxu0 0.0
        %1770 = vmatprep.subr.mxu0 0.0
        %1771 = vmatpush1.msra.mxu0 0.0
        %1772 = vmatprep.subr.mxu0 0.0
        %1773 = vmatpush1.msra.mxu0 0.0
        %1774 = vmatprep.subr.mxu0 0.0
        %1775 = vmatpush1.msra.mxu0 0.0
        %1776 = vmatprep.subr.mxu0 0.0
        %1777 = vmatpush1.msra.mxu0 0.0
        %1778 = vmatprep.subr.mxu0 0.0
        %1779 = vmatpush1.msra.mxu0 0.0
        %1780 = vmatprep.subr.mxu0 0.0
        %1781 = vmatpush1.msra.mxu0 0.0
        %1782 = vmatprep.subr.mxu0 0.0
        %1783 = vmatpush1.msra.mxu0 0.0
        %1784 = vmatprep.subr.mxu0 0.0
        %1785 = vmatpush1.msra.mxu0 0.0
        %1786 = vmatprep.subr.mxu0 0.0
        %1787 = vmatpush1.msra.mxu0 0.0
        %1788 = vmatprep.subr.mxu0 0.0
        %1789 = vmatpush1.msra.mxu0 0.0
        %1790 = vmatprep.subr.mxu0 0.0
        %1791 = vmatpush1.msra.mxu0 0.0
        %1792 = vmatprep.subr.mxu0 0.0
        %1793 = vmatpush1.msra.mxu0 0.0
        %1794 = vmatprep.subr.mxu0 0.0
        %1795 = vmatpush1.msra.mxu0 0.0
        %1796 = vmatprep.subr.mxu0 0.0
        %1797 = vmatpush1.msra.mxu0 0.0
        %1798 = vmatprep.subr.mxu0 0.0
        %1799 = vmatpush1.msra.mxu0 0.0
        %1800 = vmatprep.subr.mxu0 0.0
        %1801 = vmatpush1.msra.mxu0 0.0
        %1802 = vmatprep.subr.mxu0 0.0
        %1803 = vmatpush1.msra.mxu0 0.0
        %1804 = vmatprep.subr.mxu0 0.0
        %1805 = vmatpush1.msra.mxu0 0.0
        %1806 = vmatprep.subr.mxu0 0.0
        %1807 = vmatpush1.msra.mxu0 0.0
        %1808 = vmatprep.subr.mxu0 0.0
        %1809 = vmatpush1.msra.mxu0 0.0
        %1810 = vmatprep.subr.mxu0 0.0
        %1811 = vmatpush1.msra.mxu0 0.0
        %1812 = vmatprep.subr.mxu0 0.0
        %1813 = vmatpush1.msra.mxu0 0.0
        %1814 = vmatprep.subr.mxu0 0.0
        %1815 = vmatpush1.msra.mxu0 0.0
        %1816 = vmatprep.subr.mxu0 0.0
        %1817 = vmatpush1.msra.mxu0 0.0
        %1818 = vmatprep.subr.mxu0 0.0
        %1819 = vmatpush1.msra.mxu0 0.0
        %1820 = vmatprep.mubr.f32.mxu0 0.0
        %1821 = vmatmul.mubr.f32.gmra.mrb[0].mxu0 %v1450
        %v1822 = vpop.f32.mrb[0].mxu0
        %v1823 = vadd.f32 %v1445, %v1822
        %v1824 = vpop.f32.mrb[0].mxu0
        %v1825 = vadd.f32 %v1447, %v1824
        %1826 = vdwg.mxu0
        %v1827 = vld [vmem:[#allocation2] sm:$0xff]
        %v1828 = vld [vmem:[#allocation2 + $0x8] sm:$0xff]
        %v1829 = vld [vmem:[#allocation2 + $0x10] sm:$0xff]
        %v1830 = vld [vmem:[#allocation2 + $0x18] sm:$0xff]
        %v1831 = vld [vmem:[#allocation2 + $0x20] sm:$0xff]
        %s1832 = scalar_lea.vmem %s2, 16
        %v1833 = vld [vmem:[%s1832] sm:$0xff]
        %v1839 = vcombine.high %v1827, %v1827
        %v1840 = vcombine.high %v1828, %v1828
        %v1841 = vcombine.high %v1829, %v1829
        %v1842 = vcombine.high %v1830, %v1830
        %v1843 = vcombine.high %v1831, %v1831
        %1844 = vrot.lane.b32.xlu0 %v1827, 126
        %v1845 = vpop.permute.xlu0 %1844
        %1846 = vrot.lane.b32.xlu0 %v1839, 126
        %v1847 = vpop.permute.xlu0 %1846
        %1848 = vrot.lane.b32.xlu0 %v1828, 126
        %v1849 = vpop.permute.xlu0 %1848
        %1850 = vrot.lane.b32.xlu0 %v1840, 126
        %v1851 = vpop.permute.xlu0 %1850
        %1852 = vrot.lane.b32.xlu0 %v1829, 126
        %v1853 = vpop.permute.xlu0 %1852
        %1854 = vrot.lane.b32.xlu0 %v1841, 126
        %v1855 = vpop.permute.xlu0 %1854
        %1856 = vrot.lane.b32.xlu0 %v1830, 126
        %v1857 = vpop.permute.xlu0 %1856
        %1858 = vrot.lane.b32.xlu0 %v1842, 126
        %v1859 = vpop.permute.xlu0 %1858
        %1860 = vrot.lane.b32.xlu0 %v1831, 126
        %v1861 = vpop.permute.xlu0 %1860
        %1862 = vrot.lane.b32.xlu0 %v1843, 126
        %v1863 = vpop.permute.xlu0 %1862
        %vm1864 = vcmask 1031168
        %v1865 = vsel %vm1864, %v1845, %v1847
        %v1866 = vsel %vm1864, %v1847, %v1849
        %v1867 = vsel %vm1864, %v1849, %v1851
        %v1868 = vsel %vm1864, %v1851, %v1853
        %v1869 = vsel %vm1864, %v1853, %v1855
        %v1870 = vsel %vm1864, %v1855, %v1857
        %v1871 = vsel %vm1864, %v1857, %v1859
        %v1872 = vsel %vm1864, %v1859, %v1861
        %v1873 = vsel %vm1864, %v1861, %v1863
        %v1875 = vsel %vm1069, %v1833, 0
        %v1877 = vsel %vm1073, %v1865, 0
        %v1879 = vsel %vm1073, %v1866, 0
        %v1881 = vsel %vm1073, %v1867, 0
        %v1883 = vsel %vm1073, %v1868, 0
        %v1885 = vsel %vm1073, %v1869, 0
        %v1887 = vsel %vm1073, %v1870, 0
        %v1889 = vsel %vm1073, %v1871, 0
        %v1891 = vsel %vm1073, %v1872, 0
        %v1893 = vsel %vm1073, %v1873, 0
        %v1895 = vsel %vm1073, %v1863, 0
        %1897 = vmatprep.subr.mxu0 %v1879
        %1898 = vmatpush1.msra.mxu0 %v1877
        %1899 = vmatprep.subr.mxu0 0.0
        %1900 = vmatpush1.msra.mxu0 0.0
        %1901 = vmatprep.subr.mxu0 0.0
        %1902 = vmatpush1.msra.mxu0 0.0
        %1903 = vmatprep.subr.mxu0 0.0
        %1904 = vmatpush1.msra.mxu0 0.0
        %1905 = vmatprep.subr.mxu0 0.0
        %1906 = vmatpush1.msra.mxu0 0.0
        %1907 = vmatprep.subr.mxu0 0.0
        %1908 = vmatpush1.msra.mxu0 0.0
        %1909 = vmatprep.subr.mxu0 0.0
        %1910 = vmatpush1.msra.mxu0 0.0
        %1911 = vmatprep.subr.mxu0 0.0
        %1912 = vmatpush1.msra.mxu0 0.0
        %1913 = vmatprep.subr.mxu0 0.0
        %1914 = vmatpush1.msra.mxu0 0.0
        %1915 = vmatprep.subr.mxu0 0.0
        %1916 = vmatpush1.msra.mxu0 0.0
        %1917 = vmatprep.subr.mxu0 0.0
        %1918 = vmatpush1.msra.mxu0 0.0
        %1919 = vmatprep.subr.mxu0 0.0
        %1920 = vmatpush1.msra.mxu0 0.0
        %1921 = vmatprep.subr.mxu0 0.0
        %1922 = vmatpush1.msra.mxu0 0.0
        %1923 = vmatprep.subr.mxu0 0.0
        %1924 = vmatpush1.msra.mxu0 0.0
        %1925 = vmatprep.subr.mxu0 0.0
        %1926 = vmatpush1.msra.mxu0 0.0
        %1927 = vmatprep.subr.mxu0 0.0
        %1928 = vmatpush1.msra.mxu0 0.0
        %1929 = vmatprep.subr.mxu0 0.0
        %1930 = vmatpush1.msra.mxu0 0.0
        %1931 = vmatprep.subr.mxu0 0.0
        %1932 = vmatpush1.msra.mxu0 0.0
        %1933 = vmatprep.subr.mxu0 0.0
        %1934 = vmatpush1.msra.mxu0 0.0
        %1935 = vmatprep.subr.mxu0 0.0
        %1936 = vmatpush1.msra.mxu0 0.0
        %1937 = vmatprep.subr.mxu0 0.0
        %1938 = vmatpush1.msra.mxu0 0.0
        %1939 = vmatprep.subr.mxu0 0.0
        %1940 = vmatpush1.msra.mxu0 0.0
        %1941 = vmatprep.subr.mxu0 0.0
        %1942 = vmatpush1.msra.mxu0 0.0
        %1943 = vmatprep.subr.mxu0 0.0
        %1944 = vmatpush1.msra.mxu0 0.0
        %1945 = vmatprep.subr.mxu0 0.0
        %1946 = vmatpush1.msra.mxu0 0.0
        %1947 = vmatprep.subr.mxu0 0.0
        %1948 = vmatpush1.msra.mxu0 0.0
        %1949 = vmatprep.subr.mxu0 0.0
        %1950 = vmatpush1.msra.mxu0 0.0
        %1951 = vmatprep.subr.mxu0 0.0
        %1952 = vmatpush1.msra.mxu0 0.0
        %1953 = vmatprep.subr.mxu0 0.0
        %1954 = vmatpush1.msra.mxu0 0.0
        %1955 = vmatprep.subr.mxu0 0.0
        %1956 = vmatpush1.msra.mxu0 0.0
        %1957 = vmatprep.subr.mxu0 0.0
        %1958 = vmatpush1.msra.mxu0 0.0
        %1959 = vmatprep.subr.mxu0 0.0
        %1960 = vmatpush1.msra.mxu0 0.0
        %1961 = vmatprep.mubr.f32.mxu0 0.0
        %1962 = vmatmul.mubr.f32.gmra.mrb[0].mxu0 %v1875
        %v1963 = vpop.f32.mrb[0].mxu0
        %v1964 = vadd.f32 0.0, %v1963
        %v1965 = vpop.f32.mrb[0].mxu0
        %v1966 = vadd.f32 0.0, %v1965
        %1967 = vdwg.mxu0
        %1968 = vmatprep.subr.mxu0 %v1883
        %1969 = vmatpush1.msra.mxu0 %v1881
        %1970 = vmatprep.subr.mxu0 0.0
        %1971 = vmatpush1.msra.mxu0 0.0
        %1972 = vmatprep.subr.mxu0 0.0
        %1973 = vmatpush1.msra.mxu0 0.0
        %1974 = vmatprep.subr.mxu0 0.0
        %1975 = vmatpush1.msra.mxu0 0.0
        %1976 = vmatprep.subr.mxu0 0.0
        %1977 = vmatpush1.msra.mxu0 0.0
        %1978 = vmatprep.subr.mxu0 0.0
        %1979 = vmatpush1.msra.mxu0 0.0
        %1980 = vmatprep.subr.mxu0 0.0
        %1981 = vmatpush1.msra.mxu0 0.0
        %1982 = vmatprep.subr.mxu0 0.0
        %1983 = vmatpush1.msra.mxu0 0.0
        %1984 = vmatprep.subr.mxu0 0.0
        %1985 = vmatpush1.msra.mxu0 0.0
        %1986 = vmatprep.subr.mxu0 0.0
        %1987 = vmatpush1.msra.mxu0 0.0
        %1988 = vmatprep.subr.mxu0 0.0
        %1989 = vmatpush1.msra.mxu0 0.0
        %1990 = vmatprep.subr.mxu0 0.0
        %1991 = vmatpush1.msra.mxu0 0.0
        %1992 = vmatprep.subr.mxu0 0.0
        %1993 = vmatpush1.msra.mxu0 0.0
        %1994 = vmatprep.subr.mxu0 0.0
        %1995 = vmatpush1.msra.mxu0 0.0
        %1996 = vmatprep.subr.mxu0 0.0
        %1997 = vmatpush1.msra.mxu0 0.0
        %1998 = vmatprep.subr.mxu0 0.0
        %1999 = vmatpush1.msra.mxu0 0.0
        %2000 = vmatprep.subr.mxu0 0.0
        %2001 = vmatpush1.msra.mxu0 0.0
        %2002 = vmatprep.subr.mxu0 0.0
        %2003 = vmatpush1.msra.mxu0 0.0
        %2004 = vmatprep.subr.mxu0 0.0
        %2005 = vmatpush1.msra.mxu0 0.0
        %2006 = vmatprep.subr.mxu0 0.0
        %2007 = vmatpush1.msra.mxu0 0.0
        %2008 = vmatprep.subr.mxu0 0.0
        %2009 = vmatpush1.msra.mxu0 0.0
        %2010 = vmatprep.subr.mxu0 0.0
        %2011 = vmatpush1.msra.mxu0 0.0
        %2012 = vmatprep.subr.mxu0 0.0
        %2013 = vmatpush1.msra.mxu0 0.0
        %2014 = vmatprep.subr.mxu0 0.0
        %2015 = vmatpush1.msra.mxu0 0.0
        %2016 = vmatprep.subr.mxu0 0.0
        %2017 = vmatpush1.msra.mxu0 0.0
        %2018 = vmatprep.subr.mxu0 0.0
        %2019 = vmatpush1.msra.mxu0 0.0
        %2020 = vmatprep.subr.mxu0 0.0
        %2021 = vmatpush1.msra.mxu0 0.0
        %2022 = vmatprep.subr.mxu0 0.0
        %2023 = vmatpush1.msra.mxu0 0.0
        %2024 = vmatprep.subr.mxu0 0.0
        %2025 = vmatpush1.msra.mxu0 0.0
        %2026 = vmatprep.subr.mxu0 0.0
        %2027 = vmatpush1.msra.mxu0 0.0
        %2028 = vmatprep.subr.mxu0 0.0
        %2029 = vmatpush1.msra.mxu0 0.0
        %2030 = vmatprep.subr.mxu0 0.0
        %2031 = vmatpush1.msra.mxu0 0.0
        %2032 = vmatprep.mubr.f32.mxu0 0.0
        %2033 = vmatmul.mubr.f32.gmra.mrb[0].mxu0 %v1875
        %v2034 = vpop.f32.mrb[0].mxu0
        %v2035 = vadd.f32 0.0, %v2034
        %v2036 = vpop.f32.mrb[0].mxu0
        %v2037 = vadd.f32 0.0, %v2036
        %2038 = vdwg.mxu0
        %2039 = vmatprep.subr.mxu0 %v1887
        %2040 = vmatpush1.msra.mxu0 %v1885
        %2041 = vmatprep.subr.mxu0 0.0
        %2042 = vmatpush1.msra.mxu0 0.0
        %2043 = vmatprep.subr.mxu0 0.0
        %2044 = vmatpush1.msra.mxu0 0.0
        %2045 = vmatprep.subr.mxu0 0.0
        %2046 = vmatpush1.msra.mxu0 0.0
        %2047 = vmatprep.subr.mxu0 0.0
        %2048 = vmatpush1.msra.mxu0 0.0
        %2049 = vmatprep.subr.mxu0 0.0
        %2050 = vmatpush1.msra.mxu0 0.0
        %2051 = vmatprep.subr.mxu0 0.0
        %2052 = vmatpush1.msra.mxu0 0.0
        %2053 = vmatprep.subr.mxu0 0.0
        %2054 = vmatpush1.msra.mxu0 0.0
        %2055 = vmatprep.subr.mxu0 0.0
        %2056 = vmatpush1.msra.mxu0 0.0
        %2057 = vmatprep.subr.mxu0 0.0
        %2058 = vmatpush1.msra.mxu0 0.0
        %2059 = vmatprep.subr.mxu0 0.0
        %2060 = vmatpush1.msra.mxu0 0.0
        %2061 = vmatprep.subr.mxu0 0.0
        %2062 = vmatpush1.msra.mxu0 0.0
        %2063 = vmatprep.subr.mxu0 0.0
        %2064 = vmatpush1.msra.mxu0 0.0
        %2065 = vmatprep.subr.mxu0 0.0
        %2066 = vmatpush1.msra.mxu0 0.0
        %2067 = vmatprep.subr.mxu0 0.0
        %2068 = vmatpush1.msra.mxu0 0.0
        %2069 = vmatprep.subr.mxu0 0.0
        %2070 = vmatpush1.msra.mxu0 0.0
        %2071 = vmatprep.subr.mxu0 0.0
        %2072 = vmatpush1.msra.mxu0 0.0
        %2073 = vmatprep.subr.mxu0 0.0
        %2074 = vmatpush1.msra.mxu0 0.0
        %2075 = vmatprep.subr.mxu0 0.0
        %2076 = vmatpush1.msra.mxu0 0.0
        %2077 = vmatprep.subr.mxu0 0.0
        %2078 = vmatpush1.msra.mxu0 0.0
        %2079 = vmatprep.subr.mxu0 0.0
        %2080 = vmatpush1.msra.mxu0 0.0
        %2081 = vmatprep.subr.mxu0 0.0
        %2082 = vmatpush1.msra.mxu0 0.0
        %2083 = vmatprep.subr.mxu0 0.0
        %2084 = vmatpush1.msra.mxu0 0.0
        %2085 = vmatprep.subr.mxu0 0.0
        %2086 = vmatpush1.msra.mxu0 0.0
        %2087 = vmatprep.subr.mxu0 0.0
        %2088 = vmatpush1.msra.mxu0 0.0
        %2089 = vmatprep.subr.mxu0 0.0
        %2090 = vmatpush1.msra.mxu0 0.0
        %2091 = vmatprep.subr.mxu0 0.0
        %2092 = vmatpush1.msra.mxu0 0.0
        %2093 = vmatprep.subr.mxu0 0.0
        %2094 = vmatpush1.msra.mxu0 0.0
        %2095 = vmatprep.subr.mxu0 0.0
        %2096 = vmatpush1.msra.mxu0 0.0
        %2097 = vmatprep.subr.mxu0 0.0
        %2098 = vmatpush1.msra.mxu0 0.0
        %2099 = vmatprep.subr.mxu0 0.0
        %2100 = vmatpush1.msra.mxu0 0.0
        %2101 = vmatprep.subr.mxu0 0.0
        %2102 = vmatpush1.msra.mxu0 0.0
        %2103 = vmatprep.mubr.f32.mxu0 0.0
        %2104 = vmatmul.mubr.f32.gmra.mrb[0].mxu0 %v1875
        %v2105 = vpop.f32.mrb[0].mxu0
        %v2106 = vadd.f32 0.0, %v2105
        %v2107 = vpop.f32.mrb[0].mxu0
        %v2108 = vadd.f32 0.0, %v2107
        %2109 = vdwg.mxu0
        %2110 = vmatprep.subr.mxu0 %v1891
        %2111 = vmatpush1.msra.mxu0 %v1889
        %2112 = vmatprep.subr.mxu0 0.0
        %2113 = vmatpush1.msra.mxu0 0.0
        %2114 = vmatprep.subr.mxu0 0.0
        %2115 = vmatpush1.msra.mxu0 0.0
        %2116 = vmatprep.subr.mxu0 0.0
        %2117 = vmatpush1.msra.mxu0 0.0
        %2118 = vmatprep.subr.mxu0 0.0
        %2119 = vmatpush1.msra.mxu0 0.0
        %2120 = vmatprep.subr.mxu0 0.0
        %2121 = vmatpush1.msra.mxu0 0.0
        %2122 = vmatprep.subr.mxu0 0.0
        %2123 = vmatpush1.msra.mxu0 0.0
        %2124 = vmatprep.subr.mxu0 0.0
        %2125 = vmatpush1.msra.mxu0 0.0
        %2126 = vmatprep.subr.mxu0 0.0
        %2127 = vmatpush1.msra.mxu0 0.0
        %2128 = vmatprep.subr.mxu0 0.0
        %2129 = vmatpush1.msra.mxu0 0.0
        %2130 = vmatprep.subr.mxu0 0.0
        %2131 = vmatpush1.msra.mxu0 0.0
        %2132 = vmatprep.subr.mxu0 0.0
        %2133 = vmatpush1.msra.mxu0 0.0
        %2134 = vmatprep.subr.mxu0 0.0
        %2135 = vmatpush1.msra.mxu0 0.0
        %2136 = vmatprep.subr.mxu0 0.0
        %2137 = vmatpush1.msra.mxu0 0.0
        %2138 = vmatprep.subr.mxu0 0.0
        %2139 = vmatpush1.msra.mxu0 0.0
        %2140 = vmatprep.subr.mxu0 0.0
        %2141 = vmatpush1.msra.mxu0 0.0
        %2142 = vmatprep.subr.mxu0 0.0
        %2143 = vmatpush1.msra.mxu0 0.0
        %2144 = vmatprep.subr.mxu0 0.0
        %2145 = vmatpush1.msra.mxu0 0.0
        %2146 = vmatprep.subr.mxu0 0.0
        %2147 = vmatpush1.msra.mxu0 0.0
        %2148 = vmatprep.subr.mxu0 0.0
        %2149 = vmatpush1.msra.mxu0 0.0
        %2150 = vmatprep.subr.mxu0 0.0
        %2151 = vmatpush1.msra.mxu0 0.0
        %2152 = vmatprep.subr.mxu0 0.0
        %2153 = vmatpush1.msra.mxu0 0.0
        %2154 = vmatprep.subr.mxu0 0.0
        %2155 = vmatpush1.msra.mxu0 0.0
        %2156 = vmatprep.subr.mxu0 0.0
        %2157 = vmatpush1.msra.mxu0 0.0
        %2158 = vmatprep.subr.mxu0 0.0
        %2159 = vmatpush1.msra.mxu0 0.0
        %2160 = vmatprep.subr.mxu0 0.0
        %2161 = vmatpush1.msra.mxu0 0.0
        %2162 = vmatprep.subr.mxu0 0.0
        %2163 = vmatpush1.msra.mxu0 0.0
        %2164 = vmatprep.subr.mxu0 0.0
        %2165 = vmatpush1.msra.mxu0 0.0
        %2166 = vmatprep.subr.mxu0 0.0
        %2167 = vmatpush1.msra.mxu0 0.0
        %2168 = vmatprep.subr.mxu0 0.0
        %2169 = vmatpush1.msra.mxu0 0.0
        %2170 = vmatprep.subr.mxu0 0.0
        %2171 = vmatpush1.msra.mxu0 0.0
        %2172 = vmatprep.subr.mxu0 0.0
        %2173 = vmatpush1.msra.mxu0 0.0
        %2174 = vmatprep.mubr.f32.mxu0 0.0
        %2175 = vmatmul.mubr.f32.gmra.mrb[0].mxu0 %v1875
        %v2176 = vpop.f32.mrb[0].mxu0
        %v2177 = vadd.f32 0.0, %v2176
        %v2178 = vpop.f32.mrb[0].mxu0
        %v2179 = vadd.f32 0.0, %v2178
        %2180 = vdwg.mxu0
        %2181 = vmatprep.subr.mxu0 %v1895
        %2182 = vmatpush1.msra.mxu0 %v1893
        %2183 = vmatprep.subr.mxu0 0.0
        %2184 = vmatpush1.msra.mxu0 0.0
        %2185 = vmatprep.subr.mxu0 0.0
        %2186 = vmatpush1.msra.mxu0 0.0
        %2187 = vmatprep.subr.mxu0 0.0
        %2188 = vmatpush1.msra.mxu0 0.0
        %2189 = vmatprep.subr.mxu0 0.0
        %2190 = vmatpush1.msra.mxu0 0.0
        %2191 = vmatprep.subr.mxu0 0.0
        %2192 = vmatpush1.msra.mxu0 0.0
        %2193 = vmatprep.subr.mxu0 0.0
        %2194 = vmatpush1.msra.mxu0 0.0
        %2195 = vmatprep.subr.mxu0 0.0
        %2196 = vmatpush1.msra.mxu0 0.0
        %2197 = vmatprep.subr.mxu0 0.0
        %2198 = vmatpush1.msra.mxu0 0.0
        %2199 = vmatprep.subr.mxu0 0.0
        %2200 = vmatpush1.msra.mxu0 0.0
        %2201 = vmatprep.subr.mxu0 0.0
        %2202 = vmatpush1.msra.mxu0 0.0
        %2203 = vmatprep.subr.mxu0 0.0
        %2204 = vmatpush1.msra.mxu0 0.0
        %2205 = vmatprep.subr.mxu0 0.0
        %2206 = vmatpush1.msra.mxu0 0.0
        %2207 = vmatprep.subr.mxu0 0.0
        %2208 = vmatpush1.msra.mxu0 0.0
        %2209 = vmatprep.subr.mxu0 0.0
        %2210 = vmatpush1.msra.mxu0 0.0
        %2211 = vmatprep.subr.mxu0 0.0
        %2212 = vmatpush1.msra.mxu0 0.0
        %2213 = vmatprep.subr.mxu0 0.0
        %2214 = vmatpush1.msra.mxu0 0.0
        %2215 = vmatprep.subr.mxu0 0.0
        %2216 = vmatpush1.msra.mxu0 0.0
        %2217 = vmatprep.subr.mxu0 0.0
        %2218 = vmatpush1.msra.mxu0 0.0
        %2219 = vmatprep.subr.mxu0 0.0
        %2220 = vmatpush1.msra.mxu0 0.0
        %2221 = vmatprep.subr.mxu0 0.0
        %2222 = vmatpush1.msra.mxu0 0.0
        %2223 = vmatprep.subr.mxu0 0.0
        %2224 = vmatpush1.msra.mxu0 0.0
        %2225 = vmatprep.subr.mxu0 0.0
        %2226 = vmatpush1.msra.mxu0 0.0
        %2227 = vmatprep.subr.mxu0 0.0
        %2228 = vmatpush1.msra.mxu0 0.0
        %2229 = vmatprep.subr.mxu0 0.0
        %2230 = vmatpush1.msra.mxu0 0.0
        %2231 = vmatprep.subr.mxu0 0.0
        %2232 = vmatpush1.msra.mxu0 0.0
        %2233 = vmatprep.subr.mxu0 0.0
        %2234 = vmatpush1.msra.mxu0 0.0
        %2235 = vmatprep.subr.mxu0 0.0
        %2236 = vmatpush1.msra.mxu0 0.0
        %2237 = vmatprep.subr.mxu0 0.0
        %2238 = vmatpush1.msra.mxu0 0.0
        %2239 = vmatprep.subr.mxu0 0.0
        %2240 = vmatpush1.msra.mxu0 0.0
        %2241 = vmatprep.subr.mxu0 0.0
        %2242 = vmatpush1.msra.mxu0 0.0
        %2243 = vmatprep.subr.mxu0 0.0
        %2244 = vmatpush1.msra.mxu0 0.0
        %2245 = vmatprep.mubr.f32.mxu0 0.0
        %2246 = vmatmul.mubr.f32.gmra.mrb[0].mxu0 %v1875
        %v2247 = vpop.f32.mrb[0].mxu0
        %v2248 = vadd.f32 0.0, %v2247
        %v2249 = vpop.f32.mrb[0].mxu0
        %v2250 = vadd.f32 0.0, %v2249
        %2251 = vdwg.mxu0
        %v2252 = vadd.f32 %v1539, %v1964
        %v2253 = vadd.f32 %v1541, %v1966
        %v2254 = vadd.f32 %v1610, %v2035
        %v2255 = vadd.f32 %v1612, %v2037
        %v2256 = vadd.f32 %v1681, %v2106
        %v2257 = vadd.f32 %v1683, %v2108
        %v2258 = vadd.f32 %v1752, %v2177
        %v2259 = vadd.f32 %v1754, %v2179
        %v2260 = vadd.f32 %v1823, %v2248
        %v2261 = vadd.f32 %v1825, %v2250
        %v2262 = vld [vmem:[#allocation2] sm:$0xff]
        %v2263 = vld [vmem:[#allocation2 + $0x8] sm:$0xff]
        %v2264 = vld [vmem:[#allocation2 + $0x10] sm:$0xff]
        %v2265 = vld [vmem:[#allocation2 + $0x18] sm:$0xff]
        %v2266 = vld [vmem:[#allocation2 + $0x20] sm:$0xff]
        %s2267 = scalar_lea.vmem %s2, 24
        %v2268 = vld [vmem:[%s2267] sm:$0xff]
        %v2274 = vcombine.high %v2262, %v2262
        %v2275 = vcombine.high %v2263, %v2263
        %v2276 = vcombine.high %v2264, %v2264
        %v2277 = vcombine.high %v2265, %v2265
        %v2278 = vcombine.high %v2266, %v2266
        %2279 = vrot.lane.b32.xlu0 %v2262, 92
        %v2280 = vpop.permute.xlu0 %2279
        %2281 = vrot.lane.b32.xlu0 %v2274, 92
        %v2282 = vpop.permute.xlu0 %2281
        %2283 = vrot.lane.b32.xlu0 %v2263, 92
        %v2284 = vpop.permute.xlu0 %2283
        %2285 = vrot.lane.b32.xlu0 %v2275, 92
        %v2286 = vpop.permute.xlu0 %2285
        %2287 = vrot.lane.b32.xlu0 %v2264, 92
        %v2288 = vpop.permute.xlu0 %2287
        %2289 = vrot.lane.b32.xlu0 %v2276, 92
        %v2290 = vpop.permute.xlu0 %2289
        %2291 = vrot.lane.b32.xlu0 %v2265, 92
        %v2292 = vpop.permute.xlu0 %2291
        %2293 = vrot.lane.b32.xlu0 %v2277, 92
        %v2294 = vpop.permute.xlu0 %2293
        %2295 = vrot.lane.b32.xlu0 %v2266, 92
        %v2296 = vpop.permute.xlu0 %2295
        %2297 = vrot.lane.b32.xlu0 %v2278, 92
        %v2298 = vpop.permute.xlu0 %2297
        %vm2299 = vcmask 752640
        %v2300 = vsel %vm2299, %v2280, %v2282
        %v2301 = vsel %vm2299, %v2282, %v2284
        %v2302 = vsel %vm2299, %v2284, %v2286
        %v2303 = vsel %vm2299, %v2286, %v2288
        %v2304 = vsel %vm2299, %v2288, %v2290
        %v2305 = vsel %vm2299, %v2290, %v2292
        %v2306 = vsel %vm2299, %v2292, %v2294
        %v2307 = vsel %vm2299, %v2294, %v2296
        %v2308 = vsel %vm2299, %v2296, %v2298
        %v2310 = vsel %vm1069, %v2268, 0
        %v2312 = vsel %vm1073, %v2300, 0
        %v2314 = vsel %vm1073, %v2301, 0
        %v2316 = vsel %vm1073, %v2302, 0
        %v2318 = vsel %vm1073, %v2303, 0
        %v2320 = vsel %vm1073, %v2304, 0
        %v2322 = vsel %vm1073, %v2305, 0
        %v2324 = vsel %vm1073, %v2306, 0
        %v2326 = vsel %vm1073, %v2307, 0
        %v2328 = vsel %vm1073, %v2308, 0
        %v2330 = vsel %vm1073, %v2298, 0
        %2332 = vmatprep.subr.mxu0 %v2314
        %2333 = vmatpush1.msra.mxu0 %v2312
        %2334 = vmatprep.subr.mxu0 0.0
        %2335 = vmatpush1.msra.mxu0 0.0
        %2336 = vmatprep.subr.mxu0 0.0
        %2337 = vmatpush1.msra.mxu0 0.0
        %2338 = vmatprep.subr.mxu0 0.0
        %2339 = vmatpush1.msra.mxu0 0.0
        %2340 = vmatprep.subr.mxu0 0.0
        %2341 = vmatpush1.msra.mxu0 0.0
        %2342 = vmatprep.subr.mxu0 0.0
        %2343 = vmatpush1.msra.mxu0 0.0
        %2344 = vmatprep.subr.mxu0 0.0
        %2345 = vmatpush1.msra.mxu0 0.0
        %2346 = vmatprep.subr.mxu0 0.0
        %2347 = vmatpush1.msra.mxu0 0.0
        %2348 = vmatprep.subr.mxu0 0.0
        %2349 = vmatpush1.msra.mxu0 0.0
        %2350 = vmatprep.subr.mxu0 0.0
        %2351 = vmatpush1.msra.mxu0 0.0
        %2352 = vmatprep.subr.mxu0 0.0
        %2353 = vmatpush1.msra.mxu0 0.0
        %2354 = vmatprep.subr.mxu0 0.0
        %2355 = vmatpush1.msra.mxu0 0.0
        %2356 = vmatprep.subr.mxu0 0.0
        %2357 = vmatpush1.msra.mxu0 0.0
        %2358 = vmatprep.subr.mxu0 0.0
        %2359 = vmatpush1.msra.mxu0 0.0
        %2360 = vmatprep.subr.mxu0 0.0
        %2361 = vmatpush1.msra.mxu0 0.0
        %2362 = vmatprep.subr.mxu0 0.0
        %2363 = vmatpush1.msra.mxu0 0.0
        %2364 = vmatprep.subr.mxu0 0.0
        %2365 = vmatpush1.msra.mxu0 0.0
        %2366 = vmatprep.subr.mxu0 0.0
        %2367 = vmatpush1.msra.mxu0 0.0
        %2368 = vmatprep.subr.mxu0 0.0
        %2369 = vmatpush1.msra.mxu0 0.0
        %2370 = vmatprep.subr.mxu0 0.0
        %2371 = vmatpush1.msra.mxu0 0.0
        %2372 = vmatprep.subr.mxu0 0.0
        %2373 = vmatpush1.msra.mxu0 0.0
        %2374 = vmatprep.subr.mxu0 0.0
        %2375 = vmatpush1.msra.mxu0 0.0
        %2376 = vmatprep.subr.mxu0 0.0
        %2377 = vmatpush1.msra.mxu0 0.0
        %2378 = vmatprep.subr.mxu0 0.0
        %2379 = vmatpush1.msra.mxu0 0.0
        %2380 = vmatprep.subr.mxu0 0.0
        %2381 = vmatpush1.msra.mxu0 0.0
        %2382 = vmatprep.subr.mxu0 0.0
        %2383 = vmatpush1.msra.mxu0 0.0
        %2384 = vmatprep.subr.mxu0 0.0
        %2385 = vmatpush1.msra.mxu0 0.0
        %2386 = vmatprep.subr.mxu0 0.0
        %2387 = vmatpush1.msra.mxu0 0.0
        %2388 = vmatprep.subr.mxu0 0.0
        %2389 = vmatpush1.msra.mxu0 0.0
        %2390 = vmatprep.subr.mxu0 0.0
        %2391 = vmatpush1.msra.mxu0 0.0
        %2392 = vmatprep.subr.mxu0 0.0
        %2393 = vmatpush1.msra.mxu0 0.0
        %2394 = vmatprep.subr.mxu0 0.0
        %2395 = vmatpush1.msra.mxu0 0.0
        %2396 = vmatprep.mubr.f32.mxu0 0.0
        %2397 = vmatmul.mubr.f32.gmra.mrb[0].mxu0 %v2310
        %v2398 = vpop.f32.mrb[0].mxu0
        %v2399 = vadd.f32 0.0, %v2398
        %v2400 = vpop.f32.mrb[0].mxu0
        %v2401 = vadd.f32 0.0, %v2400
        %2402 = vdwg.mxu0
        %2403 = vmatprep.subr.mxu0 %v2318
        %2404 = vmatpush1.msra.mxu0 %v2316
        %2405 = vmatprep.subr.mxu0 0.0
        %2406 = vmatpush1.msra.mxu0 0.0
        %2407 = vmatprep.subr.mxu0 0.0
        %2408 = vmatpush1.msra.mxu0 0.0
        %2409 = vmatprep.subr.mxu0 0.0
        %2410 = vmatpush1.msra.mxu0 0.0
        %2411 = vmatprep.subr.mxu0 0.0
        %2412 = vmatpush1.msra.mxu0 0.0
        %2413 = vmatprep.subr.mxu0 0.0
        %2414 = vmatpush1.msra.mxu0 0.0
        %2415 = vmatprep.subr.mxu0 0.0
        %2416 = vmatpush1.msra.mxu0 0.0
        %2417 = vmatprep.subr.mxu0 0.0
        %2418 = vmatpush1.msra.mxu0 0.0
        %2419 = vmatprep.subr.mxu0 0.0
        %2420 = vmatpush1.msra.mxu0 0.0
        %2421 = vmatprep.subr.mxu0 0.0
        %2422 = vmatpush1.msra.mxu0 0.0
        %2423 = vmatprep.subr.mxu0 0.0
        %2424 = vmatpush1.msra.mxu0 0.0
        %2425 = vmatprep.subr.mxu0 0.0
        %2426 = vmatpush1.msra.mxu0 0.0
        %2427 = vmatprep.subr.mxu0 0.0
        %2428 = vmatpush1.msra.mxu0 0.0
        %2429 = vmatprep.subr.mxu0 0.0
        %2430 = vmatpush1.msra.mxu0 0.0
        %2431 = vmatprep.subr.mxu0 0.0
        %2432 = vmatpush1.msra.mxu0 0.0
        %2433 = vmatprep.subr.mxu0 0.0
        %2434 = vmatpush1.msra.mxu0 0.0
        %2435 = vmatprep.subr.mxu0 0.0
        %2436 = vmatpush1.msra.mxu0 0.0
        %2437 = vmatprep.subr.mxu0 0.0
        %2438 = vmatpush1.msra.mxu0 0.0
        %2439 = vmatprep.subr.mxu0 0.0
        %2440 = vmatpush1.msra.mxu0 0.0
        %2441 = vmatprep.subr.mxu0 0.0
        %2442 = vmatpush1.msra.mxu0 0.0
        %2443 = vmatprep.subr.mxu0 0.0
        %2444 = vmatpush1.msra.mxu0 0.0
        %2445 = vmatprep.subr.mxu0 0.0
        %2446 = vmatpush1.msra.mxu0 0.0
        %2447 = vmatprep.subr.mxu0 0.0
        %2448 = vmatpush1.msra.mxu0 0.0
        %2449 = vmatprep.subr.mxu0 0.0
        %2450 = vmatpush1.msra.mxu0 0.0
        %2451 = vmatprep.subr.mxu0 0.0
        %2452 = vmatpush1.msra.mxu0 0.0
        %2453 = vmatprep.subr.mxu0 0.0
        %2454 = vmatpush1.msra.mxu0 0.0
        %2455 = vmatprep.subr.mxu0 0.0
        %2456 = vmatpush1.msra.mxu0 0.0
        %2457 = vmatprep.subr.mxu0 0.0
        %2458 = vmatpush1.msra.mxu0 0.0
        %2459 = vmatprep.subr.mxu0 0.0
        %2460 = vmatpush1.msra.mxu0 0.0
        %2461 = vmatprep.subr.mxu0 0.0
        %2462 = vmatpush1.msra.mxu0 0.0
        %2463 = vmatprep.subr.mxu0 0.0
        %2464 = vmatpush1.msra.mxu0 0.0
        %2465 = vmatprep.subr.mxu0 0.0
        %2466 = vmatpush1.msra.mxu0 0.0
        %2467 = vmatprep.mubr.f32.mxu0 0.0
        %2468 = vmatmul.mubr.f32.gmra.mrb[0].mxu0 %v2310
        %v2469 = vpop.f32.mrb[0].mxu0
        %v2470 = vadd.f32 0.0, %v2469
        %v2471 = vpop.f32.mrb[0].mxu0
        %v2472 = vadd.f32 0.0, %v2471
        %2473 = vdwg.mxu0
        %2474 = vmatprep.subr.mxu0 %v2322
        %2475 = vmatpush1.msra.mxu0 %v2320
        %2476 = vmatprep.subr.mxu0 0.0
        %2477 = vmatpush1.msra.mxu0 0.0
        %2478 = vmatprep.subr.mxu0 0.0
        %2479 = vmatpush1.msra.mxu0 0.0
        %2480 = vmatprep.subr.mxu0 0.0
        %2481 = vmatpush1.msra.mxu0 0.0
        %2482 = vmatprep.subr.mxu0 0.0
        %2483 = vmatpush1.msra.mxu0 0.0
        %2484 = vmatprep.subr.mxu0 0.0
        %2485 = vmatpush1.msra.mxu0 0.0
        %2486 = vmatprep.subr.mxu0 0.0
        %2487 = vmatpush1.msra.mxu0 0.0
        %2488 = vmatprep.subr.mxu0 0.0
        %2489 = vmatpush1.msra.mxu0 0.0
        %2490 = vmatprep.subr.mxu0 0.0
        %2491 = vmatpush1.msra.mxu0 0.0
        %2492 = vmatprep.subr.mxu0 0.0
        %2493 = vmatpush1.msra.mxu0 0.0
        %2494 = vmatprep.subr.mxu0 0.0
        %2495 = vmatpush1.msra.mxu0 0.0
        %2496 = vmatprep.subr.mxu0 0.0
        %2497 = vmatpush1.msra.mxu0 0.0
        %2498 = vmatprep.subr.mxu0 0.0
        %2499 = vmatpush1.msra.mxu0 0.0
        %2500 = vmatprep.subr.mxu0 0.0
        %2501 = vmatpush1.msra.mxu0 0.0
        %2502 = vmatprep.subr.mxu0 0.0
        %2503 = vmatpush1.msra.mxu0 0.0
        %2504 = vmatprep.subr.mxu0 0.0
        %2505 = vmatpush1.msra.mxu0 0.0
        %2506 = vmatprep.subr.mxu0 0.0
        %2507 = vmatpush1.msra.mxu0 0.0
        %2508 = vmatprep.subr.mxu0 0.0
        %2509 = vmatpush1.msra.mxu0 0.0
        %2510 = vmatprep.subr.mxu0 0.0
        %2511 = vmatpush1.msra.mxu0 0.0
        %2512 = vmatprep.subr.mxu0 0.0
        %2513 = vmatpush1.msra.mxu0 0.0
        %2514 = vmatprep.subr.mxu0 0.0
        %2515 = vmatpush1.msra.mxu0 0.0
        %2516 = vmatprep.subr.mxu0 0.0
        %2517 = vmatpush1.msra.mxu0 0.0
        %2518 = vmatprep.subr.mxu0 0.0
        %2519 = vmatpush1.msra.mxu0 0.0
        %2520 = vmatprep.subr.mxu0 0.0
        %2521 = vmatpush1.msra.mxu0 0.0
        %2522 = vmatprep.subr.mxu0 0.0
        %2523 = vmatpush1.msra.mxu0 0.0
        %2524 = vmatprep.subr.mxu0 0.0
        %2525 = vmatpush1.msra.mxu0 0.0
        %2526 = vmatprep.subr.mxu0 0.0
        %2527 = vmatpush1.msra.mxu0 0.0
        %2528 = vmatprep.subr.mxu0 0.0
        %2529 = vmatpush1.msra.mxu0 0.0
        %2530 = vmatprep.subr.mxu0 0.0
        %2531 = vmatpush1.msra.mxu0 0.0
        %2532 = vmatprep.subr.mxu0 0.0
        %2533 = vmatpush1.msra.mxu0 0.0
        %2534 = vmatprep.subr.mxu0 0.0
        %2535 = vmatpush1.msra.mxu0 0.0
        %2536 = vmatprep.subr.mxu0 0.0
        %2537 = vmatpush1.msra.mxu0 0.0
        %2538 = vmatprep.mubr.f32.mxu0 0.0
        %2539 = vmatmul.mubr.f32.gmra.mrb[0].mxu0 %v2310
        %v2540 = vpop.f32.mrb[0].mxu0
        %v2541 = vadd.f32 0.0, %v2540
        %v2542 = vpop.f32.mrb[0].mxu0
        %v2543 = vadd.f32 0.0, %v2542
        %2544 = vdwg.mxu0
        %2545 = vmatprep.subr.mxu0 %v2326
        %2546 = vmatpush1.msra.mxu0 %v2324
        %2547 = vmatprep.subr.mxu0 0.0
        %2548 = vmatpush1.msra.mxu0 0.0
        %2549 = vmatprep.subr.mxu0 0.0
        %2550 = vmatpush1.msra.mxu0 0.0
        %2551 = vmatprep.subr.mxu0 0.0
        %2552 = vmatpush1.msra.mxu0 0.0
        %2553 = vmatprep.subr.mxu0 0.0
        %2554 = vmatpush1.msra.mxu0 0.0
        %2555 = vmatprep.subr.mxu0 0.0
        %2556 = vmatpush1.msra.mxu0 0.0
        %2557 = vmatprep.subr.mxu0 0.0
        %2558 = vmatpush1.msra.mxu0 0.0
        %2559 = vmatprep.subr.mxu0 0.0
        %2560 = vmatpush1.msra.mxu0 0.0
        %2561 = vmatprep.subr.mxu0 0.0
        %2562 = vmatpush1.msra.mxu0 0.0
        %2563 = vmatprep.subr.mxu0 0.0
        %2564 = vmatpush1.msra.mxu0 0.0
        %2565 = vmatprep.subr.mxu0 0.0
        %2566 = vmatpush1.msra.mxu0 0.0
        %2567 = vmatprep.subr.mxu0 0.0
        %2568 = vmatpush1.msra.mxu0 0.0
        %2569 = vmatprep.subr.mxu0 0.0
        %2570 = vmatpush1.msra.mxu0 0.0
        %2571 = vmatprep.subr.mxu0 0.0
        %2572 = vmatpush1.msra.mxu0 0.0
        %2573 = vmatprep.subr.mxu0 0.0
        %2574 = vmatpush1.msra.mxu0 0.0
        %2575 = vmatprep.subr.mxu0 0.0
        %2576 = vmatpush1.msra.mxu0 0.0
        %2577 = vmatprep.subr.mxu0 0.0
        %2578 = vmatpush1.msra.mxu0 0.0
        %2579 = vmatprep.subr.mxu0 0.0
        %2580 = vmatpush1.msra.mxu0 0.0
        %2581 = vmatprep.subr.mxu0 0.0
        %2582 = vmatpush1.msra.mxu0 0.0
        %2583 = vmatprep.subr.mxu0 0.0
        %2584 = vmatpush1.msra.mxu0 0.0
        %2585 = vmatprep.subr.mxu0 0.0
        %2586 = vmatpush1.msra.mxu0 0.0
        %2587 = vmatprep.subr.mxu0 0.0
        %2588 = vmatpush1.msra.mxu0 0.0
        %2589 = vmatprep.subr.mxu0 0.0
        %2590 = vmatpush1.msra.mxu0 0.0
        %2591 = vmatprep.subr.mxu0 0.0
        %2592 = vmatpush1.msra.mxu0 0.0
        %2593 = vmatprep.subr.mxu0 0.0
        %2594 = vmatpush1.msra.mxu0 0.0
        %2595 = vmatprep.subr.mxu0 0.0
        %2596 = vmatpush1.msra.mxu0 0.0
        %2597 = vmatprep.subr.mxu0 0.0
        %2598 = vmatpush1.msra.mxu0 0.0
        %2599 = vmatprep.subr.mxu0 0.0
        %2600 = vmatpush1.msra.mxu0 0.0
        %2601 = vmatprep.subr.mxu0 0.0
        %2602 = vmatpush1.msra.mxu0 0.0
        %2603 = vmatprep.subr.mxu0 0.0
        %2604 = vmatpush1.msra.mxu0 0.0
        %2605 = vmatprep.subr.mxu0 0.0
        %2606 = vmatpush1.msra.mxu0 0.0
        %2607 = vmatprep.subr.mxu0 0.0
        %2608 = vmatpush1.msra.mxu0 0.0
        %2609 = vmatprep.mubr.f32.mxu0 0.0
        %2610 = vmatmul.mubr.f32.gmra.mrb[0].mxu0 %v2310
        %v2611 = vpop.f32.mrb[0].mxu0
        %v2612 = vadd.f32 0.0, %v2611
        %v2613 = vpop.f32.mrb[0].mxu0
        %v2614 = vadd.f32 0.0, %v2613
        %2615 = vdwg.mxu0
        %2616 = vmatprep.subr.mxu0 %v2330
        %2617 = vmatpush1.msra.mxu0 %v2328
        %2618 = vmatprep.subr.mxu0 0.0
        %2619 = vmatpush1.msra.mxu0 0.0
        %2620 = vmatprep.subr.mxu0 0.0
        %2621 = vmatpush1.msra.mxu0 0.0
        %2622 = vmatprep.subr.mxu0 0.0
        %2623 = vmatpush1.msra.mxu0 0.0
        %2624 = vmatprep.subr.mxu0 0.0
        %2625 = vmatpush1.msra.mxu0 0.0
        %2626 = vmatprep.subr.mxu0 0.0
        %2627 = vmatpush1.msra.mxu0 0.0
        %2628 = vmatprep.subr.mxu0 0.0
        %2629 = vmatpush1.msra.mxu0 0.0
        %2630 = vmatprep.subr.mxu0 0.0
        %2631 = vmatpush1.msra.mxu0 0.0
        %2632 = vmatprep.subr.mxu0 0.0
        %2633 = vmatpush1.msra.mxu0 0.0
        %2634 = vmatprep.subr.mxu0 0.0
        %2635 = vmatpush1.msra.mxu0 0.0
        %2636 = vmatprep.subr.mxu0 0.0
        %2637 = vmatpush1.msra.mxu0 0.0
        %2638 = vmatprep.subr.mxu0 0.0
        %2639 = vmatpush1.msra.mxu0 0.0
        %2640 = vmatprep.subr.mxu0 0.0
        %2641 = vmatpush1.msra.mxu0 0.0
        %2642 = vmatprep.subr.mxu0 0.0
        %2643 = vmatpush1.msra.mxu0 0.0
        %2644 = vmatprep.subr.mxu0 0.0
        %2645 = vmatpush1.msra.mxu0 0.0
        %2646 = vmatprep.subr.mxu0 0.0
        %2647 = vmatpush1.msra.mxu0 0.0
        %2648 = vmatprep.subr.mxu0 0.0
        %2649 = vmatpush1.msra.mxu0 0.0
        %2650 = vmatprep.subr.mxu0 0.0
        %2651 = vmatpush1.msra.mxu0 0.0
        %2652 = vmatprep.subr.mxu0 0.0
        %2653 = vmatpush1.msra.mxu0 0.0
        %2654 = vmatprep.subr.mxu0 0.0
        %2655 = vmatpush1.msra.mxu0 0.0
        %2656 = vmatprep.subr.mxu0 0.0
        %2657 = vmatpush1.msra.mxu0 0.0
        %2658 = vmatprep.subr.mxu0 0.0
        %2659 = vmatpush1.msra.mxu0 0.0
        %2660 = vmatprep.subr.mxu0 0.0
        %2661 = vmatpush1.msra.mxu0 0.0
        %2662 = vmatprep.subr.mxu0 0.0
        %2663 = vmatpush1.msra.mxu0 0.0
        %2664 = vmatprep.subr.mxu0 0.0
        %2665 = vmatpush1.msra.mxu0 0.0
        %2666 = vmatprep.subr.mxu0 0.0
        %2667 = vmatpush1.msra.mxu0 0.0
        %2668 = vmatprep.subr.mxu0 0.0
        %2669 = vmatpush1.msra.mxu0 0.0
        %2670 = vmatprep.subr.mxu0 0.0
        %2671 = vmatpush1.msra.mxu0 0.0
        %2672 = vmatprep.subr.mxu0 0.0
        %2673 = vmatpush1.msra.mxu0 0.0
        %2674 = vmatprep.subr.mxu0 0.0
        %2675 = vmatpush1.msra.mxu0 0.0
        %2676 = vmatprep.subr.mxu0 0.0
        %2677 = vmatpush1.msra.mxu0 0.0
        %2678 = vmatprep.subr.mxu0 0.0
        %2679 = vmatpush1.msra.mxu0 0.0
        %2680 = vmatprep.mubr.f32.mxu0 0.0
        %2681 = vmatmul.mubr.f32.gmra.mrb[0].mxu0 %v2310
        %v2682 = vpop.f32.mrb[0].mxu0
        %v2683 = vadd.f32 0.0, %v2682
        %v2684 = vpop.f32.mrb[0].mxu0
        %v2685 = vadd.f32 0.0, %v2684
        %2686 = vdwg.mxu0
        %v2687 = vadd.f32 %v2252, %v2399
        %v2688 = vadd.f32 %v2253, %v2401
        %v2689 = vadd.f32 %v2254, %v2470
        %v2690 = vadd.f32 %v2255, %v2472
        %v2691 = vadd.f32 %v2256, %v2541
        %v2692 = vadd.f32 %v2257, %v2543
        %v2693 = vadd.f32 %v2258, %v2612
        %v2694 = vadd.f32 %v2259, %v2614
        %v2695 = vadd.f32 %v2260, %v2683
        %v2696 = vadd.f32 %v2261, %v2685
        %v2697 = vld [vmem:[#allocation2] sm:$0xff]
        %v2698 = vld [vmem:[#allocation2 + $0x8] sm:$0xff]
        %v2699 = vld [vmem:[#allocation2 + $0x10] sm:$0xff]
        %v2700 = vld [vmem:[#allocation2 + $0x18] sm:$0xff]
        %v2701 = vld [vmem:[#allocation2 + $0x20] sm:$0xff]
        %s2702 = scalar_lea.vmem %s2, 32
        %v2703 = vld [vmem:[%s2702] sm:$0xff]
        %v2709 = vcombine.high %v2697, %v2697
        %v2710 = vcombine.high %v2698, %v2698
        %v2711 = vcombine.high %v2699, %v2699
        %v2712 = vcombine.high %v2700, %v2700
        %v2713 = vcombine.high %v2701, %v2701
        %2714 = vrot.lane.b32.xlu0 %v2697, 91
        %v2715 = vpop.permute.xlu0 %2714
        %2716 = vrot.lane.b32.xlu0 %v2709, 91
        %v2717 = vpop.permute.xlu0 %2716
        %2718 = vrot.lane.b32.xlu0 %v2698, 91
        %v2719 = vpop.permute.xlu0 %2718
        %2720 = vrot.lane.b32.xlu0 %v2710, 91
        %v2721 = vpop.permute.xlu0 %2720
        %2722 = vrot.lane.b32.xlu0 %v2699, 91
        %v2723 = vpop.permute.xlu0 %2722
        %2724 = vrot.lane.b32.xlu0 %v2711, 91
        %v2725 = vpop.permute.xlu0 %2724
        %2726 = vrot.lane.b32.xlu0 %v2700, 91
        %v2727 = vpop.permute.xlu0 %2726
        %2728 = vrot.lane.b32.xlu0 %v2712, 91
        %v2729 = vpop.permute.xlu0 %2728
        %2730 = vrot.lane.b32.xlu0 %v2701, 91
        %v2731 = vpop.permute.xlu0 %2730
        %2732 = vrot.lane.b32.xlu0 %v2713, 91
        %v2733 = vpop.permute.xlu0 %2732
        %vm2734 = vcmask 744448
        %v2735 = vsel %vm2734, %v2715, %v2717
        %v2736 = vsel %vm2734, %v2717, %v2719
        %v2737 = vsel %vm2734, %v2719, %v2721
        %v2738 = vsel %vm2734, %v2721, %v2723
        %v2739 = vsel %vm2734, %v2723, %v2725
        %v2740 = vsel %vm2734, %v2725, %v2727
        %v2741 = vsel %vm2734, %v2727, %v2729
        %v2742 = vsel %vm2734, %v2729, %v2731
        %v2743 = vsel %vm2734, %v2731, %v2733
        %v2745 = vsel %vm1069, %v2703, 0
        %v2747 = vsel %vm1073, %v2735, 0
        %v2749 = vsel %vm1073, %v2736, 0
        %v2751 = vsel %vm1073, %v2737, 0
        %v2753 = vsel %vm1073, %v2738, 0
        %v2755 = vsel %vm1073, %v2739, 0
        %v2757 = vsel %vm1073, %v2740, 0
        %v2759 = vsel %vm1073, %v2741, 0
        %v2761 = vsel %vm1073, %v2742, 0
        %v2763 = vsel %vm1073, %v2743, 0
        %v2765 = vsel %vm1073, %v2733, 0
        %2767 = vmatprep.subr.mxu0 %v2749
        %2768 = vmatpush1.msra.mxu0 %v2747
        %2769 = vmatprep.subr.mxu0 0.0
        %2770 = vmatpush1.msra.mxu0 0.0
        %2771 = vmatprep.subr.mxu0 0.0
        %2772 = vmatpush1.msra.mxu0 0.0
        %2773 = vmatprep.subr.mxu0 0.0
        %2774 = vmatpush1.msra.mxu0 0.0
        %2775 = vmatprep.subr.mxu0 0.0
        %2776 = vmatpush1.msra.mxu0 0.0
        %2777 = vmatprep.subr.mxu0 0.0
        %2778 = vmatpush1.msra.mxu0 0.0
        %2779 = vmatprep.subr.mxu0 0.0
        %2780 = vmatpush1.msra.mxu0 0.0
        %2781 = vmatprep.subr.mxu0 0.0
        %2782 = vmatpush1.msra.mxu0 0.0
        %2783 = vmatprep.subr.mxu0 0.0
        %2784 = vmatpush1.msra.mxu0 0.0
        %2785 = vmatprep.subr.mxu0 0.0
        %2786 = vmatpush1.msra.mxu0 0.0
        %2787 = vmatprep.subr.mxu0 0.0
        %2788 = vmatpush1.msra.mxu0 0.0
        %2789 = vmatprep.subr.mxu0 0.0
        %2790 = vmatpush1.msra.mxu0 0.0
        %2791 = vmatprep.subr.mxu0 0.0
        %2792 = vmatpush1.msra.mxu0 0.0
        %2793 = vmatprep.subr.mxu0 0.0
        %2794 = vmatpush1.msra.mxu0 0.0
        %2795 = vmatprep.subr.mxu0 0.0
        %2796 = vmatpush1.msra.mxu0 0.0
        %2797 = vmatprep.subr.mxu0 0.0
        %2798 = vmatpush1.msra.mxu0 0.0
        %2799 = vmatprep.subr.mxu0 0.0
        %2800 = vmatpush1.msra.mxu0 0.0
        %2801 = vmatprep.subr.mxu0 0.0
        %2802 = vmatpush1.msra.mxu0 0.0
        %2803 = vmatprep.subr.mxu0 0.0
        %2804 = vmatpush1.msra.mxu0 0.0
        %2805 = vmatprep.subr.mxu0 0.0
        %2806 = vmatpush1.msra.mxu0 0.0
        %2807 = vmatprep.subr.mxu0 0.0
        %2808 = vmatpush1.msra.mxu0 0.0
        %2809 = vmatprep.subr.mxu0 0.0
        %2810 = vmatpush1.msra.mxu0 0.0
        %2811 = vmatprep.subr.mxu0 0.0
        %2812 = vmatpush1.msra.mxu0 0.0
        %2813 = vmatprep.subr.mxu0 0.0
        %2814 = vmatpush1.msra.mxu0 0.0
        %2815 = vmatprep.subr.mxu0 0.0
        %2816 = vmatpush1.msra.mxu0 0.0
        %2817 = vmatprep.subr.mxu0 0.0
        %2818 = vmatpush1.msra.mxu0 0.0
        %2819 = vmatprep.subr.mxu0 0.0
        %2820 = vmatpush1.msra.mxu0 0.0
        %2821 = vmatprep.subr.mxu0 0.0
        %2822 = vmatpush1.msra.mxu0 0.0
        %2823 = vmatprep.subr.mxu0 0.0
        %2824 = vmatpush1.msra.mxu0 0.0
        %2825 = vmatprep.subr.mxu0 0.0
        %2826 = vmatpush1.msra.mxu0 0.0
        %2827 = vmatprep.subr.mxu0 0.0
        %2828 = vmatpush1.msra.mxu0 0.0
        %2829 = vmatprep.subr.mxu0 0.0
        %2830 = vmatpush1.msra.mxu0 0.0
        %2831 = vmatprep.mubr.f32.mxu0 0.0
        %2832 = vmatmul.mubr.f32.gmra.mrb[0].mxu0 %v2745
        %v2833 = vpop.f32.mrb[0].mxu0
        %v2834 = vadd.f32 0.0, %v2833
        %v2835 = vpop.f32.mrb[0].mxu0
        %v2836 = vadd.f32 0.0, %v2835
        %2837 = vdwg.mxu0
        %2838 = vmatprep.subr.mxu0 %v2753
        %2839 = vmatpush1.msra.mxu0 %v2751
        %2840 = vmatprep.subr.mxu0 0.0
        %2841 = vmatpush1.msra.mxu0 0.0
        %2842 = vmatprep.subr.mxu0 0.0
        %2843 = vmatpush1.msra.mxu0 0.0
        %2844 = vmatprep.subr.mxu0 0.0
        %2845 = vmatpush1.msra.mxu0 0.0
        %2846 = vmatprep.subr.mxu0 0.0
        %2847 = vmatpush1.msra.mxu0 0.0
        %2848 = vmatprep.subr.mxu0 0.0
        %2849 = vmatpush1.msra.mxu0 0.0
        %2850 = vmatprep.subr.mxu0 0.0
        %2851 = vmatpush1.msra.mxu0 0.0
        %2852 = vmatprep.subr.mxu0 0.0
        %2853 = vmatpush1.msra.mxu0 0.0
        %2854 = vmatprep.subr.mxu0 0.0
        %2855 = vmatpush1.msra.mxu0 0.0
        %2856 = vmatprep.subr.mxu0 0.0
        %2857 = vmatpush1.msra.mxu0 0.0
        %2858 = vmatprep.subr.mxu0 0.0
        %2859 = vmatpush1.msra.mxu0 0.0
        %2860 = vmatprep.subr.mxu0 0.0
        %2861 = vmatpush1.msra.mxu0 0.0
        %2862 = vmatprep.subr.mxu0 0.0
        %2863 = vmatpush1.msra.mxu0 0.0
        %2864 = vmatprep.subr.mxu0 0.0
        %2865 = vmatpush1.msra.mxu0 0.0
        %2866 = vmatprep.subr.mxu0 0.0
        %2867 = vmatpush1.msra.mxu0 0.0
        %2868 = vmatprep.subr.mxu0 0.0
        %2869 = vmatpush1.msra.mxu0 0.0
        %2870 = vmatprep.subr.mxu0 0.0
        %2871 = vmatpush1.msra.mxu0 0.0
        %2872 = vmatprep.subr.mxu0 0.0
        %2873 = vmatpush1.msra.mxu0 0.0
        %2874 = vmatprep.subr.mxu0 0.0
        %2875 = vmatpush1.msra.mxu0 0.0
        %2876 = vmatprep.subr.mxu0 0.0
        %2877 = vmatpush1.msra.mxu0 0.0
        %2878 = vmatprep.subr.mxu0 0.0
        %2879 = vmatpush1.msra.mxu0 0.0
        %2880 = vmatprep.subr.mxu0 0.0
        %2881 = vmatpush1.msra.mxu0 0.0
        %2882 = vmatprep.subr.mxu0 0.0
        %2883 = vmatpush1.msra.mxu0 0.0
        %2884 = vmatprep.subr.mxu0 0.0
        %2885 = vmatpush1.msra.mxu0 0.0
        %2886 = vmatprep.subr.mxu0 0.0
        %2887 = vmatpush1.msra.mxu0 0.0
        %2888 = vmatprep.subr.mxu0 0.0
        %2889 = vmatpush1.msra.mxu0 0.0
        %2890 = vmatprep.subr.mxu0 0.0
        %2891 = vmatpush1.msra.mxu0 0.0
        %2892 = vmatprep.subr.mxu0 0.0
        %2893 = vmatpush1.msra.mxu0 0.0
        %2894 = vmatprep.subr.mxu0 0.0
        %2895 = vmatpush1.msra.mxu0 0.0
        %2896 = vmatprep.subr.mxu0 0.0
        %2897 = vmatpush1.msra.mxu0 0.0
        %2898 = vmatprep.subr.mxu0 0.0
        %2899 = vmatpush1.msra.mxu0 0.0
        %2900 = vmatprep.subr.mxu0 0.0
        %2901 = vmatpush1.msra.mxu0 0.0
        %2902 = vmatprep.mubr.f32.mxu0 0.0
        %2903 = vmatmul.mubr.f32.gmra.mrb[0].mxu0 %v2745
        %v2904 = vpop.f32.mrb[0].mxu0
        %v2905 = vadd.f32 0.0, %v2904
        %v2906 = vpop.f32.mrb[0].mxu0
        %v2907 = vadd.f32 0.0, %v2906
        %2908 = vdwg.mxu0
        %2909 = vmatprep.subr.mxu0 %v2757
        %2910 = vmatpush1.msra.mxu0 %v2755
        %2911 = vmatprep.subr.mxu0 0.0
        %2912 = vmatpush1.msra.mxu0 0.0
        %2913 = vmatprep.subr.mxu0 0.0
        %2914 = vmatpush1.msra.mxu0 0.0
        %2915 = vmatprep.subr.mxu0 0.0
        %2916 = vmatpush1.msra.mxu0 0.0
        %2917 = vmatprep.subr.mxu0 0.0
        %2918 = vmatpush1.msra.mxu0 0.0
        %2919 = vmatprep.subr.mxu0 0.0
        %2920 = vmatpush1.msra.mxu0 0.0
        %2921 = vmatprep.subr.mxu0 0.0
        %2922 = vmatpush1.msra.mxu0 0.0
        %2923 = vmatprep.subr.mxu0 0.0
        %2924 = vmatpush1.msra.mxu0 0.0
        %2925 = vmatprep.subr.mxu0 0.0
        %2926 = vmatpush1.msra.mxu0 0.0
        %2927 = vmatprep.subr.mxu0 0.0
        %2928 = vmatpush1.msra.mxu0 0.0
        %2929 = vmatprep.subr.mxu0 0.0
        %2930 = vmatpush1.msra.mxu0 0.0
        %2931 = vmatprep.subr.mxu0 0.0
        %2932 = vmatpush1.msra.mxu0 0.0
        %2933 = vmatprep.subr.mxu0 0.0
        %2934 = vmatpush1.msra.mxu0 0.0
        %2935 = vmatprep.subr.mxu0 0.0
        %2936 = vmatpush1.msra.mxu0 0.0
        %2937 = vmatprep.subr.mxu0 0.0
        %2938 = vmatpush1.msra.mxu0 0.0
        %2939 = vmatprep.subr.mxu0 0.0
        %2940 = vmatpush1.msra.mxu0 0.0
        %2941 = vmatprep.subr.mxu0 0.0
        %2942 = vmatpush1.msra.mxu0 0.0
        %2943 = vmatprep.subr.mxu0 0.0
        %2944 = vmatpush1.msra.mxu0 0.0
        %2945 = vmatprep.subr.mxu0 0.0
        %2946 = vmatpush1.msra.mxu0 0.0
        %2947 = vmatprep.subr.mxu0 0.0
        %2948 = vmatpush1.msra.mxu0 0.0
        %2949 = vmatprep.subr.mxu0 0.0
        %2950 = vmatpush1.msra.mxu0 0.0
        %2951 = vmatprep.subr.mxu0 0.0
        %2952 = vmatpush1.msra.mxu0 0.0
        %2953 = vmatprep.subr.mxu0 0.0
        %2954 = vmatpush1.msra.mxu0 0.0
        %2955 = vmatprep.subr.mxu0 0.0
        %2956 = vmatpush1.msra.mxu0 0.0
        %2957 = vmatprep.subr.mxu0 0.0
        %2958 = vmatpush1.msra.mxu0 0.0
        %2959 = vmatprep.subr.mxu0 0.0
        %2960 = vmatpush1.msra.mxu0 0.0
        %2961 = vmatprep.subr.mxu0 0.0
        %2962 = vmatpush1.msra.mxu0 0.0
        %2963 = vmatprep.subr.mxu0 0.0
        %2964 = vmatpush1.msra.mxu0 0.0
        %2965 = vmatprep.subr.mxu0 0.0
        %2966 = vmatpush1.msra.mxu0 0.0
        %2967 = vmatprep.subr.mxu0 0.0
        %2968 = vmatpush1.msra.mxu0 0.0
        %2969 = vmatprep.subr.mxu0 0.0
        %2970 = vmatpush1.msra.mxu0 0.0
        %2971 = vmatprep.subr.mxu0 0.0
        %2972 = vmatpush1.msra.mxu0 0.0
        %2973 = vmatprep.mubr.f32.mxu0 0.0
        %2974 = vmatmul.mubr.f32.gmra.mrb[0].mxu0 %v2745
        %v2975 = vpop.f32.mrb[0].mxu0
        %v2976 = vadd.f32 0.0, %v2975
        %v2977 = vpop.f32.mrb[0].mxu0
        %v2978 = vadd.f32 0.0, %v2977
        %2979 = vdwg.mxu0
        %2980 = vmatprep.subr.mxu0 %v2761
        %2981 = vmatpush1.msra.mxu0 %v2759
        %2982 = vmatprep.subr.mxu0 0.0
        %2983 = vmatpush1.msra.mxu0 0.0
        %2984 = vmatprep.subr.mxu0 0.0
        %2985 = vmatpush1.msra.mxu0 0.0
        %2986 = vmatprep.subr.mxu0 0.0
        %2987 = vmatpush1.msra.mxu0 0.0
        %2988 = vmatprep.subr.mxu0 0.0
        %2989 = vmatpush1.msra.mxu0 0.0
        %2990 = vmatprep.subr.mxu0 0.0
        %2991 = vmatpush1.msra.mxu0 0.0
        %2992 = vmatprep.subr.mxu0 0.0
        %2993 = vmatpush1.msra.mxu0 0.0
        %2994 = vmatprep.subr.mxu0 0.0
        %2995 = vmatpush1.msra.mxu0 0.0
        %2996 = vmatprep.subr.mxu0 0.0
        %2997 = vmatpush1.msra.mxu0 0.0
        %2998 = vmatprep.subr.mxu0 0.0
        %2999 = vmatpush1.msra.mxu0 0.0
        %3000 = vmatprep.subr.mxu0 0.0
        %3001 = vmatpush1.msra.mxu0 0.0
        %3002 = vmatprep.subr.mxu0 0.0
        %3003 = vmatpush1.msra.mxu0 0.0
        %3004 = vmatprep.subr.mxu0 0.0
        %3005 = vmatpush1.msra.mxu0 0.0
        %3006 = vmatprep.subr.mxu0 0.0
        %3007 = vmatpush1.msra.mxu0 0.0
        %3008 = vmatprep.subr.mxu0 0.0
        %3009 = vmatpush1.msra.mxu0 0.0
        %3010 = vmatprep.subr.mxu0 0.0
        %3011 = vmatpush1.msra.mxu0 0.0
        %3012 = vmatprep.subr.mxu0 0.0
        %3013 = vmatpush1.msra.mxu0 0.0
        %3014 = vmatprep.subr.mxu0 0.0
        %3015 = vmatpush1.msra.mxu0 0.0
        %3016 = vmatprep.subr.mxu0 0.0
        %3017 = vmatpush1.msra.mxu0 0.0
        %3018 = vmatprep.subr.mxu0 0.0
        %3019 = vmatpush1.msra.mxu0 0.0
        %3020 = vmatprep.subr.mxu0 0.0
        %3021 = vmatpush1.msra.mxu0 0.0
        %3022 = vmatprep.subr.mxu0 0.0
        %3023 = vmatpush1.msra.mxu0 0.0
        %3024 = vmatprep.subr.mxu0 0.0
        %3025 = vmatpush1.msra.mxu0 0.0
        %3026 = vmatprep.subr.mxu0 0.0
        %3027 = vmatpush1.msra.mxu0 0.0
        %3028 = vmatprep.subr.mxu0 0.0
        %3029 = vmatpush1.msra.mxu0 0.0
        %3030 = vmatprep.subr.mxu0 0.0
        %3031 = vmatpush1.msra.mxu0 0.0
        %3032 = vmatprep.subr.mxu0 0.0
        %3033 = vmatpush1.msra.mxu0 0.0
        %3034 = vmatprep.subr.mxu0 0.0
        %3035 = vmatpush1.msra.mxu0 0.0
        %3036 = vmatprep.subr.mxu0 0.0
        %3037 = vmatpush1.msra.mxu0 0.0
        %3038 = vmatprep.subr.mxu0 0.0
        %3039 = vmatpush1.msra.mxu0 0.0
        %3040 = vmatprep.subr.mxu0 0.0
        %3041 = vmatpush1.msra.mxu0 0.0
        %3042 = vmatprep.subr.mxu0 0.0
        %3043 = vmatpush1.msra.mxu0 0.0
        %3044 = vmatprep.mubr.f32.mxu0 0.0
        %3045 = vmatmul.mubr.f32.gmra.mrb[0].mxu0 %v2745
        %v3046 = vpop.f32.mrb[0].mxu0
        %v3047 = vadd.f32 0.0, %v3046
        %v3048 = vpop.f32.mrb[0].mxu0
        %v3049 = vadd.f32 0.0, %v3048
        %3050 = vdwg.mxu0
        %3051 = vmatprep.subr.mxu0 %v2765
        %3052 = vmatpush1.msra.mxu0 %v2763
        %3053 = vmatprep.subr.mxu0 0.0
        %3054 = vmatpush1.msra.mxu0 0.0
        %3055 = vmatprep.subr.mxu0 0.0
        %3056 = vmatpush1.msra.mxu0 0.0
        %3057 = vmatprep.subr.mxu0 0.0
        %3058 = vmatpush1.msra.mxu0 0.0
        %3059 = vmatprep.subr.mxu0 0.0
        %3060 = vmatpush1.msra.mxu0 0.0
        %3061 = vmatprep.subr.mxu0 0.0
        %3062 = vmatpush1.msra.mxu0 0.0
        %3063 = vmatprep.subr.mxu0 0.0
        %3064 = vmatpush1.msra.mxu0 0.0
        %3065 = vmatprep.subr.mxu0 0.0
        %3066 = vmatpush1.msra.mxu0 0.0
        %3067 = vmatprep.subr.mxu0 0.0
        %3068 = vmatpush1.msra.mxu0 0.0
        %3069 = vmatprep.subr.mxu0 0.0
        %3070 = vmatpush1.msra.mxu0 0.0
        %3071 = vmatprep.subr.mxu0 0.0
        %3072 = vmatpush1.msra.mxu0 0.0
        %3073 = vmatprep.subr.mxu0 0.0
        %3074 = vmatpush1.msra.mxu0 0.0
        %3075 = vmatprep.subr.mxu0 0.0
        %3076 = vmatpush1.msra.mxu0 0.0
        %3077 = vmatprep.subr.mxu0 0.0
        %3078 = vmatpush1.msra.mxu0 0.0
        %3079 = vmatprep.subr.mxu0 0.0
        %3080 = vmatpush1.msra.mxu0 0.0
        %3081 = vmatprep.subr.mxu0 0.0
        %3082 = vmatpush1.msra.mxu0 0.0
        %3083 = vmatprep.subr.mxu0 0.0
        %3084 = vmatpush1.msra.mxu0 0.0
        %3085 = vmatprep.subr.mxu0 0.0
        %3086 = vmatpush1.msra.mxu0 0.0
        %3087 = vmatprep.subr.mxu0 0.0
        %3088 = vmatpush1.msra.mxu0 0.0
        %3089 = vmatprep.subr.mxu0 0.0
        %3090 = vmatpush1.msra.mxu0 0.0
        %3091 = vmatprep.subr.mxu0 0.0
        %3092 = vmatpush1.msra.mxu0 0.0
        %3093 = vmatprep.subr.mxu0 0.0
        %3094 = vmatpush1.msra.mxu0 0.0
        %3095 = vmatprep.subr.mxu0 0.0
        %3096 = vmatpush1.msra.mxu0 0.0
        %3097 = vmatprep.subr.mxu0 0.0
        %3098 = vmatpush1.msra.mxu0 0.0
        %3099 = vmatprep.subr.mxu0 0.0
        %3100 = vmatpush1.msra.mxu0 0.0
        %3101 = vmatprep.subr.mxu0 0.0
        %3102 = vmatpush1.msra.mxu0 0.0
        %3103 = vmatprep.subr.mxu0 0.0
        %3104 = vmatpush1.msra.mxu0 0.0
        %3105 = vmatprep.subr.mxu0 0.0
        %3106 = vmatpush1.msra.mxu0 0.0
        %3107 = vmatprep.subr.mxu0 0.0
        %3108 = vmatpush1.msra.mxu0 0.0
        %3109 = vmatprep.subr.mxu0 0.0
        %3110 = vmatpush1.msra.mxu0 0.0
        %3111 = vmatprep.subr.mxu0 0.0
        %3112 = vmatpush1.msra.mxu0 0.0
        %3113 = vmatprep.subr.mxu0 0.0
        %3114 = vmatpush1.msra.mxu0 0.0
        %3115 = vmatprep.mubr.f32.mxu0 0.0
        %3116 = vmatmul.mubr.f32.gmra.mrb[0].mxu0 %v2745
        %v3117 = vpop.f32.mrb[0].mxu0
        %v3118 = vadd.f32 0.0, %v3117
        %v3119 = vpop.f32.mrb[0].mxu0
        %v3120 = vadd.f32 0.0, %v3119
        %3121 = vdwg.mxu0
        %v3122 = vadd.f32 %v2687, %v2834
        %v3123 = vadd.f32 %v2688, %v2836
        %v3124 = vadd.f32 %v2689, %v2905
        %v3125 = vadd.f32 %v2690, %v2907
        %v3126 = vadd.f32 %v2691, %v2976
        %v3127 = vadd.f32 %v2692, %v2978
        %v3128 = vadd.f32 %v2693, %v3047
        %v3129 = vadd.f32 %v2694, %v3049
        %v3130 = vadd.f32 %v2695, %v3118
        %v3131 = vadd.f32 %v2696, %v3120
        %v3132 = vld [vmem:[#allocation2] sm:$0xff]
        %v3133 = vld [vmem:[#allocation2 + $0x8] sm:$0xff]
        %v3134 = vld [vmem:[#allocation2 + $0x10] sm:$0xff]
        %v3135 = vld [vmem:[#allocation2 + $0x18] sm:$0xff]
        %v3136 = vld [vmem:[#allocation2 + $0x20] sm:$0xff]
        %s3137 = scalar_lea.vmem %s2, 40
        %v3138 = vld [vmem:[%s3137] sm:$0xff]
        %v3144 = vcombine.high %v3132, %v3132
        %v3145 = vcombine.high %v3133, %v3133
        %v3146 = vcombine.high %v3134, %v3134
        %v3147 = vcombine.high %v3135, %v3135
        %v3148 = vcombine.high %v3136, %v3136
        %3149 = vrot.lane.b32.xlu0 %v3132, 90
        %v3150 = vpop.permute.xlu0 %3149
        %3151 = vrot.lane.b32.xlu0 %v3144, 90
        %v3152 = vpop.permute.xlu0 %3151
        %3153 = vrot.lane.b32.xlu0 %v3133, 90
        %v3154 = vpop.permute.xlu0 %3153
        %3155 = vrot.lane.b32.xlu0 %v3145, 90
        %v3156 = vpop.permute.xlu0 %3155
        %3157 = vrot.lane.b32.xlu0 %v3134, 90
        %v3158 = vpop.permute.xlu0 %3157
        %3159 = vrot.lane.b32.xlu0 %v3146, 90
        %v3160 = vpop.permute.xlu0 %3159
        %3161 = vrot.lane.b32.xlu0 %v3135, 90
        %v3162 = vpop.permute.xlu0 %3161
        %3163 = vrot.lane.b32.xlu0 %v3147, 90
        %v3164 = vpop.permute.xlu0 %3163
        %3165 = vrot.lane.b32.xlu0 %v3136, 90
        %v3166 = vpop.permute.xlu0 %3165
        %3167 = vrot.lane.b32.xlu0 %v3148, 90
        %v3168 = vpop.permute.xlu0 %3167
        %vm3169 = vcmask 736256
        %v3170 = vsel %vm3169, %v3150, %v3152
        %v3171 = vsel %vm3169, %v3152, %v3154
        %v3172 = vsel %vm3169, %v3154, %v3156
        %v3173 = vsel %vm3169, %v3156, %v3158
        %v3174 = vsel %vm3169, %v3158, %v3160
        %v3175 = vsel %vm3169, %v3160, %v3162
        %v3176 = vsel %vm3169, %v3162, %v3164
        %v3177 = vsel %vm3169, %v3164, %v3166
        %v3178 = vsel %vm3169, %v3166, %v3168
        %v3180 = vsel %vm1069, %v3138, 0
        %v3182 = vsel %vm1073, %v3170, 0
        %v3184 = vsel %vm1073, %v3171, 0
        %v3186 = vsel %vm1073, %v3172, 0
        %v3188 = vsel %vm1073, %v3173, 0
        %v3190 = vsel %vm1073, %v3174, 0
        %v3192 = vsel %vm1073, %v3175, 0
        %v3194 = vsel %vm1073, %v3176, 0
        %v3196 = vsel %vm1073, %v3177, 0
        %v3198 = vsel %vm1073, %v3178, 0
        %v3200 = vsel %vm1073, %v3168, 0
        %3202 = vmatprep.subr.mxu0 %v3184
        %3203 = vmatpush1.msra.mxu0 %v3182
        %3204 = vmatprep.subr.mxu0 0.0
        %3205 = vmatpush1.msra.mxu0 0.0
        %3206 = vmatprep.subr.mxu0 0.0
        %3207 = vmatpush1.msra.mxu0 0.0
        %3208 = vmatprep.subr.mxu0 0.0
        %3209 = vmatpush1.msra.mxu0 0.0
        %3210 = vmatprep.subr.mxu0 0.0
        %3211 = vmatpush1.msra.mxu0 0.0
        %3212 = vmatprep.subr.mxu0 0.0
        %3213 = vmatpush1.msra.mxu0 0.0
        %3214 = vmatprep.subr.mxu0 0.0
        %3215 = vmatpush1.msra.mxu0 0.0
        %3216 = vmatprep.subr.mxu0 0.0
        %3217 = vmatpush1.msra.mxu0 0.0
        %3218 = vmatprep.subr.mxu0 0.0
        %3219 = vmatpush1.msra.mxu0 0.0
        %3220 = vmatprep.subr.mxu0 0.0
        %3221 = vmatpush1.msra.mxu0 0.0
        %3222 = vmatprep.subr.mxu0 0.0
        %3223 = vmatpush1.msra.mxu0 0.0
        %3224 = vmatprep.subr.mxu0 0.0
        %3225 = vmatpush1.msra.mxu0 0.0
        %3226 = vmatprep.subr.mxu0 0.0
        %3227 = vmatpush1.msra.mxu0 0.0
        %3228 = vmatprep.subr.mxu0 0.0
        %3229 = vmatpush1.msra.mxu0 0.0
        %3230 = vmatprep.subr.mxu0 0.0
        %3231 = vmatpush1.msra.mxu0 0.0
        %3232 = vmatprep.subr.mxu0 0.0
        %3233 = vmatpush1.msra.mxu0 0.0
        %3234 = vmatprep.subr.mxu0 0.0
        %3235 = vmatpush1.msra.mxu0 0.0
        %3236 = vmatprep.subr.mxu0 0.0
        %3237 = vmatpush1.msra.mxu0 0.0
        %3238 = vmatprep.subr.mxu0 0.0
        %3239 = vmatpush1.msra.mxu0 0.0
        %3240 = vmatprep.subr.mxu0 0.0
        %3241 = vmatpush1.msra.mxu0 0.0
        %3242 = vmatprep.subr.mxu0 0.0
        %3243 = vmatpush1.msra.mxu0 0.0
        %3244 = vmatprep.subr.mxu0 0.0
        %3245 = vmatpush1.msra.mxu0 0.0
        %3246 = vmatprep.subr.mxu0 0.0
        %3247 = vmatpush1.msra.mxu0 0.0
        %3248 = vmatprep.subr.mxu0 0.0
        %3249 = vmatpush1.msra.mxu0 0.0
        %3250 = vmatprep.subr.mxu0 0.0
        %3251 = vmatpush1.msra.mxu0 0.0
        %3252 = vmatprep.subr.mxu0 0.0
        %3253 = vmatpush1.msra.mxu0 0.0
        %3254 = vmatprep.subr.mxu0 0.0
        %3255 = vmatpush1.msra.mxu0 0.0
        %3256 = vmatprep.subr.mxu0 0.0
        %3257 = vmatpush1.msra.mxu0 0.0
        %3258 = vmatprep.subr.mxu0 0.0
        %3259 = vmatpush1.msra.mxu0 0.0
        %3260 = vmatprep.subr.mxu0 0.0
        %3261 = vmatpush1.msra.mxu0 0.0
        %3262 = vmatprep.subr.mxu0 0.0
        %3263 = vmatpush1.msra.mxu0 0.0
        %3264 = vmatprep.subr.mxu0 0.0
        %3265 = vmatpush1.msra.mxu0 0.0
        %3266 = vmatprep.mubr.f32.mxu0 0.0
        %3267 = vmatmul.mubr.f32.gmra.mrb[0].mxu0 %v3180
        %v3268 = vpop.f32.mrb[0].mxu0
        %v3269 = vadd.f32 0.0, %v3268
        %v3270 = vpop.f32.mrb[0].mxu0
        %v3271 = vadd.f32 0.0, %v3270
        %3272 = vdwg.mxu0
        %3273 = vmatprep.subr.mxu0 %v3188
        %3274 = vmatpush1.msra.mxu0 %v3186
        %3275 = vmatprep.subr.mxu0 0.0
        %3276 = vmatpush1.msra.mxu0 0.0
        %3277 = vmatprep.subr.mxu0 0.0
        %3278 = vmatpush1.msra.mxu0 0.0
        %3279 = vmatprep.subr.mxu0 0.0
        %3280 = vmatpush1.msra.mxu0 0.0
        %3281 = vmatprep.subr.mxu0 0.0
        %3282 = vmatpush1.msra.mxu0 0.0
        %3283 = vmatprep.subr.mxu0 0.0
        %3284 = vmatpush1.msra.mxu0 0.0
        %3285 = vmatprep.subr.mxu0 0.0
        %3286 = vmatpush1.msra.mxu0 0.0
        %3287 = vmatprep.subr.mxu0 0.0
        %3288 = vmatpush1.msra.mxu0 0.0
        %3289 = vmatprep.subr.mxu0 0.0
        %3290 = vmatpush1.msra.mxu0 0.0
        %3291 = vmatprep.subr.mxu0 0.0
        %3292 = vmatpush1.msra.mxu0 0.0
        %3293 = vmatprep.subr.mxu0 0.0
        %3294 = vmatpush1.msra.mxu0 0.0
        %3295 = vmatprep.subr.mxu0 0.0
        %3296 = vmatpush1.msra.mxu0 0.0
        %3297 = vmatprep.subr.mxu0 0.0
        %3298 = vmatpush1.msra.mxu0 0.0
        %3299 = vmatprep.subr.mxu0 0.0
        %3300 = vmatpush1.msra.mxu0 0.0
        %3301 = vmatprep.subr.mxu0 0.0
        %3302 = vmatpush1.msra.mxu0 0.0
        %3303 = vmatprep.subr.mxu0 0.0
        %3304 = vmatpush1.msra.mxu0 0.0
        %3305 = vmatprep.subr.mxu0 0.0
        %3306 = vmatpush1.msra.mxu0 0.0
        %3307 = vmatprep.subr.mxu0 0.0
        %3308 = vmatpush1.msra.mxu0 0.0
        %3309 = vmatprep.subr.mxu0 0.0
        %3310 = vmatpush1.msra.mxu0 0.0
        %3311 = vmatprep.subr.mxu0 0.0
        %3312 = vmatpush1.msra.mxu0 0.0
        %3313 = vmatprep.subr.mxu0 0.0
        %3314 = vmatpush1.msra.mxu0 0.0
        %3315 = vmatprep.subr.mxu0 0.0
        %3316 = vmatpush1.msra.mxu0 0.0
        %3317 = vmatprep.subr.mxu0 0.0
        %3318 = vmatpush1.msra.mxu0 0.0
        %3319 = vmatprep.subr.mxu0 0.0
        %3320 = vmatpush1.msra.mxu0 0.0
        %3321 = vmatprep.subr.mxu0 0.0
        %3322 = vmatpush1.msra.mxu0 0.0
        %3323 = vmatprep.subr.mxu0 0.0
        %3324 = vmatpush1.msra.mxu0 0.0
        %3325 = vmatprep.subr.mxu0 0.0
        %3326 = vmatpush1.msra.mxu0 0.0
        %3327 = vmatprep.subr.mxu0 0.0
        %3328 = vmatpush1.msra.mxu0 0.0
        %3329 = vmatprep.subr.mxu0 0.0
        %3330 = vmatpush1.msra.mxu0 0.0
        %3331 = vmatprep.subr.mxu0 0.0
        %3332 = vmatpush1.msra.mxu0 0.0
        %3333 = vmatprep.subr.mxu0 0.0
        %3334 = vmatpush1.msra.mxu0 0.0
        %3335 = vmatprep.subr.mxu0 0.0
        %3336 = vmatpush1.msra.mxu0 0.0
        %3337 = vmatprep.mubr.f32.mxu0 0.0
        %3338 = vmatmul.mubr.f32.gmra.mrb[0].mxu0 %v3180
        %v3339 = vpop.f32.mrb[0].mxu0
        %v3340 = vadd.f32 0.0, %v3339
        %v3341 = vpop.f32.mrb[0].mxu0
        %v3342 = vadd.f32 0.0, %v3341
        %3343 = vdwg.mxu0
        %3344 = vmatprep.subr.mxu0 %v3192
        %3345 = vmatpush1.msra.mxu0 %v3190
        %3346 = vmatprep.subr.mxu0 0.0
        %3347 = vmatpush1.msra.mxu0 0.0
        %3348 = vmatprep.subr.mxu0 0.0
        %3349 = vmatpush1.msra.mxu0 0.0
        %3350 = vmatprep.subr.mxu0 0.0
        %3351 = vmatpush1.msra.mxu0 0.0
        %3352 = vmatprep.subr.mxu0 0.0
        %3353 = vmatpush1.msra.mxu0 0.0
        %3354 = vmatprep.subr.mxu0 0.0
        %3355 = vmatpush1.msra.mxu0 0.0
        %3356 = vmatprep.subr.mxu0 0.0
        %3357 = vmatpush1.msra.mxu0 0.0
        %3358 = vmatprep.subr.mxu0 0.0
        %3359 = vmatpush1.msra.mxu0 0.0
        %3360 = vmatprep.subr.mxu0 0.0
        %3361 = vmatpush1.msra.mxu0 0.0
        %3362 = vmatprep.subr.mxu0 0.0
        %3363 = vmatpush1.msra.mxu0 0.0
        %3364 = vmatprep.subr.mxu0 0.0
        %3365 = vmatpush1.msra.mxu0 0.0
        %3366 = vmatprep.subr.mxu0 0.0
        %3367 = vmatpush1.msra.mxu0 0.0
        %3368 = vmatprep.subr.mxu0 0.0
        %3369 = vmatpush1.msra.mxu0 0.0
        %3370 = vmatprep.subr.mxu0 0.0
        %3371 = vmatpush1.msra.mxu0 0.0
        %3372 = vmatprep.subr.mxu0 0.0
        %3373 = vmatpush1.msra.mxu0 0.0
        %3374 = vmatprep.subr.mxu0 0.0
        %3375 = vmatpush1.msra.mxu0 0.0
        %3376 = vmatprep.subr.mxu0 0.0
        %3377 = vmatpush1.msra.mxu0 0.0
        %3378 = vmatprep.subr.mxu0 0.0
        %3379 = vmatpush1.msra.mxu0 0.0
        %3380 = vmatprep.subr.mxu0 0.0
        %3381 = vmatpush1.msra.mxu0 0.0
        %3382 = vmatprep.subr.mxu0 0.0
        %3383 = vmatpush1.msra.mxu0 0.0
        %3384 = vmatprep.subr.mxu0 0.0
        %3385 = vmatpush1.msra.mxu0 0.0
        %3386 = vmatprep.subr.mxu0 0.0
        %3387 = vmatpush1.msra.mxu0 0.0
        %3388 = vmatprep.subr.mxu0 0.0
        %3389 = vmatpush1.msra.mxu0 0.0
        %3390 = vmatprep.subr.mxu0 0.0
        %3391 = vmatpush1.msra.mxu0 0.0
        %3392 = vmatprep.subr.mxu0 0.0
        %3393 = vmatpush1.msra.mxu0 0.0
        %3394 = vmatprep.subr.mxu0 0.0
        %3395 = vmatpush1.msra.mxu0 0.0
        %3396 = vmatprep.subr.mxu0 0.0
        %3397 = vmatpush1.msra.mxu0 0.0
        %3398 = vmatprep.subr.mxu0 0.0
        %3399 = vmatpush1.msra.mxu0 0.0
        %3400 = vmatprep.subr.mxu0 0.0
        %3401 = vmatpush1.msra.mxu0 0.0
        %3402 = vmatprep.subr.mxu0 0.0
        %3403 = vmatpush1.msra.mxu0 0.0
        %3404 = vmatprep.subr.mxu0 0.0
        %3405 = vmatpush1.msra.mxu0 0.0
        %3406 = vmatprep.subr.mxu0 0.0
        %3407 = vmatpush1.msra.mxu0 0.0
        %3408 = vmatprep.mubr.f32.mxu0 0.0
        %3409 = vmatmul.mubr.f32.gmra.mrb[0].mxu0 %v3180
        %v3410 = vpop.f32.mrb[0].mxu0
        %v3411 = vadd.f32 0.0, %v3410
        %v3412 = vpop.f32.mrb[0].mxu0
        %v3413 = vadd.f32 0.0, %v3412
        %3414 = vdwg.mxu0
        %3415 = vmatprep.subr.mxu0 %v3196
        %3416 = vmatpush1.msra.mxu0 %v3194
        %3417 = vmatprep.subr.mxu0 0.0
        %3418 = vmatpush1.msra.mxu0 0.0
        %3419 = vmatprep.subr.mxu0 0.0
        %3420 = vmatpush1.msra.mxu0 0.0
        %3421 = vmatprep.subr.mxu0 0.0
        %3422 = vmatpush1.msra.mxu0 0.0
        %3423 = vmatprep.subr.mxu0 0.0
        %3424 = vmatpush1.msra.mxu0 0.0
        %3425 = vmatprep.subr.mxu0 0.0
        %3426 = vmatpush1.msra.mxu0 0.0
        %3427 = vmatprep.subr.mxu0 0.0
        %3428 = vmatpush1.msra.mxu0 0.0
        %3429 = vmatprep.subr.mxu0 0.0
        %3430 = vmatpush1.msra.mxu0 0.0
        %3431 = vmatprep.subr.mxu0 0.0
        %3432 = vmatpush1.msra.mxu0 0.0
        %3433 = vmatprep.subr.mxu0 0.0
        %3434 = vmatpush1.msra.mxu0 0.0
        %3435 = vmatprep.subr.mxu0 0.0
        %3436 = vmatpush1.msra.mxu0 0.0
        %3437 = vmatprep.subr.mxu0 0.0
        %3438 = vmatpush1.msra.mxu0 0.0
        %3439 = vmatprep.subr.mxu0 0.0
        %3440 = vmatpush1.msra.mxu0 0.0
        %3441 = vmatprep.subr.mxu0 0.0
        %3442 = vmatpush1.msra.mxu0 0.0
        %3443 = vmatprep.subr.mxu0 0.0
        %3444 = vmatpush1.msra.mxu0 0.0
        %3445 = vmatprep.subr.mxu0 0.0
        %3446 = vmatpush1.msra.mxu0 0.0
        %3447 = vmatprep.subr.mxu0 0.0
        %3448 = vmatpush1.msra.mxu0 0.0
        %3449 = vmatprep.subr.mxu0 0.0
        %3450 = vmatpush1.msra.mxu0 0.0
        %3451 = vmatprep.subr.mxu0 0.0
        %3452 = vmatpush1.msra.mxu0 0.0
        %3453 = vmatprep.subr.mxu0 0.0
        %3454 = vmatpush1.msra.mxu0 0.0
        %3455 = vmatprep.subr.mxu0 0.0
        %3456 = vmatpush1.msra.mxu0 0.0
        %3457 = vmatprep.subr.mxu0 0.0
        %3458 = vmatpush1.msra.mxu0 0.0
        %3459 = vmatprep.subr.mxu0 0.0
        %3460 = vmatpush1.msra.mxu0 0.0
        %3461 = vmatprep.subr.mxu0 0.0
        %3462 = vmatpush1.msra.mxu0 0.0
        %3463 = vmatprep.subr.mxu0 0.0
        %3464 = vmatpush1.msra.mxu0 0.0
        %3465 = vmatprep.subr.mxu0 0.0
        %3466 = vmatpush1.msra.mxu0 0.0
        %3467 = vmatprep.subr.mxu0 0.0
        %3468 = vmatpush1.msra.mxu0 0.0
        %3469 = vmatprep.subr.mxu0 0.0
        %3470 = vmatpush1.msra.mxu0 0.0
        %3471 = vmatprep.subr.mxu0 0.0
        %3472 = vmatpush1.msra.mxu0 0.0
        %3473 = vmatprep.subr.mxu0 0.0
        %3474 = vmatpush1.msra.mxu0 0.0
        %3475 = vmatprep.subr.mxu0 0.0
        %3476 = vmatpush1.msra.mxu0 0.0
        %3477 = vmatprep.subr.mxu0 0.0
        %3478 = vmatpush1.msra.mxu0 0.0
        %3479 = vmatprep.mubr.f32.mxu0 0.0
        %3480 = vmatmul.mubr.f32.gmra.mrb[0].mxu0 %v3180
        %v3481 = vpop.f32.mrb[0].mxu0
        %v3482 = vadd.f32 0.0, %v3481
        %v3483 = vpop.f32.mrb[0].mxu0
        %v3484 = vadd.f32 0.0, %v3483
        %3485 = vdwg.mxu0
        %3486 = vmatprep.subr.mxu0 %v3200
        %3487 = vmatpush1.msra.mxu0 %v3198
        %3488 = vmatprep.subr.mxu0 0.0
        %3489 = vmatpush1.msra.mxu0 0.0
        %3490 = vmatprep.subr.mxu0 0.0
        %3491 = vmatpush1.msra.mxu0 0.0
        %3492 = vmatprep.subr.mxu0 0.0
        %3493 = vmatpush1.msra.mxu0 0.0
        %3494 = vmatprep.subr.mxu0 0.0
        %3495 = vmatpush1.msra.mxu0 0.0
        %3496 = vmatprep.subr.mxu0 0.0
        %3497 = vmatpush1.msra.mxu0 0.0
        %3498 = vmatprep.subr.mxu0 0.0
        %3499 = vmatpush1.msra.mxu0 0.0
        %3500 = vmatprep.subr.mxu0 0.0
        %3501 = vmatpush1.msra.mxu0 0.0
        %3502 = vmatprep.subr.mxu0 0.0
        %3503 = vmatpush1.msra.mxu0 0.0
        %3504 = vmatprep.subr.mxu0 0.0
        %3505 = vmatpush1.msra.mxu0 0.0
        %3506 = vmatprep.subr.mxu0 0.0
        %3507 = vmatpush1.msra.mxu0 0.0
        %3508 = vmatprep.subr.mxu0 0.0
        %3509 = vmatpush1.msra.mxu0 0.0
        %3510 = vmatprep.subr.mxu0 0.0
        %3511 = vmatpush1.msra.mxu0 0.0
        %3512 = vmatprep.subr.mxu0 0.0
        %3513 = vmatpush1.msra.mxu0 0.0
        %3514 = vmatprep.subr.mxu0 0.0
        %3515 = vmatpush1.msra.mxu0 0.0
        %3516 = vmatprep.subr.mxu0 0.0
        %3517 = vmatpush1.msra.mxu0 0.0
        %3518 = vmatprep.subr.mxu0 0.0
        %3519 = vmatpush1.msra.mxu0 0.0
        %3520 = vmatprep.subr.mxu0 0.0
        %3521 = vmatpush1.msra.mxu0 0.0
        %3522 = vmatprep.subr.mxu0 0.0
        %3523 = vmatpush1.msra.mxu0 0.0
        %3524 = vmatprep.subr.mxu0 0.0
        %3525 = vmatpush1.msra.mxu0 0.0
        %3526 = vmatprep.subr.mxu0 0.0
        %3527 = vmatpush1.msra.mxu0 0.0
        %3528 = vmatprep.subr.mxu0 0.0
        %3529 = vmatpush1.msra.mxu0 0.0
        %3530 = vmatprep.subr.mxu0 0.0
        %3531 = vmatpush1.msra.mxu0 0.0
        %3532 = vmatprep.subr.mxu0 0.0
        %3533 = vmatpush1.msra.mxu0 0.0
        %3534 = vmatprep.subr.mxu0 0.0
        %3535 = vmatpush1.msra.mxu0 0.0
        %3536 = vmatprep.subr.mxu0 0.0
        %3537 = vmatpush1.msra.mxu0 0.0
        %3538 = vmatprep.subr.mxu0 0.0
        %3539 = vmatpush1.msra.mxu0 0.0
        %3540 = vmatprep.subr.mxu0 0.0
        %3541 = vmatpush1.msra.mxu0 0.0
        %3542 = vmatprep.subr.mxu0 0.0
        %3543 = vmatpush1.msra.mxu0 0.0
        %3544 = vmatprep.subr.mxu0 0.0
        %3545 = vmatpush1.msra.mxu0 0.0
        %3546 = vmatprep.subr.mxu0 0.0
        %3547 = vmatpush1.msra.mxu0 0.0
        %3548 = vmatprep.subr.mxu0 0.0
        %3549 = vmatpush1.msra.mxu0 0.0
        %3550 = vmatprep.mubr.f32.mxu0 0.0
        %3551 = vmatmul.mubr.f32.gmra.mrb[0].mxu0 %v3180
        %v3552 = vpop.f32.mrb[0].mxu0
        %v3553 = vadd.f32 0.0, %v3552
        %v3554 = vpop.f32.mrb[0].mxu0
        %v3555 = vadd.f32 0.0, %v3554
        %3556 = vdwg.mxu0
        %v3557 = vadd.f32 %v3122, %v3269
        %v3558 = vadd.f32 %v3123, %v3271
        %v3559 = vadd.f32 %v3124, %v3340
        %v3560 = vadd.f32 %v3125, %v3342
        %v3561 = vadd.f32 %v3126, %v3411
        %v3562 = vadd.f32 %v3127, %v3413
        %v3563 = vadd.f32 %v3128, %v3482
        %v3564 = vadd.f32 %v3129, %v3484
        %v3565 = vadd.f32 %v3130, %v3553
        %v3566 = vadd.f32 %v3131, %v3555
        %v3567 = vld [vmem:[#allocation2] sm:$0xff]
        %v3568 = vld [vmem:[#allocation2 + $0x8] sm:$0xff]
        %v3569 = vld [vmem:[#allocation2 + $0x10] sm:$0xff]
        %v3570 = vld [vmem:[#allocation2 + $0x18] sm:$0xff]
        %v3571 = vld [vmem:[#allocation2 + $0x20] sm:$0xff]
        %v3572 = vld [vmem:[#allocation2 + $0x28] sm:$0xf]
        %s3573 = scalar_lea.vmem %s2, 48
        %v3574 = vld [vmem:[%s3573] sm:$0xff]
        %v3581 = vcombine.high %v3567, %v3567
        %v3582 = vcombine.high %v3568, %v3568
        %v3583 = vcombine.high %v3569, %v3569
        %v3584 = vcombine.high %v3570, %v3570
        %v3585 = vcombine.high %v3571, %v3571
        %3586 = vrot.lane.b32.xlu0 %v3567, 56
        %v3587 = vpop.permute.xlu0 %3586
        %3588 = vrot.lane.b32.xlu0 %v3581, 56
        %v3589 = vpop.permute.xlu0 %3588
        %3590 = vrot.lane.b32.xlu0 %v3568, 56
        %v3591 = vpop.permute.xlu0 %3590
        %3592 = vrot.lane.b32.xlu0 %v3582, 56
        %v3593 = vpop.permute.xlu0 %3592
        %3594 = vrot.lane.b32.xlu0 %v3569, 56
        %v3595 = vpop.permute.xlu0 %3594
        %3596 = vrot.lane.b32.xlu0 %v3583, 56
        %v3597 = vpop.permute.xlu0 %3596
        %3598 = vrot.lane.b32.xlu0 %v3570, 56
        %v3599 = vpop.permute.xlu0 %3598
        %3600 = vrot.lane.b32.xlu0 %v3584, 56
        %v3601 = vpop.permute.xlu0 %3600
        %3602 = vrot.lane.b32.xlu0 %v3571, 56
        %v3603 = vpop.permute.xlu0 %3602
        %3604 = vrot.lane.b32.xlu0 %v3585, 56
        %v3605 = vpop.permute.xlu0 %3604
        %3606 = vrot.lane.b32.xlu0 %v3572, 56
        %v3607 = vpop.permute.xlu0 %3606
        %vm3608 = vcmask 457728
        %v3609 = vsel %vm3608, %v3587, %v3589
        %v3610 = vsel %vm3608, %v3589, %v3591
        %v3611 = vsel %vm3608, %v3591, %v3593
        %v3612 = vsel %vm3608, %v3593, %v3595
        %v3613 = vsel %vm3608, %v3595, %v3597
        %v3614 = vsel %vm3608, %v3597, %v3599
        %v3615 = vsel %vm3608, %v3599, %v3601
        %v3616 = vsel %vm3608, %v3601, %v3603
        %v3617 = vsel %vm3608, %v3603, %v3605
        %v3618 = vsel %vm3608, %v3605, %v3607
        %v3620 = vsel %vm1069, %v3574, 0
        %v3622 = vsel %vm1073, %v3609, 0
        %v3624 = vsel %vm1073, %v3610, 0
        %v3626 = vsel %vm1073, %v3611, 0
        %v3628 = vsel %vm1073, %v3612, 0
        %v3630 = vsel %vm1073, %v3613, 0
        %v3632 = vsel %vm1073, %v3614, 0
        %v3634 = vsel %vm1073, %v3615, 0
        %v3636 = vsel %vm1073, %v3616, 0
        %v3638 = vsel %vm1073, %v3617, 0
        %v3640 = vsel %vm1073, %v3618, 0
        %3642 = vmatprep.subr.mxu0 %v3624
        %3643 = vmatpush1.msra.mxu0 %v3622
        %3644 = vmatprep.subr.mxu0 0.0
        %3645 = vmatpush1.msra.mxu0 0.0
        %3646 = vmatprep.subr.mxu0 0.0
        %3647 = vmatpush1.msra.mxu0 0.0
        %3648 = vmatprep.subr.mxu0 0.0
        %3649 = vmatpush1.msra.mxu0 0.0
        %3650 = vmatprep.subr.mxu0 0.0
        %3651 = vmatpush1.msra.mxu0 0.0
        %3652 = vmatprep.subr.mxu0 0.0
        %3653 = vmatpush1.msra.mxu0 0.0
        %3654 = vmatprep.subr.mxu0 0.0
        %3655 = vmatpush1.msra.mxu0 0.0
        %3656 = vmatprep.subr.mxu0 0.0
        %3657 = vmatpush1.msra.mxu0 0.0
        %3658 = vmatprep.subr.mxu0 0.0
        %3659 = vmatpush1.msra.mxu0 0.0
        %3660 = vmatprep.subr.mxu0 0.0
        %3661 = vmatpush1.msra.mxu0 0.0
        %3662 = vmatprep.subr.mxu0 0.0
        %3663 = vmatpush1.msra.mxu0 0.0
        %3664 = vmatprep.subr.mxu0 0.0
        %3665 = vmatpush1.msra.mxu0 0.0
        %3666 = vmatprep.subr.mxu0 0.0
        %3667 = vmatpush1.msra.mxu0 0.0
        %3668 = vmatprep.subr.mxu0 0.0
        %3669 = vmatpush1.msra.mxu0 0.0
        %3670 = vmatprep.subr.mxu0 0.0
        %3671 = vmatpush1.msra.mxu0 0.0
        %3672 = vmatprep.subr.mxu0 0.0
        %3673 = vmatpush1.msra.mxu0 0.0
        %3674 = vmatprep.subr.mxu0 0.0
        %3675 = vmatpush1.msra.mxu0 0.0
        %3676 = vmatprep.subr.mxu0 0.0
        %3677 = vmatpush1.msra.mxu0 0.0
        %3678 = vmatprep.subr.mxu0 0.0
        %3679 = vmatpush1.msra.mxu0 0.0
        %3680 = vmatprep.subr.mxu0 0.0
        %3681 = vmatpush1.msra.mxu0 0.0
        %3682 = vmatprep.subr.mxu0 0.0
        %3683 = vmatpush1.msra.mxu0 0.0
        %3684 = vmatprep.subr.mxu0 0.0
        %3685 = vmatpush1.msra.mxu0 0.0
        %3686 = vmatprep.subr.mxu0 0.0
        %3687 = vmatpush1.msra.mxu0 0.0
        %3688 = vmatprep.subr.mxu0 0.0
        %3689 = vmatpush1.msra.mxu0 0.0
        %3690 = vmatprep.subr.mxu0 0.0
        %3691 = vmatpush1.msra.mxu0 0.0
        %3692 = vmatprep.subr.mxu0 0.0
        %3693 = vmatpush1.msra.mxu0 0.0
        %3694 = vmatprep.subr.mxu0 0.0
        %3695 = vmatpush1.msra.mxu0 0.0
        %3696 = vmatprep.subr.mxu0 0.0
        %3697 = vmatpush1.msra.mxu0 0.0
        %3698 = vmatprep.subr.mxu0 0.0
        %3699 = vmatpush1.msra.mxu0 0.0
        %3700 = vmatprep.subr.mxu0 0.0
        %3701 = vmatpush1.msra.mxu0 0.0
        %3702 = vmatprep.subr.mxu0 0.0
        %3703 = vmatpush1.msra.mxu0 0.0
        %3704 = vmatprep.subr.mxu0 0.0
        %3705 = vmatpush1.msra.mxu0 0.0
        %3706 = vmatprep.mubr.f32.mxu0 0.0
        %3707 = vmatmul.mubr.f32.gmra.mrb[0].mxu0 %v3620
        %v3708 = vpop.f32.mrb[0].mxu0
        %v3709 = vadd.f32 0.0, %v3708
        %v3710 = vpop.f32.mrb[0].mxu0
        %v3711 = vadd.f32 0.0, %v3710
        %3712 = vdwg.mxu0
        %3713 = vmatprep.subr.mxu0 %v3628
        %3714 = vmatpush1.msra.mxu0 %v3626
        %3715 = vmatprep.subr.mxu0 0.0
        %3716 = vmatpush1.msra.mxu0 0.0
        %3717 = vmatprep.subr.mxu0 0.0
        %3718 = vmatpush1.msra.mxu0 0.0
        %3719 = vmatprep.subr.mxu0 0.0
        %3720 = vmatpush1.msra.mxu0 0.0
        %3721 = vmatprep.subr.mxu0 0.0
        %3722 = vmatpush1.msra.mxu0 0.0
        %3723 = vmatprep.subr.mxu0 0.0
        %3724 = vmatpush1.msra.mxu0 0.0
        %3725 = vmatprep.subr.mxu0 0.0
        %3726 = vmatpush1.msra.mxu0 0.0
        %3727 = vmatprep.subr.mxu0 0.0
        %3728 = vmatpush1.msra.mxu0 0.0
        %3729 = vmatprep.subr.mxu0 0.0
        %3730 = vmatpush1.msra.mxu0 0.0
        %3731 = vmatprep.subr.mxu0 0.0
        %3732 = vmatpush1.msra.mxu0 0.0
        %3733 = vmatprep.subr.mxu0 0.0
        %3734 = vmatpush1.msra.mxu0 0.0
        %3735 = vmatprep.subr.mxu0 0.0
        %3736 = vmatpush1.msra.mxu0 0.0
        %3737 = vmatprep.subr.mxu0 0.0
        %3738 = vmatpush1.msra.mxu0 0.0
        %3739 = vmatprep.subr.mxu0 0.0
        %3740 = vmatpush1.msra.mxu0 0.0
        %3741 = vmatprep.subr.mxu0 0.0
        %3742 = vmatpush1.msra.mxu0 0.0
        %3743 = vmatprep.subr.mxu0 0.0
        %3744 = vmatpush1.msra.mxu0 0.0
        %3745 = vmatprep.subr.mxu0 0.0
        %3746 = vmatpush1.msra.mxu0 0.0
        %3747 = vmatprep.subr.mxu0 0.0
        %3748 = vmatpush1.msra.mxu0 0.0
        %3749 = vmatprep.subr.mxu0 0.0
        %3750 = vmatpush1.msra.mxu0 0.0
        %3751 = vmatprep.subr.mxu0 0.0
        %3752 = vmatpush1.msra.mxu0 0.0
        %3753 = vmatprep.subr.mxu0 0.0
        %3754 = vmatpush1.msra.mxu0 0.0
        %3755 = vmatprep.subr.mxu0 0.0
        %3756 = vmatpush1.msra.mxu0 0.0
        %3757 = vmatprep.subr.mxu0 0.0
        %3758 = vmatpush1.msra.mxu0 0.0
        %3759 = vmatprep.subr.mxu0 0.0
        %3760 = vmatpush1.msra.mxu0 0.0
        %3761 = vmatprep.subr.mxu0 0.0
        %3762 = vmatpush1.msra.mxu0 0.0
        %3763 = vmatprep.subr.mxu0 0.0
        %3764 = vmatpush1.msra.mxu0 0.0
        %3765 = vmatprep.subr.mxu0 0.0
        %3766 = vmatpush1.msra.mxu0 0.0
        %3767 = vmatprep.subr.mxu0 0.0
        %3768 = vmatpush1.msra.mxu0 0.0
        %3769 = vmatprep.subr.mxu0 0.0
        %3770 = vmatpush1.msra.mxu0 0.0
        %3771 = vmatprep.subr.mxu0 0.0
        %3772 = vmatpush1.msra.mxu0 0.0
        %3773 = vmatprep.subr.mxu0 0.0
        %3774 = vmatpush1.msra.mxu0 0.0
        %3775 = vmatprep.subr.mxu0 0.0
        %3776 = vmatpush1.msra.mxu0 0.0
        %3777 = vmatprep.mubr.f32.mxu0 0.0
        %3778 = vmatmul.mubr.f32.gmra.mrb[0].mxu0 %v3620
        %v3779 = vpop.f32.mrb[0].mxu0
        %v3780 = vadd.f32 0.0, %v3779
        %v3781 = vpop.f32.mrb[0].mxu0
        %v3782 = vadd.f32 0.0, %v3781
        %3783 = vdwg.mxu0
        %3784 = vmatprep.subr.mxu0 %v3632
        %3785 = vmatpush1.msra.mxu0 %v3630
        %3786 = vmatprep.subr.mxu0 0.0
        %3787 = vmatpush1.msra.mxu0 0.0
        %3788 = vmatprep.subr.mxu0 0.0
        %3789 = vmatpush1.msra.mxu0 0.0
        %3790 = vmatprep.subr.mxu0 0.0
        %3791 = vmatpush1.msra.mxu0 0.0
        %3792 = vmatprep.subr.mxu0 0.0
        %3793 = vmatpush1.msra.mxu0 0.0
        %3794 = vmatprep.subr.mxu0 0.0
        %3795 = vmatpush1.msra.mxu0 0.0
        %3796 = vmatprep.subr.mxu0 0.0
        %3797 = vmatpush1.msra.mxu0 0.0
        %3798 = vmatprep.subr.mxu0 0.0
        %3799 = vmatpush1.msra.mxu0 0.0
        %3800 = vmatprep.subr.mxu0 0.0
        %3801 = vmatpush1.msra.mxu0 0.0
        %3802 = vmatprep.subr.mxu0 0.0
        %3803 = vmatpush1.msra.mxu0 0.0
        %3804 = vmatprep.subr.mxu0 0.0
        %3805 = vmatpush1.msra.mxu0 0.0
        %3806 = vmatprep.subr.mxu0 0.0
        %3807 = vmatpush1.msra.mxu0 0.0
        %3808 = vmatprep.subr.mxu0 0.0
        %3809 = vmatpush1.msra.mxu0 0.0
        %3810 = vmatprep.subr.mxu0 0.0
        %3811 = vmatpush1.msra.mxu0 0.0
        %3812 = vmatprep.subr.mxu0 0.0
        %3813 = vmatpush1.msra.mxu0 0.0
        %3814 = vmatprep.subr.mxu0 0.0
        %3815 = vmatpush1.msra.mxu0 0.0
        %3816 = vmatprep.subr.mxu0 0.0
        %3817 = vmatpush1.msra.mxu0 0.0
        %3818 = vmatprep.subr.mxu0 0.0
        %3819 = vmatpush1.msra.mxu0 0.0
        %3820 = vmatprep.subr.mxu0 0.0
        %3821 = vmatpush1.msra.mxu0 0.0
        %3822 = vmatprep.subr.mxu0 0.0
        %3823 = vmatpush1.msra.mxu0 0.0
        %3824 = vmatprep.subr.mxu0 0.0
        %3825 = vmatpush1.msra.mxu0 0.0
        %3826 = vmatprep.subr.mxu0 0.0
        %3827 = vmatpush1.msra.mxu0 0.0
        %3828 = vmatprep.subr.mxu0 0.0
        %3829 = vmatpush1.msra.mxu0 0.0
        %3830 = vmatprep.subr.mxu0 0.0
        %3831 = vmatpush1.msra.mxu0 0.0
        %3832 = vmatprep.subr.mxu0 0.0
        %3833 = vmatpush1.msra.mxu0 0.0
        %3834 = vmatprep.subr.mxu0 0.0
        %3835 = vmatpush1.msra.mxu0 0.0
        %3836 = vmatprep.subr.mxu0 0.0
        %3837 = vmatpush1.msra.mxu0 0.0
        %3838 = vmatprep.subr.mxu0 0.0
        %3839 = vmatpush1.msra.mxu0 0.0
        %3840 = vmatprep.subr.mxu0 0.0
        %3841 = vmatpush1.msra.mxu0 0.0
        %3842 = vmatprep.subr.mxu0 0.0
        %3843 = vmatpush1.msra.mxu0 0.0
        %3844 = vmatprep.subr.mxu0 0.0
        %3845 = vmatpush1.msra.mxu0 0.0
        %3846 = vmatprep.subr.mxu0 0.0
        %3847 = vmatpush1.msra.mxu0 0.0
        %3848 = vmatprep.mubr.f32.mxu0 0.0
        %3849 = vmatmul.mubr.f32.gmra.mrb[0].mxu0 %v3620
        %v3850 = vpop.f32.mrb[0].mxu0
        %v3851 = vadd.f32 0.0, %v3850
        %v3852 = vpop.f32.mrb[0].mxu0
        %v3853 = vadd.f32 0.0, %v3852
        %3854 = vdwg.mxu0
        %3855 = vmatprep.subr.mxu0 %v3636
        %3856 = vmatpush1.msra.mxu0 %v3634
        %3857 = vmatprep.subr.mxu0 0.0
        %3858 = vmatpush1.msra.mxu0 0.0
        %3859 = vmatprep.subr.mxu0 0.0
        %3860 = vmatpush1.msra.mxu0 0.0
        %3861 = vmatprep.subr.mxu0 0.0
        %3862 = vmatpush1.msra.mxu0 0.0
        %3863 = vmatprep.subr.mxu0 0.0
        %3864 = vmatpush1.msra.mxu0 0.0
        %3865 = vmatprep.subr.mxu0 0.0
        %3866 = vmatpush1.msra.mxu0 0.0
        %3867 = vmatprep.subr.mxu0 0.0
        %3868 = vmatpush1.msra.mxu0 0.0
        %3869 = vmatprep.subr.mxu0 0.0
        %3870 = vmatpush1.msra.mxu0 0.0
        %3871 = vmatprep.subr.mxu0 0.0
        %3872 = vmatpush1.msra.mxu0 0.0
        %3873 = vmatprep.subr.mxu0 0.0
        %3874 = vmatpush1.msra.mxu0 0.0
        %3875 = vmatprep.subr.mxu0 0.0
        %3876 = vmatpush1.msra.mxu0 0.0
        %3877 = vmatprep.subr.mxu0 0.0
        %3878 = vmatpush1.msra.mxu0 0.0
        %3879 = vmatprep.subr.mxu0 0.0
        %3880 = vmatpush1.msra.mxu0 0.0
        %3881 = vmatprep.subr.mxu0 0.0
        %3882 = vmatpush1.msra.mxu0 0.0
        %3883 = vmatprep.subr.mxu0 0.0
        %3884 = vmatpush1.msra.mxu0 0.0
        %3885 = vmatprep.subr.mxu0 0.0
        %3886 = vmatpush1.msra.mxu0 0.0
        %3887 = vmatprep.subr.mxu0 0.0
        %3888 = vmatpush1.msra.mxu0 0.0
        %3889 = vmatprep.subr.mxu0 0.0
        %3890 = vmatpush1.msra.mxu0 0.0
        %3891 = vmatprep.subr.mxu0 0.0
        %3892 = vmatpush1.msra.mxu0 0.0
        %3893 = vmatprep.subr.mxu0 0.0
        %3894 = vmatpush1.msra.mxu0 0.0
        %3895 = vmatprep.subr.mxu0 0.0
        %3896 = vmatpush1.msra.mxu0 0.0
        %3897 = vmatprep.subr.mxu0 0.0
        %3898 = vmatpush1.msra.mxu0 0.0
        %3899 = vmatprep.subr.mxu0 0.0
        %3900 = vmatpush1.msra.mxu0 0.0
        %3901 = vmatprep.subr.mxu0 0.0
        %3902 = vmatpush1.msra.mxu0 0.0
        %3903 = vmatprep.subr.mxu0 0.0
        %3904 = vmatpush1.msra.mxu0 0.0
        %3905 = vmatprep.subr.mxu0 0.0
        %3906 = vmatpush1.msra.mxu0 0.0
        %3907 = vmatprep.subr.mxu0 0.0
        %3908 = vmatpush1.msra.mxu0 0.0
        %3909 = vmatprep.subr.mxu0 0.0
        %3910 = vmatpush1.msra.mxu0 0.0
        %3911 = vmatprep.subr.mxu0 0.0
        %3912 = vmatpush1.msra.mxu0 0.0
        %3913 = vmatprep.subr.mxu0 0.0
        %3914 = vmatpush1.msra.mxu0 0.0
        %3915 = vmatprep.subr.mxu0 0.0
        %3916 = vmatpush1.msra.mxu0 0.0
        %3917 = vmatprep.subr.mxu0 0.0
        %3918 = vmatpush1.msra.mxu0 0.0
        %3919 = vmatprep.mubr.f32.mxu0 0.0
        %3920 = vmatmul.mubr.f32.gmra.mrb[0].mxu0 %v3620
        %v3921 = vpop.f32.mrb[0].mxu0
        %v3922 = vadd.f32 0.0, %v3921
        %v3923 = vpop.f32.mrb[0].mxu0
        %v3924 = vadd.f32 0.0, %v3923
        %3925 = vdwg.mxu0
        %3926 = vmatprep.subr.mxu0 %v3640
        %3927 = vmatpush1.msra.mxu0 %v3638
        %3928 = vmatprep.subr.mxu0 0.0
        %3929 = vmatpush1.msra.mxu0 0.0
        %3930 = vmatprep.subr.mxu0 0.0
        %3931 = vmatpush1.msra.mxu0 0.0
        %3932 = vmatprep.subr.mxu0 0.0
        %3933 = vmatpush1.msra.mxu0 0.0
        %3934 = vmatprep.subr.mxu0 0.0
        %3935 = vmatpush1.msra.mxu0 0.0
        %3936 = vmatprep.subr.mxu0 0.0
        %3937 = vmatpush1.msra.mxu0 0.0
        %3938 = vmatprep.subr.mxu0 0.0
        %3939 = vmatpush1.msra.mxu0 0.0
        %3940 = vmatprep.subr.mxu0 0.0
        %3941 = vmatpush1.msra.mxu0 0.0
        %3942 = vmatprep.subr.mxu0 0.0
        %3943 = vmatpush1.msra.mxu0 0.0
        %3944 = vmatprep.subr.mxu0 0.0
        %3945 = vmatpush1.msra.mxu0 0.0
        %3946 = vmatprep.subr.mxu0 0.0
        %3947 = vmatpush1.msra.mxu0 0.0
        %3948 = vmatprep.subr.mxu0 0.0
        %3949 = vmatpush1.msra.mxu0 0.0
        %3950 = vmatprep.subr.mxu0 0.0
        %3951 = vmatpush1.msra.mxu0 0.0
        %3952 = vmatprep.subr.mxu0 0.0
        %3953 = vmatpush1.msra.mxu0 0.0
        %3954 = vmatprep.subr.mxu0 0.0
        %3955 = vmatpush1.msra.mxu0 0.0
        %3956 = vmatprep.subr.mxu0 0.0
        %3957 = vmatpush1.msra.mxu0 0.0
        %3958 = vmatprep.subr.mxu0 0.0
        %3959 = vmatpush1.msra.mxu0 0.0
        %3960 = vmatprep.subr.mxu0 0.0
        %3961 = vmatpush1.msra.mxu0 0.0
        %3962 = vmatprep.subr.mxu0 0.0
        %3963 = vmatpush1.msra.mxu0 0.0
        %3964 = vmatprep.subr.mxu0 0.0
        %3965 = vmatpush1.msra.mxu0 0.0
        %3966 = vmatprep.subr.mxu0 0.0
        %3967 = vmatpush1.msra.mxu0 0.0
        %3968 = vmatprep.subr.mxu0 0.0
        %3969 = vmatpush1.msra.mxu0 0.0
        %3970 = vmatprep.subr.mxu0 0.0
        %3971 = vmatpush1.msra.mxu0 0.0
        %3972 = vmatprep.subr.mxu0 0.0
        %3973 = vmatpush1.msra.mxu0 0.0
        %3974 = vmatprep.subr.mxu0 0.0
        %3975 = vmatpush1.msra.mxu0 0.0
        %3976 = vmatprep.subr.mxu0 0.0
        %3977 = vmatpush1.msra.mxu0 0.0
        %3978 = vmatprep.subr.mxu0 0.0
        %3979 = vmatpush1.msra.mxu0 0.0
        %3980 = vmatprep.subr.mxu0 0.0
        %3981 = vmatpush1.msra.mxu0 0.0
        %3982 = vmatprep.subr.mxu0 0.0
        %3983 = vmatpush1.msra.mxu0 0.0
        %3984 = vmatprep.subr.mxu0 0.0
        %3985 = vmatpush1.msra.mxu0 0.0
        %3986 = vmatprep.subr.mxu0 0.0
        %3987 = vmatpush1.msra.mxu0 0.0
        %3988 = vmatprep.subr.mxu0 0.0
        %3989 = vmatpush1.msra.mxu0 0.0
        %3990 = vmatprep.mubr.f32.mxu0 0.0
        %3991 = vmatmul.mubr.f32.gmra.mrb[0].mxu0 %v3620
        %v3992 = vpop.f32.mrb[0].mxu0
        %v3993 = vadd.f32 0.0, %v3992
        %v3994 = vpop.f32.mrb[0].mxu0
        %v3995 = vadd.f32 0.0, %v3994
        %3996 = vdwg.mxu0
        %v3997 = vadd.f32 %v3557, %v3709
        %v3998 = vadd.f32 %v3558, %v3711
        %v3999 = vadd.f32 %v3559, %v3780
        %v4000 = vadd.f32 %v3560, %v3782
        %v4001 = vadd.f32 %v3561, %v3851
        %v4002 = vadd.f32 %v3562, %v3853
        %v4003 = vadd.f32 %v3563, %v3922
        %v4004 = vadd.f32 %v3564, %v3924
        %v4005 = vadd.f32 %v3565, %v3993
        %v4006 = vadd.f32 %v3566, %v3995
        %v4007 = vld [vmem:[#allocation2] sm:$0xff]
        %v4008 = vld [vmem:[#allocation2 + $0x8] sm:$0xff]
        %v4009 = vld [vmem:[#allocation2 + $0x10] sm:$0xff]
        %v4010 = vld [vmem:[#allocation2 + $0x18] sm:$0xff]
        %v4011 = vld [vmem:[#allocation2 + $0x20] sm:$0xff]
        %v4012 = vld [vmem:[#allocation2 + $0x28] sm:$0xf]
        %s4013 = scalar_lea.vmem %s2, 56
        %v4014 = vld [vmem:[%s4013] sm:$0xff]
        %v4021 = vcombine.high %v4007, %v4007
        %v4022 = vcombine.high %v4008, %v4008
        %v4023 = vcombine.high %v4009, %v4009
        %v4024 = vcombine.high %v4010, %v4010
        %v4025 = vcombine.high %v4011, %v4011
        %4026 = vrot.lane.b32.xlu0 %v4007, 55
        %v4027 = vpop.permute.xlu0 %4026
        %4028 = vrot.lane.b32.xlu0 %v4021, 55
        %v4029 = vpop.permute.xlu0 %4028
        %4030 = vrot.lane.b32.xlu0 %v4008, 55
        %v4031 = vpop.permute.xlu0 %4030
        %4032 = vrot.lane.b32.xlu0 %v4022, 55
        %v4033 = vpop.permute.xlu0 %4032
        %4034 = vrot.lane.b32.xlu0 %v4009, 55
        %v4035 = vpop.permute.xlu0 %4034
        %4036 = vrot.lane.b32.xlu0 %v4023, 55
        %v4037 = vpop.permute.xlu0 %4036
        %4038 = vrot.lane.b32.xlu0 %v4010, 55
        %v4039 = vpop.permute.xlu0 %4038
        %4040 = vrot.lane.b32.xlu0 %v4024, 55
        %v4041 = vpop.permute.xlu0 %4040
        %4042 = vrot.lane.b32.xlu0 %v4011, 55
        %v4043 = vpop.permute.xlu0 %4042
        %4044 = vrot.lane.b32.xlu0 %v4025, 55
        %v4045 = vpop.permute.xlu0 %4044
        %4046 = vrot.lane.b32.xlu0 %v4012, 55
        %v4047 = vpop.permute.xlu0 %4046
        %vm4048 = vcmask 449536
        %v4049 = vsel %vm4048, %v4027, %v4029
        %v4050 = vsel %vm4048, %v4029, %v4031
        %v4051 = vsel %vm4048, %v4031, %v4033
        %v4052 = vsel %vm4048, %v4033, %v4035
        %v4053 = vsel %vm4048, %v4035, %v4037
        %v4054 = vsel %vm4048, %v4037, %v4039
        %v4055 = vsel %vm4048, %v4039, %v4041
        %v4056 = vsel %vm4048, %v4041, %v4043
        %v4057 = vsel %vm4048, %v4043, %v4045
        %v4058 = vsel %vm4048, %v4045, %v4047
        %v4060 = vsel %vm1069, %v4014, 0
        %v4062 = vsel %vm1073, %v4049, 0
        %v4064 = vsel %vm1073, %v4050, 0
        %v4066 = vsel %vm1073, %v4051, 0
        %v4068 = vsel %vm1073, %v4052, 0
        %v4070 = vsel %vm1073, %v4053, 0
        %v4072 = vsel %vm1073, %v4054, 0
        %v4074 = vsel %vm1073, %v4055, 0
        %v4076 = vsel %vm1073, %v4056, 0
        %v4078 = vsel %vm1073, %v4057, 0
        %v4080 = vsel %vm1073, %v4058, 0
        %4082 = vmatprep.subr.mxu0 %v4064
        %4083 = vmatpush1.msra.mxu0 %v4062
        %4084 = vmatprep.subr.mxu0 0.0
        %4085 = vmatpush1.msra.mxu0 0.0
        %4086 = vmatprep.subr.mxu0 0.0
        %4087 = vmatpush1.msra.mxu0 0.0
        %4088 = vmatprep.subr.mxu0 0.0
        %4089 = vmatpush1.msra.mxu0 0.0
        %4090 = vmatprep.subr.mxu0 0.0
        %4091 = vmatpush1.msra.mxu0 0.0
        %4092 = vmatprep.subr.mxu0 0.0
        %4093 = vmatpush1.msra.mxu0 0.0
        %4094 = vmatprep.subr.mxu0 0.0
        %4095 = vmatpush1.msra.mxu0 0.0
        %4096 = vmatprep.subr.mxu0 0.0
        %4097 = vmatpush1.msra.mxu0 0.0
        %4098 = vmatprep.subr.mxu0 0.0
        %4099 = vmatpush1.msra.mxu0 0.0
        %4100 = vmatprep.subr.mxu0 0.0
        %4101 = vmatpush1.msra.mxu0 0.0
        %4102 = vmatprep.subr.mxu0 0.0
        %4103 = vmatpush1.msra.mxu0 0.0
        %4104 = vmatprep.subr.mxu0 0.0
        %4105 = vmatpush1.msra.mxu0 0.0
        %4106 = vmatprep.subr.mxu0 0.0
        %4107 = vmatpush1.msra.mxu0 0.0
        %4108 = vmatprep.subr.mxu0 0.0
        %4109 = vmatpush1.msra.mxu0 0.0
        %4110 = vmatprep.subr.mxu0 0.0
        %4111 = vmatpush1.msra.mxu0 0.0
        %4112 = vmatprep.subr.mxu0 0.0
        %4113 = vmatpush1.msra.mxu0 0.0
        %4114 = vmatprep.subr.mxu0 0.0
        %4115 = vmatpush1.msra.mxu0 0.0
        %4116 = vmatprep.subr.mxu0 0.0
        %4117 = vmatpush1.msra.mxu0 0.0
        %4118 = vmatprep.subr.mxu0 0.0
        %4119 = vmatpush1.msra.mxu0 0.0
        %4120 = vmatprep.subr.mxu0 0.0
        %4121 = vmatpush1.msra.mxu0 0.0
        %4122 = vmatprep.subr.mxu0 0.0
        %4123 = vmatpush1.msra.mxu0 0.0
        %4124 = vmatprep.subr.mxu0 0.0
        %4125 = vmatpush1.msra.mxu0 0.0
        %4126 = vmatprep.subr.mxu0 0.0
        %4127 = vmatpush1.msra.mxu0 0.0
        %4128 = vmatprep.subr.mxu0 0.0
        %4129 = vmatpush1.msra.mxu0 0.0
        %4130 = vmatprep.subr.mxu0 0.0
        %4131 = vmatpush1.msra.mxu0 0.0
        %4132 = vmatprep.subr.mxu0 0.0
        %4133 = vmatpush1.msra.mxu0 0.0
        %4134 = vmatprep.subr.mxu0 0.0
        %4135 = vmatpush1.msra.mxu0 0.0
        %4136 = vmatprep.subr.mxu0 0.0
        %4137 = vmatpush1.msra.mxu0 0.0
        %4138 = vmatprep.subr.mxu0 0.0
        %4139 = vmatpush1.msra.mxu0 0.0
        %4140 = vmatprep.subr.mxu0 0.0
        %4141 = vmatpush1.msra.mxu0 0.0
        %4142 = vmatprep.subr.mxu0 0.0
        %4143 = vmatpush1.msra.mxu0 0.0
        %4144 = vmatprep.subr.mxu0 0.0
        %4145 = vmatpush1.msra.mxu0 0.0
        %4146 = vmatprep.mubr.f32.mxu0 0.0
        %4147 = vmatmul.mubr.f32.gmra.mrb[0].mxu0 %v4060
        %v4148 = vpop.f32.mrb[0].mxu0
        %v4149 = vadd.f32 0.0, %v4148
        %v4150 = vpop.f32.mrb[0].mxu0
        %v4151 = vadd.f32 0.0, %v4150
        %4152 = vdwg.mxu0
        %4153 = vmatprep.subr.mxu0 %v4068
        %4154 = vmatpush1.msra.mxu0 %v4066
        %4155 = vmatprep.subr.mxu0 0.0
        %4156 = vmatpush1.msra.mxu0 0.0
        %4157 = vmatprep.subr.mxu0 0.0
        %4158 = vmatpush1.msra.mxu0 0.0
        %4159 = vmatprep.subr.mxu0 0.0
        %4160 = vmatpush1.msra.mxu0 0.0
        %4161 = vmatprep.subr.mxu0 0.0
        %4162 = vmatpush1.msra.mxu0 0.0
        %4163 = vmatprep.subr.mxu0 0.0
        %4164 = vmatpush1.msra.mxu0 0.0
        %4165 = vmatprep.subr.mxu0 0.0
        %4166 = vmatpush1.msra.mxu0 0.0
        %4167 = vmatprep.subr.mxu0 0.0
        %4168 = vmatpush1.msra.mxu0 0.0
        %4169 = vmatprep.subr.mxu0 0.0
        %4170 = vmatpush1.msra.mxu0 0.0
        %4171 = vmatprep.subr.mxu0 0.0
        %4172 = vmatpush1.msra.mxu0 0.0
        %4173 = vmatprep.subr.mxu0 0.0
        %4174 = vmatpush1.msra.mxu0 0.0
        %4175 = vmatprep.subr.mxu0 0.0
        %4176 = vmatpush1.msra.mxu0 0.0
        %4177 = vmatprep.subr.mxu0 0.0
        %4178 = vmatpush1.msra.mxu0 0.0
        %4179 = vmatprep.subr.mxu0 0.0
        %4180 = vmatpush1.msra.mxu0 0.0
        %4181 = vmatprep.subr.mxu0 0.0
        %4182 = vmatpush1.msra.mxu0 0.0
        %4183 = vmatprep.subr.mxu0 0.0
        %4184 = vmatpush1.msra.mxu0 0.0
        %4185 = vmatprep.subr.mxu0 0.0
        %4186 = vmatpush1.msra.mxu0 0.0
        %4187 = vmatprep.subr.mxu0 0.0
        %4188 = vmatpush1.msra.mxu0 0.0
        %4189 = vmatprep.subr.mxu0 0.0
        %4190 = vmatpush1.msra.mxu0 0.0
        %4191 = vmatprep.subr.mxu0 0.0
        %4192 = vmatpush1.msra.mxu0 0.0
        %4193 = vmatprep.subr.mxu0 0.0
        %4194 = vmatpush1.msra.mxu0 0.0
        %4195 = vmatprep.subr.mxu0 0.0
        %4196 = vmatpush1.msra.mxu0 0.0
        %4197 = vmatprep.subr.mxu0 0.0
        %4198 = vmatpush1.msra.mxu0 0.0
        %4199 = vmatprep.subr.mxu0 0.0
        %4200 = vmatpush1.msra.mxu0 0.0
        %4201 = vmatprep.subr.mxu0 0.0
        %4202 = vmatpush1.msra.mxu0 0.0
        %4203 = vmatprep.subr.mxu0 0.0
        %4204 = vmatpush1.msra.mxu0 0.0
        %4205 = vmatprep.subr.mxu0 0.0
        %4206 = vmatpush1.msra.mxu0 0.0
        %4207 = vmatprep.subr.mxu0 0.0
        %4208 = vmatpush1.msra.mxu0 0.0
        %4209 = vmatprep.subr.mxu0 0.0
        %4210 = vmatpush1.msra.mxu0 0.0
        %4211 = vmatprep.subr.mxu0 0.0
        %4212 = vmatpush1.msra.mxu0 0.0
        %4213 = vmatprep.subr.mxu0 0.0
        %4214 = vmatpush1.msra.mxu0 0.0
        %4215 = vmatprep.subr.mxu0 0.0
        %4216 = vmatpush1.msra.mxu0 0.0
        %4217 = vmatprep.mubr.f32.mxu0 0.0
        %4218 = vmatmul.mubr.f32.gmra.mrb[0].mxu0 %v4060
        %v4219 = vpop.f32.mrb[0].mxu0
        %v4220 = vadd.f32 0.0, %v4219
        %v4221 = vpop.f32.mrb[0].mxu0
        %v4222 = vadd.f32 0.0, %v4221
        %4223 = vdwg.mxu0
        %4224 = vmatprep.subr.mxu0 %v4072
        %4225 = vmatpush1.msra.mxu0 %v4070
        %4226 = vmatprep.subr.mxu0 0.0
        %4227 = vmatpush1.msra.mxu0 0.0
        %4228 = vmatprep.subr.mxu0 0.0
        %4229 = vmatpush1.msra.mxu0 0.0
        %4230 = vmatprep.subr.mxu0 0.0
        %4231 = vmatpush1.msra.mxu0 0.0
        %4232 = vmatprep.subr.mxu0 0.0
        %4233 = vmatpush1.msra.mxu0 0.0
        %4234 = vmatprep.subr.mxu0 0.0
        %4235 = vmatpush1.msra.mxu0 0.0
        %4236 = vmatprep.subr.mxu0 0.0
        %4237 = vmatpush1.msra.mxu0 0.0
        %4238 = vmatprep.subr.mxu0 0.0
        %4239 = vmatpush1.msra.mxu0 0.0
        %4240 = vmatprep.subr.mxu0 0.0
        %4241 = vmatpush1.msra.mxu0 0.0
        %4242 = vmatprep.subr.mxu0 0.0
        %4243 = vmatpush1.msra.mxu0 0.0
        %4244 = vmatprep.subr.mxu0 0.0
        %4245 = vmatpush1.msra.mxu0 0.0
        %4246 = vmatprep.subr.mxu0 0.0
        %4247 = vmatpush1.msra.mxu0 0.0
        %4248 = vmatprep.subr.mxu0 0.0
        %4249 = vmatpush1.msra.mxu0 0.0
        %4250 = vmatprep.subr.mxu0 0.0
        %4251 = vmatpush1.msra.mxu0 0.0
        %4252 = vmatprep.subr.mxu0 0.0
        %4253 = vmatpush1.msra.mxu0 0.0
        %4254 = vmatprep.subr.mxu0 0.0
        %4255 = vmatpush1.msra.mxu0 0.0
        %4256 = vmatprep.subr.mxu0 0.0
        %4257 = vmatpush1.msra.mxu0 0.0
        %4258 = vmatprep.subr.mxu0 0.0
        %4259 = vmatpush1.msra.mxu0 0.0
        %4260 = vmatprep.subr.mxu0 0.0
        %4261 = vmatpush1.msra.mxu0 0.0
        %4262 = vmatprep.subr.mxu0 0.0
        %4263 = vmatpush1.msra.mxu0 0.0
        %4264 = vmatprep.subr.mxu0 0.0
        %4265 = vmatpush1.msra.mxu0 0.0
        %4266 = vmatprep.subr.mxu0 0.0
        %4267 = vmatpush1.msra.mxu0 0.0
        %4268 = vmatprep.subr.mxu0 0.0
        %4269 = vmatpush1.msra.mxu0 0.0
        %4270 = vmatprep.subr.mxu0 0.0
        %4271 = vmatpush1.msra.mxu0 0.0
        %4272 = vmatprep.subr.mxu0 0.0
        %4273 = vmatpush1.msra.mxu0 0.0
        %4274 = vmatprep.subr.mxu0 0.0
        %4275 = vmatpush1.msra.mxu0 0.0
        %4276 = vmatprep.subr.mxu0 0.0
        %4277 = vmatpush1.msra.mxu0 0.0
        %4278 = vmatprep.subr.mxu0 0.0
        %4279 = vmatpush1.msra.mxu0 0.0
        %4280 = vmatprep.subr.mxu0 0.0
        %4281 = vmatpush1.msra.mxu0 0.0
        %4282 = vmatprep.subr.mxu0 0.0
        %4283 = vmatpush1.msra.mxu0 0.0
        %4284 = vmatprep.subr.mxu0 0.0
        %4285 = vmatpush1.msra.mxu0 0.0
        %4286 = vmatprep.subr.mxu0 0.0
        %4287 = vmatpush1.msra.mxu0 0.0
        %4288 = vmatprep.mubr.f32.mxu0 0.0
        %4289 = vmatmul.mubr.f32.gmra.mrb[0].mxu0 %v4060
        %v4290 = vpop.f32.mrb[0].mxu0
        %v4291 = vadd.f32 0.0, %v4290
        %v4292 = vpop.f32.mrb[0].mxu0
        %v4293 = vadd.f32 0.0, %v4292
        %4294 = vdwg.mxu0
        %4295 = vmatprep.subr.mxu0 %v4076
        %4296 = vmatpush1.msra.mxu0 %v4074
        %4297 = vmatprep.subr.mxu0 0.0
        %4298 = vmatpush1.msra.mxu0 0.0
        %4299 = vmatprep.subr.mxu0 0.0
        %4300 = vmatpush1.msra.mxu0 0.0
        %4301 = vmatprep.subr.mxu0 0.0
        %4302 = vmatpush1.msra.mxu0 0.0
        %4303 = vmatprep.subr.mxu0 0.0
        %4304 = vmatpush1.msra.mxu0 0.0
        %4305 = vmatprep.subr.mxu0 0.0
        %4306 = vmatpush1.msra.mxu0 0.0
        %4307 = vmatprep.subr.mxu0 0.0
        %4308 = vmatpush1.msra.mxu0 0.0
        %4309 = vmatprep.subr.mxu0 0.0
        %4310 = vmatpush1.msra.mxu0 0.0
        %4311 = vmatprep.subr.mxu0 0.0
        %4312 = vmatpush1.msra.mxu0 0.0
        %4313 = vmatprep.subr.mxu0 0.0
        %4314 = vmatpush1.msra.mxu0 0.0
        %4315 = vmatprep.subr.mxu0 0.0
        %4316 = vmatpush1.msra.mxu0 0.0
        %4317 = vmatprep.subr.mxu0 0.0
        %4318 = vmatpush1.msra.mxu0 0.0
        %4319 = vmatprep.subr.mxu0 0.0
        %4320 = vmatpush1.msra.mxu0 0.0
        %4321 = vmatprep.subr.mxu0 0.0
        %4322 = vmatpush1.msra.mxu0 0.0
        %4323 = vmatprep.subr.mxu0 0.0
        %4324 = vmatpush1.msra.mxu0 0.0
        %4325 = vmatprep.subr.mxu0 0.0
        %4326 = vmatpush1.msra.mxu0 0.0
        %4327 = vmatprep.subr.mxu0 0.0
        %4328 = vmatpush1.msra.mxu0 0.0
        %4329 = vmatprep.subr.mxu0 0.0
        %4330 = vmatpush1.msra.mxu0 0.0
        %4331 = vmatprep.subr.mxu0 0.0
        %4332 = vmatpush1.msra.mxu0 0.0
        %4333 = vmatprep.subr.mxu0 0.0
        %4334 = vmatpush1.msra.mxu0 0.0
        %4335 = vmatprep.subr.mxu0 0.0
        %4336 = vmatpush1.msra.mxu0 0.0
        %4337 = vmatprep.subr.mxu0 0.0
        %4338 = vmatpush1.msra.mxu0 0.0
        %4339 = vmatprep.subr.mxu0 0.0
        %4340 = vmatpush1.msra.mxu0 0.0
        %4341 = vmatprep.subr.mxu0 0.0
        %4342 = vmatpush1.msra.mxu0 0.0
        %4343 = vmatprep.subr.mxu0 0.0
        %4344 = vmatpush1.msra.mxu0 0.0
        %4345 = vmatprep.subr.mxu0 0.0
        %4346 = vmatpush1.msra.mxu0 0.0
        %4347 = vmatprep.subr.mxu0 0.0
        %4348 = vmatpush1.msra.mxu0 0.0
        %4349 = vmatprep.subr.mxu0 0.0
        %4350 = vmatpush1.msra.mxu0 0.0
        %4351 = vmatprep.subr.mxu0 0.0
        %4352 = vmatpush1.msra.mxu0 0.0
        %4353 = vmatprep.subr.mxu0 0.0
        %4354 = vmatpush1.msra.mxu0 0.0
        %4355 = vmatprep.subr.mxu0 0.0
        %4356 = vmatpush1.msra.mxu0 0.0
        %4357 = vmatprep.subr.mxu0 0.0
        %4358 = vmatpush1.msra.mxu0 0.0
        %4359 = vmatprep.mubr.f32.mxu0 0.0
        %4360 = vmatmul.mubr.f32.gmra.mrb[0].mxu0 %v4060
        %v4361 = vpop.f32.mrb[0].mxu0
        %v4362 = vadd.f32 0.0, %v4361
        %v4363 = vpop.f32.mrb[0].mxu0
        %v4364 = vadd.f32 0.0, %v4363
        %4365 = vdwg.mxu0
        %4366 = vmatprep.subr.mxu0 %v4080
        %4367 = vmatpush1.msra.mxu0 %v4078
        %4368 = vmatprep.subr.mxu0 0.0
        %4369 = vmatpush1.msra.mxu0 0.0
        %4370 = vmatprep.subr.mxu0 0.0
        %4371 = vmatpush1.msra.mxu0 0.0
        %4372 = vmatprep.subr.mxu0 0.0
        %4373 = vmatpush1.msra.mxu0 0.0
        %4374 = vmatprep.subr.mxu0 0.0
        %4375 = vmatpush1.msra.mxu0 0.0
        %4376 = vmatprep.subr.mxu0 0.0
        %4377 = vmatpush1.msra.mxu0 0.0
        %4378 = vmatprep.subr.mxu0 0.0
        %4379 = vmatpush1.msra.mxu0 0.0
        %4380 = vmatprep.subr.mxu0 0.0
        %4381 = vmatpush1.msra.mxu0 0.0
        %4382 = vmatprep.subr.mxu0 0.0
        %4383 = vmatpush1.msra.mxu0 0.0
        %4384 = vmatprep.subr.mxu0 0.0
        %4385 = vmatpush1.msra.mxu0 0.0
        %4386 = vmatprep.subr.mxu0 0.0
        %4387 = vmatpush1.msra.mxu0 0.0
        %4388 = vmatprep.subr.mxu0 0.0
        %4389 = vmatpush1.msra.mxu0 0.0
        %4390 = vmatprep.subr.mxu0 0.0
        %4391 = vmatpush1.msra.mxu0 0.0
        %4392 = vmatprep.subr.mxu0 0.0
        %4393 = vmatpush1.msra.mxu0 0.0
        %4394 = vmatprep.subr.mxu0 0.0
        %4395 = vmatpush1.msra.mxu0 0.0
        %4396 = vmatprep.subr.mxu0 0.0
        %4397 = vmatpush1.msra.mxu0 0.0
        %4398 = vmatprep.subr.mxu0 0.0
        %4399 = vmatpush1.msra.mxu0 0.0
        %4400 = vmatprep.subr.mxu0 0.0
        %4401 = vmatpush1.msra.mxu0 0.0
        %4402 = vmatprep.subr.mxu0 0.0
        %4403 = vmatpush1.msra.mxu0 0.0
        %4404 = vmatprep.subr.mxu0 0.0
        %4405 = vmatpush1.msra.mxu0 0.0
        %4406 = vmatprep.subr.mxu0 0.0
        %4407 = vmatpush1.msra.mxu0 0.0
        %4408 = vmatprep.subr.mxu0 0.0
        %4409 = vmatpush1.msra.mxu0 0.0
        %4410 = vmatprep.subr.mxu0 0.0
        %4411 = vmatpush1.msra.mxu0 0.0
        %4412 = vmatprep.subr.mxu0 0.0
        %4413 = vmatpush1.msra.mxu0 0.0
        %4414 = vmatprep.subr.mxu0 0.0
        %4415 = vmatpush1.msra.mxu0 0.0
        %4416 = vmatprep.subr.mxu0 0.0
        %4417 = vmatpush1.msra.mxu0 0.0
        %4418 = vmatprep.subr.mxu0 0.0
        %4419 = vmatpush1.msra.mxu0 0.0
        %4420 = vmatprep.subr.mxu0 0.0
        %4421 = vmatpush1.msra.mxu0 0.0
        %4422 = vmatprep.subr.mxu0 0.0
        %4423 = vmatpush1.msra.mxu0 0.0
        %4424 = vmatprep.subr.mxu0 0.0
        %4425 = vmatpush1.msra.mxu0 0.0
        %4426 = vmatprep.subr.mxu0 0.0
        %4427 = vmatpush1.msra.mxu0 0.0
        %4428 = vmatprep.subr.mxu0 0.0
        %4429 = vmatpush1.msra.mxu0 0.0
        %4430 = vmatprep.mubr.f32.mxu0 0.0
        %4431 = vmatmul.mubr.f32.gmra.mrb[0].mxu0 %v4060
        %v4432 = vpop.f32.mrb[0].mxu0
        %v4433 = vadd.f32 0.0, %v4432
        %v4434 = vpop.f32.mrb[0].mxu0
        %v4435 = vadd.f32 0.0, %v4434
        %4436 = vdwg.mxu0
        %v4437 = vadd.f32 %v3997, %v4149
        %v4438 = vadd.f32 %v3998, %v4151
        %v4439 = vadd.f32 %v3999, %v4220
        %v4440 = vadd.f32 %v4000, %v4222
        %v4441 = vadd.f32 %v4001, %v4291
        %v4442 = vadd.f32 %v4002, %v4293
        %v4443 = vadd.f32 %v4003, %v4362
        %v4444 = vadd.f32 %v4004, %v4364
        %v4445 = vadd.f32 %v4005, %v4433
        %v4446 = vadd.f32 %v4006, %v4435
        %v4447 = vld [vmem:[#allocation2] sm:$0xff]
        %v4448 = vld [vmem:[#allocation2 + $0x8] sm:$0xff]
        %v4449 = vld [vmem:[#allocation2 + $0x10] sm:$0xff]
        %v4450 = vld [vmem:[#allocation2 + $0x18] sm:$0xff]
        %v4451 = vld [vmem:[#allocation2 + $0x20] sm:$0xff]
        %v4452 = vld [vmem:[#allocation2 + $0x28] sm:$0xf]
        %s4453 = scalar_lea.vmem %s2, 64
        %v4454 = vld [vmem:[%s4453] sm:$0xff]
        %v4461 = vcombine.high %v4447, %v4447
        %v4462 = vcombine.high %v4448, %v4448
        %v4463 = vcombine.high %v4449, %v4449
        %v4464 = vcombine.high %v4450, %v4450
        %v4465 = vcombine.high %v4451, %v4451
        %4466 = vrot.lane.b32.xlu0 %v4447, 54
        %v4467 = vpop.permute.xlu0 %4466
        %4468 = vrot.lane.b32.xlu0 %v4461, 54
        %v4469 = vpop.permute.xlu0 %4468
        %4470 = vrot.lane.b32.xlu0 %v4448, 54
        %v4471 = vpop.permute.xlu0 %4470
        %4472 = vrot.lane.b32.xlu0 %v4462, 54
        %v4473 = vpop.permute.xlu0 %4472
        %4474 = vrot.lane.b32.xlu0 %v4449, 54
        %v4475 = vpop.permute.xlu0 %4474
        %4476 = vrot.lane.b32.xlu0 %v4463, 54
        %v4477 = vpop.permute.xlu0 %4476
        %4478 = vrot.lane.b32.xlu0 %v4450, 54
        %v4479 = vpop.permute.xlu0 %4478
        %4480 = vrot.lane.b32.xlu0 %v4464, 54
        %v4481 = vpop.permute.xlu0 %4480
        %4482 = vrot.lane.b32.xlu0 %v4451, 54
        %v4483 = vpop.permute.xlu0 %4482
        %4484 = vrot.lane.b32.xlu0 %v4465, 54
        %v4485 = vpop.permute.xlu0 %4484
        %4486 = vrot.lane.b32.xlu0 %v4452, 54
        %v4487 = vpop.permute.xlu0 %4486
        %vm4488 = vcmask 441344
        %v4489 = vsel %vm4488, %v4467, %v4469
        %v4490 = vsel %vm4488, %v4469, %v4471
        %v4491 = vsel %vm4488, %v4471, %v4473
        %v4492 = vsel %vm4488, %v4473, %v4475
        %v4493 = vsel %vm4488, %v4475, %v4477
        %v4494 = vsel %vm4488, %v4477, %v4479
        %v4495 = vsel %vm4488, %v4479, %v4481
        %v4496 = vsel %vm4488, %v4481, %v4483
        %v4497 = vsel %vm4488, %v4483, %v4485
        %v4498 = vsel %vm4488, %v4485, %v4487
        %v4500 = vsel %vm1069, %v4454, 0
        %v4502 = vsel %vm1073, %v4489, 0
        %v4504 = vsel %vm1073, %v4490, 0
        %v4506 = vsel %vm1073, %v4491, 0
        %v4508 = vsel %vm1073, %v4492, 0
        %v4510 = vsel %vm1073, %v4493, 0
        %v4512 = vsel %vm1073, %v4494, 0
        %v4514 = vsel %vm1073, %v4495, 0
        %v4516 = vsel %vm1073, %v4496, 0
        %v4518 = vsel %vm1073, %v4497, 0
        %v4520 = vsel %vm1073, %v4498, 0
        %4522 = vmatprep.subr.mxu0 %v4504
        %4523 = vmatpush1.msra.mxu0 %v4502
        %4524 = vmatprep.subr.mxu0 0.0
        %4525 = vmatpush1.msra.mxu0 0.0
        %4526 = vmatprep.subr.mxu0 0.0
        %4527 = vmatpush1.msra.mxu0 0.0
        %4528 = vmatprep.subr.mxu0 0.0
        %4529 = vmatpush1.msra.mxu0 0.0
        %4530 = vmatprep.subr.mxu0 0.0
        %4531 = vmatpush1.msra.mxu0 0.0
        %4532 = vmatprep.subr.mxu0 0.0
        %4533 = vmatpush1.msra.mxu0 0.0
        %4534 = vmatprep.subr.mxu0 0.0
        %4535 = vmatpush1.msra.mxu0 0.0
        %4536 = vmatprep.subr.mxu0 0.0
        %4537 = vmatpush1.msra.mxu0 0.0
        %4538 = vmatprep.subr.mxu0 0.0
        %4539 = vmatpush1.msra.mxu0 0.0
        %4540 = vmatprep.subr.mxu0 0.0
        %4541 = vmatpush1.msra.mxu0 0.0
        %4542 = vmatprep.subr.mxu0 0.0
        %4543 = vmatpush1.msra.mxu0 0.0
        %4544 = vmatprep.subr.mxu0 0.0
        %4545 = vmatpush1.msra.mxu0 0.0
        %4546 = vmatprep.subr.mxu0 0.0
        %4547 = vmatpush1.msra.mxu0 0.0
        %4548 = vmatprep.subr.mxu0 0.0
        %4549 = vmatpush1.msra.mxu0 0.0
        %4550 = vmatprep.subr.mxu0 0.0
        %4551 = vmatpush1.msra.mxu0 0.0
        %4552 = vmatprep.subr.mxu0 0.0
        %4553 = vmatpush1.msra.mxu0 0.0
        %4554 = vmatprep.subr.mxu0 0.0
        %4555 = vmatpush1.msra.mxu0 0.0
        %4556 = vmatprep.subr.mxu0 0.0
        %4557 = vmatpush1.msra.mxu0 0.0
        %4558 = vmatprep.subr.mxu0 0.0
        %4559 = vmatpush1.msra.mxu0 0.0
        %4560 = vmatprep.subr.mxu0 0.0
        %4561 = vmatpush1.msra.mxu0 0.0
        %4562 = vmatprep.subr.mxu0 0.0
        %4563 = vmatpush1.msra.mxu0 0.0
        %4564 = vmatprep.subr.mxu0 0.0
        %4565 = vmatpush1.msra.mxu0 0.0
        %4566 = vmatprep.subr.mxu0 0.0
        %4567 = vmatpush1.msra.mxu0 0.0
        %4568 = vmatprep.subr.mxu0 0.0
        %4569 = vmatpush1.msra.mxu0 0.0
        %4570 = vmatprep.subr.mxu0 0.0
        %4571 = vmatpush1.msra.mxu0 0.0
        %4572 = vmatprep.subr.mxu0 0.0
        %4573 = vmatpush1.msra.mxu0 0.0
        %4574 = vmatprep.subr.mxu0 0.0
        %4575 = vmatpush1.msra.mxu0 0.0
        %4576 = vmatprep.subr.mxu0 0.0
        %4577 = vmatpush1.msra.mxu0 0.0
        %4578 = vmatprep.subr.mxu0 0.0
        %4579 = vmatpush1.msra.mxu0 0.0
        %4580 = vmatprep.subr.mxu0 0.0
        %4581 = vmatpush1.msra.mxu0 0.0
        %4582 = vmatprep.subr.mxu0 0.0
        %4583 = vmatpush1.msra.mxu0 0.0
        %4584 = vmatprep.subr.mxu0 0.0
        %4585 = vmatpush1.msra.mxu0 0.0
        %4586 = vmatprep.mubr.f32.mxu0 0.0
        %4587 = vmatmul.mubr.f32.gmra.mrb[0].mxu0 %v4500
        %v4588 = vpop.f32.mrb[0].mxu0
        %v4589 = vadd.f32 0.0, %v4588
        %v4590 = vpop.f32.mrb[0].mxu0
        %v4591 = vadd.f32 0.0, %v4590
        %4592 = vdwg.mxu0
        %4593 = vmatprep.subr.mxu0 %v4508
        %4594 = vmatpush1.msra.mxu0 %v4506
        %4595 = vmatprep.subr.mxu0 0.0
        %4596 = vmatpush1.msra.mxu0 0.0
        %4597 = vmatprep.subr.mxu0 0.0
        %4598 = vmatpush1.msra.mxu0 0.0
        %4599 = vmatprep.subr.mxu0 0.0
        %4600 = vmatpush1.msra.mxu0 0.0
        %4601 = vmatprep.subr.mxu0 0.0
        %4602 = vmatpush1.msra.mxu0 0.0
        %4603 = vmatprep.subr.mxu0 0.0
        %4604 = vmatpush1.msra.mxu0 0.0
        %4605 = vmatprep.subr.mxu0 0.0
        %4606 = vmatpush1.msra.mxu0 0.0
        %4607 = vmatprep.subr.mxu0 0.0
        %4608 = vmatpush1.msra.mxu0 0.0
        %4609 = vmatprep.subr.mxu0 0.0
        %4610 = vmatpush1.msra.mxu0 0.0
        %4611 = vmatprep.subr.mxu0 0.0
        %4612 = vmatpush1.msra.mxu0 0.0
        %4613 = vmatprep.subr.mxu0 0.0
        %4614 = vmatpush1.msra.mxu0 0.0
        %4615 = vmatprep.subr.mxu0 0.0
        %4616 = vmatpush1.msra.mxu0 0.0
        %4617 = vmatprep.subr.mxu0 0.0
        %4618 = vmatpush1.msra.mxu0 0.0
        %4619 = vmatprep.subr.mxu0 0.0
        %4620 = vmatpush1.msra.mxu0 0.0
        %4621 = vmatprep.subr.mxu0 0.0
        %4622 = vmatpush1.msra.mxu0 0.0
        %4623 = vmatprep.subr.mxu0 0.0
        %4624 = vmatpush1.msra.mxu0 0.0
        %4625 = vmatprep.subr.mxu0 0.0
        %4626 = vmatpush1.msra.mxu0 0.0
        %4627 = vmatprep.subr.mxu0 0.0
        %4628 = vmatpush1.msra.mxu0 0.0
        %4629 = vmatprep.subr.mxu0 0.0
        %4630 = vmatpush1.msra.mxu0 0.0
        %4631 = vmatprep.subr.mxu0 0.0
        %4632 = vmatpush1.msra.mxu0 0.0
        %4633 = vmatprep.subr.mxu0 0.0
        %4634 = vmatpush1.msra.mxu0 0.0
        %4635 = vmatprep.subr.mxu0 0.0
        %4636 = vmatpush1.msra.mxu0 0.0
        %4637 = vmatprep.subr.mxu0 0.0
        %4638 = vmatpush1.msra.mxu0 0.0
        %4639 = vmatprep.subr.mxu0 0.0
        %4640 = vmatpush1.msra.mxu0 0.0
        %4641 = vmatprep.subr.mxu0 0.0
        %4642 = vmatpush1.msra.mxu0 0.0
        %4643 = vmatprep.subr.mxu0 0.0
        %4644 = vmatpush1.msra.mxu0 0.0
        %4645 = vmatprep.subr.mxu0 0.0
        %4646 = vmatpush1.msra.mxu0 0.0
        %4647 = vmatprep.subr.mxu0 0.0
        %4648 = vmatpush1.msra.mxu0 0.0
        %4649 = vmatprep.subr.mxu0 0.0
        %4650 = vmatpush1.msra.mxu0 0.0
        %4651 = vmatprep.subr.mxu0 0.0
        %4652 = vmatpush1.msra.mxu0 0.0
        %4653 = vmatprep.subr.mxu0 0.0
        %4654 = vmatpush1.msra.mxu0 0.0
        %4655 = vmatprep.subr.mxu0 0.0
        %4656 = vmatpush1.msra.mxu0 0.0
        %4657 = vmatprep.mubr.f32.mxu0 0.0
        %4658 = vmatmul.mubr.f32.gmra.mrb[0].mxu0 %v4500
        %v4659 = vpop.f32.mrb[0].mxu0
        %v4660 = vadd.f32 0.0, %v4659
        %v4661 = vpop.f32.mrb[0].mxu0
        %v4662 = vadd.f32 0.0, %v4661
        %4663 = vdwg.mxu0
        %4664 = vmatprep.subr.mxu0 %v4512
        %4665 = vmatpush1.msra.mxu0 %v4510
        %4666 = vmatprep.subr.mxu0 0.0
        %4667 = vmatpush1.msra.mxu0 0.0
        %4668 = vmatprep.subr.mxu0 0.0
        %4669 = vmatpush1.msra.mxu0 0.0
        %4670 = vmatprep.subr.mxu0 0.0
        %4671 = vmatpush1.msra.mxu0 0.0
        %4672 = vmatprep.subr.mxu0 0.0
        %4673 = vmatpush1.msra.mxu0 0.0
        %4674 = vmatprep.subr.mxu0 0.0
        %4675 = vmatpush1.msra.mxu0 0.0
        %4676 = vmatprep.subr.mxu0 0.0
        %4677 = vmatpush1.msra.mxu0 0.0
        %4678 = vmatprep.subr.mxu0 0.0
        %4679 = vmatpush1.msra.mxu0 0.0
        %4680 = vmatprep.subr.mxu0 0.0
        %4681 = vmatpush1.msra.mxu0 0.0
        %4682 = vmatprep.subr.mxu0 0.0
        %4683 = vmatpush1.msra.mxu0 0.0
        %4684 = vmatprep.subr.mxu0 0.0
        %4685 = vmatpush1.msra.mxu0 0.0
        %4686 = vmatprep.subr.mxu0 0.0
        %4687 = vmatpush1.msra.mxu0 0.0
        %4688 = vmatprep.subr.mxu0 0.0
        %4689 = vmatpush1.msra.mxu0 0.0
        %4690 = vmatprep.subr.mxu0 0.0
        %4691 = vmatpush1.msra.mxu0 0.0
        %4692 = vmatprep.subr.mxu0 0.0
        %4693 = vmatpush1.msra.mxu0 0.0
        %4694 = vmatprep.subr.mxu0 0.0
        %4695 = vmatpush1.msra.mxu0 0.0
        %4696 = vmatprep.subr.mxu0 0.0
        %4697 = vmatpush1.msra.mxu0 0.0
        %4698 = vmatprep.subr.mxu0 0.0
        %4699 = vmatpush1.msra.mxu0 0.0
        %4700 = vmatprep.subr.mxu0 0.0
        %4701 = vmatpush1.msra.mxu0 0.0
        %4702 = vmatprep.subr.mxu0 0.0
        %4703 = vmatpush1.msra.mxu0 0.0
        %4704 = vmatprep.subr.mxu0 0.0
        %4705 = vmatpush1.msra.mxu0 0.0
        %4706 = vmatprep.subr.mxu0 0.0
        %4707 = vmatpush1.msra.mxu0 0.0
        %4708 = vmatprep.subr.mxu0 0.0
        %4709 = vmatpush1.msra.mxu0 0.0
        %4710 = vmatprep.subr.mxu0 0.0
        %4711 = vmatpush1.msra.mxu0 0.0
        %4712 = vmatprep.subr.mxu0 0.0
        %4713 = vmatpush1.msra.mxu0 0.0
        %4714 = vmatprep.subr.mxu0 0.0
        %4715 = vmatpush1.msra.mxu0 0.0
        %4716 = vmatprep.subr.mxu0 0.0
        %4717 = vmatpush1.msra.mxu0 0.0
        %4718 = vmatprep.subr.mxu0 0.0
        %4719 = vmatpush1.msra.mxu0 0.0
        %4720 = vmatprep.subr.mxu0 0.0
        %4721 = vmatpush1.msra.mxu0 0.0
        %4722 = vmatprep.subr.mxu0 0.0
        %4723 = vmatpush1.msra.mxu0 0.0
        %4724 = vmatprep.subr.mxu0 0.0
        %4725 = vmatpush1.msra.mxu0 0.0
        %4726 = vmatprep.subr.mxu0 0.0
        %4727 = vmatpush1.msra.mxu0 0.0
        %4728 = vmatprep.mubr.f32.mxu0 0.0
        %4729 = vmatmul.mubr.f32.gmra.mrb[0].mxu0 %v4500
        %v4730 = vpop.f32.mrb[0].mxu0
        %v4731 = vadd.f32 0.0, %v4730
        %v4732 = vpop.f32.mrb[0].mxu0
        %v4733 = vadd.f32 0.0, %v4732
        %4734 = vdwg.mxu0
        %4735 = vmatprep.subr.mxu0 %v4516
        %4736 = vmatpush1.msra.mxu0 %v4514
        %4737 = vmatprep.subr.mxu0 0.0
        %4738 = vmatpush1.msra.mxu0 0.0
        %4739 = vmatprep.subr.mxu0 0.0
        %4740 = vmatpush1.msra.mxu0 0.0
        %4741 = vmatprep.subr.mxu0 0.0
        %4742 = vmatpush1.msra.mxu0 0.0
        %4743 = vmatprep.subr.mxu0 0.0
        %4744 = vmatpush1.msra.mxu0 0.0
        %4745 = vmatprep.subr.mxu0 0.0
        %4746 = vmatpush1.msra.mxu0 0.0
        %4747 = vmatprep.subr.mxu0 0.0
        %4748 = vmatpush1.msra.mxu0 0.0
        %4749 = vmatprep.subr.mxu0 0.0
        %4750 = vmatpush1.msra.mxu0 0.0
        %4751 = vmatprep.subr.mxu0 0.0
        %4752 = vmatpush1.msra.mxu0 0.0
        %4753 = vmatprep.subr.mxu0 0.0
        %4754 = vmatpush1.msra.mxu0 0.0
        %4755 = vmatprep.subr.mxu0 0.0
        %4756 = vmatpush1.msra.mxu0 0.0
        %4757 = vmatprep.subr.mxu0 0.0
        %4758 = vmatpush1.msra.mxu0 0.0
        %4759 = vmatprep.subr.mxu0 0.0
        %4760 = vmatpush1.msra.mxu0 0.0
        %4761 = vmatprep.subr.mxu0 0.0
        %4762 = vmatpush1.msra.mxu0 0.0
        %4763 = vmatprep.subr.mxu0 0.0
        %4764 = vmatpush1.msra.mxu0 0.0
        %4765 = vmatprep.subr.mxu0 0.0
        %4766 = vmatpush1.msra.mxu0 0.0
        %4767 = vmatprep.subr.mxu0 0.0
        %4768 = vmatpush1.msra.mxu0 0.0
        %4769 = vmatprep.subr.mxu0 0.0
        %4770 = vmatpush1.msra.mxu0 0.0
        %4771 = vmatprep.subr.mxu0 0.0
        %4772 = vmatpush1.msra.mxu0 0.0
        %4773 = vmatprep.subr.mxu0 0.0
        %4774 = vmatpush1.msra.mxu0 0.0
        %4775 = vmatprep.subr.mxu0 0.0
        %4776 = vmatpush1.msra.mxu0 0.0
        %4777 = vmatprep.subr.mxu0 0.0
        %4778 = vmatpush1.msra.mxu0 0.0
        %4779 = vmatprep.subr.mxu0 0.0
        %4780 = vmatpush1.msra.mxu0 0.0
        %4781 = vmatprep.subr.mxu0 0.0
        %4782 = vmatpush1.msra.mxu0 0.0
        %4783 = vmatprep.subr.mxu0 0.0
        %4784 = vmatpush1.msra.mxu0 0.0
        %4785 = vmatprep.subr.mxu0 0.0
        %4786 = vmatpush1.msra.mxu0 0.0
        %4787 = vmatprep.subr.mxu0 0.0
        %4788 = vmatpush1.msra.mxu0 0.0
        %4789 = vmatprep.subr.mxu0 0.0
        %4790 = vmatpush1.msra.mxu0 0.0
        %4791 = vmatprep.subr.mxu0 0.0
        %4792 = vmatpush1.msra.mxu0 0.0
        %4793 = vmatprep.subr.mxu0 0.0
        %4794 = vmatpush1.msra.mxu0 0.0
        %4795 = vmatprep.subr.mxu0 0.0
        %4796 = vmatpush1.msra.mxu0 0.0
        %4797 = vmatprep.subr.mxu0 0.0
        %4798 = vmatpush1.msra.mxu0 0.0
        %4799 = vmatprep.mubr.f32.mxu0 0.0
        %4800 = vmatmul.mubr.f32.gmra.mrb[0].mxu0 %v4500
        %v4801 = vpop.f32.mrb[0].mxu0
        %v4802 = vadd.f32 0.0, %v4801
        %v4803 = vpop.f32.mrb[0].mxu0
        %v4804 = vadd.f32 0.0, %v4803
        %4805 = vdwg.mxu0
        %4806 = vmatprep.subr.mxu0 %v4520
        %4807 = vmatpush1.msra.mxu0 %v4518
        %4808 = vmatprep.subr.mxu0 0.0
        %4809 = vmatpush1.msra.mxu0 0.0
        %4810 = vmatprep.subr.mxu0 0.0
        %4811 = vmatpush1.msra.mxu0 0.0
        %4812 = vmatprep.subr.mxu0 0.0
        %4813 = vmatpush1.msra.mxu0 0.0
        %4814 = vmatprep.subr.mxu0 0.0
        %4815 = vmatpush1.msra.mxu0 0.0
        %4816 = vmatprep.subr.mxu0 0.0
        %4817 = vmatpush1.msra.mxu0 0.0
        %4818 = vmatprep.subr.mxu0 0.0
        %4819 = vmatpush1.msra.mxu0 0.0
        %4820 = vmatprep.subr.mxu0 0.0
        %4821 = vmatpush1.msra.mxu0 0.0
        %4822 = vmatprep.subr.mxu0 0.0
        %4823 = vmatpush1.msra.mxu0 0.0
        %4824 = vmatprep.subr.mxu0 0.0
        %4825 = vmatpush1.msra.mxu0 0.0
        %4826 = vmatprep.subr.mxu0 0.0
        %4827 = vmatpush1.msra.mxu0 0.0
        %4828 = vmatprep.subr.mxu0 0.0
        %4829 = vmatpush1.msra.mxu0 0.0
        %4830 = vmatprep.subr.mxu0 0.0
        %4831 = vmatpush1.msra.mxu0 0.0
        %4832 = vmatprep.subr.mxu0 0.0
        %4833 = vmatpush1.msra.mxu0 0.0
        %4834 = vmatprep.subr.mxu0 0.0
        %4835 = vmatpush1.msra.mxu0 0.0
        %4836 = vmatprep.subr.mxu0 0.0
        %4837 = vmatpush1.msra.mxu0 0.0
        %4838 = vmatprep.subr.mxu0 0.0
        %4839 = vmatpush1.msra.mxu0 0.0
        %4840 = vmatprep.subr.mxu0 0.0
        %4841 = vmatpush1.msra.mxu0 0.0
        %4842 = vmatprep.subr.mxu0 0.0
        %4843 = vmatpush1.msra.mxu0 0.0
        %4844 = vmatprep.subr.mxu0 0.0
        %4845 = vmatpush1.msra.mxu0 0.0
        %4846 = vmatprep.subr.mxu0 0.0
        %4847 = vmatpush1.msra.mxu0 0.0
        %4848 = vmatprep.subr.mxu0 0.0
        %4849 = vmatpush1.msra.mxu0 0.0
        %4850 = vmatprep.subr.mxu0 0.0
        %4851 = vmatpush1.msra.mxu0 0.0
        %4852 = vmatprep.subr.mxu0 0.0
        %4853 = vmatpush1.msra.mxu0 0.0
        %4854 = vmatprep.subr.mxu0 0.0
        %4855 = vmatpush1.msra.mxu0 0.0
        %4856 = vmatprep.subr.mxu0 0.0
        %4857 = vmatpush1.msra.mxu0 0.0
        %4858 = vmatprep.subr.mxu0 0.0
        %4859 = vmatpush1.msra.mxu0 0.0
        %4860 = vmatprep.subr.mxu0 0.0
        %4861 = vmatpush1.msra.mxu0 0.0
        %4862 = vmatprep.subr.mxu0 0.0
        %4863 = vmatpush1.msra.mxu0 0.0
        %4864 = vmatprep.subr.mxu0 0.0
        %4865 = vmatpush1.msra.mxu0 0.0
        %4866 = vmatprep.subr.mxu0 0.0
        %4867 = vmatpush1.msra.mxu0 0.0
        %4868 = vmatprep.subr.mxu0 0.0
        %4869 = vmatpush1.msra.mxu0 0.0
        %4870 = vmatprep.mubr.f32.mxu0 0.0
        %4871 = vmatmul.mubr.f32.gmra.mrb[0].mxu0 %v4500
        %v4872 = vpop.f32.mrb[0].mxu0
        %v4873 = vadd.f32 0.0, %v4872
        %v4874 = vpop.f32.mrb[0].mxu0
        %v4875 = vadd.f32 0.0, %v4874
        %4876 = vdwg.mxu0
        %v4877 = vadd.f32 %v4437, %v4589
        %v4878 = vadd.f32 %v4438, %v4591
        %v4879 = vadd.f32 %v4439, %v4660
        %v4880 = vadd.f32 %v4440, %v4662
        %v4881 = vadd.f32 %v4441, %v4731
        %v4882 = vadd.f32 %v4442, %v4733
        %v4883 = vadd.f32 %v4443, %v4802
        %v4884 = vadd.f32 %v4444, %v4804
        %v4885 = vadd.f32 %v4445, %v4873
        %v4886 = vadd.f32 %v4446, %v4875
        %v4887 = vld [vmem:[%s3] sm:$0xff]
        %4889 = vset.pattern.permute.xlu0 0
        %4890 = vperm.xlu0 %4889, %v4887
        %v4891 = vpop.permute.xlu0 %4890
        %v4893 = vadd.f32 %v4877, %v4891
        %v4894 = vadd.f32 %v4878, %v4891
        %v4895 = vadd.f32 %v4879, %v4891
        %v4896 = vadd.f32 %v4880, %v4891
        %v4897 = vadd.f32 %v4881, %v4891
        %v4898 = vadd.f32 %v4882, %v4891
        %v4899 = vadd.f32 %v4883, %v4891
        %v4900 = vadd.f32 %v4884, %v4891
        %v4901 = vadd.f32 %v4885, %v4891
        %v4902 = vadd.f32 %v4886, %v4891
        %v4903 = vmax.f32 %v4893, 0.0
        %v4904 = vmax.f32 %v4894, 0.0
        %v4905 = vmax.f32 %v4895, 0.0
        %v4906 = vmax.f32 %v4896, 0.0
        %v4907 = vmax.f32 %v4897, 0.0
        %v4908 = vmax.f32 %v4898, 0.0
        %v4909 = vmax.f32 %v4899, 0.0
        %v4910 = vmax.f32 %v4900, 0.0
        %v4911 = vmax.f32 %v4901, 0.0
        %v4912 = vmax.f32 %v4902, 0.0
        %4913 = vst [vmem:[%s212] sm:$0xff] %v4903
        %4914 = vst [vmem:[%s212 + $0x8] sm:$0xff] %v4904
        %4915 = vst [vmem:[%s212 + $0x10] sm:$0xff] %v4905
        %4916 = vst [vmem:[%s212 + $0x18] sm:$0xff] %v4906
        %4917 = vst [vmem:[%s212 + $0x20] sm:$0xff] %v4907
        %4918 = vst [vmem:[%s212 + $0x28] sm:$0xff] %v4908
        %4919 = vst [vmem:[%s212 + $0x30] sm:$0xff] %v4909
        %4920 = vst [vmem:[%s212 + $0x38] sm:$0xff] %v4910
        %4921 = vst [vmem:[%s212 + $0x40] sm:$0xff] %v4911
        %vm4922 = vcmask 588800
        %4923 = vst.msk [vmem:[%s212 + $0x48] sm:$0xff] %vm4922, %v4912
        %p4924 = scmp.lt.s32.totalorder %s16, 1
        %s4925 = scalar_select %p4924, %s16, 1
        %s4926 = smul.addr %s4925, 10
        %s4927 = smul.addr %s4926, 8
        %s4928 = scalar_lea.vmem %s4, %s4927
        // Predicated region
        $region41: #{deconv_block_forward.1} parent=35 // pred_check
          %p4929 = pneg %p123
        $region42: #{deconv_block_forward.1} parent=35 // pred_check_branch
          %4931 = sbr.rel (%p4929) target = $region44
        $region43: #{deconv_block_forward.1} parent=35 // pred_region
          _
        $region44: #{deconv_block_forward.1} parent=35 // pred_fallthru
          _
      $region36: #{deconv_block_forward.1} parent=5 // pred_fallthru
        _
      %p4932 = scmp.le.s32.totalorder 2, %s11
      // Predicated region
      $region45: #{deconv_block_forward.1} parent=5 // pred_check
        %p4933 = pneg %p4932
      $region46: #{deconv_block_forward.1} parent=5 // pred_check_branch
        %4935 = sbr.rel (%p4933) target = $region48
      $region47: #{deconv_block_forward.1} parent=5 // pred_region
        %s4936 = ssub.s32 %s11, 2
        // Predicated region
        $region49: #{deconv_block_forward.1} parent=47 // pred_check
          %p4937 = pneg %p129
        $region50: #{deconv_block_forward.1} parent=47 // pred_check_branch
          %4939 = sbr.rel (%p4937) target = $region52
        $region51: #{deconv_block_forward.1} parent=47 // pred_region
          %p4940 = scmp.lt.s32.totalorder %s17, 1
          %s4941 = scalar_select %p4940, %s17, 1
          %s4942 = smul.addr %s4941, 10
          %s4943 = smul.addr %s4942, 8
          %s4944 = scalar_lea.vmem %s4, %s4943
        $region52: #{deconv_block_forward.1} parent=47 // pred_fallthru
          _
      $region48: #{deconv_block_forward.1} parent=5 // pred_fallthru
        _
    $region6: #{deconv_block_forward.1} parent=1 // loop_footer
      %s15 = sadd.s32 1, %s11
    $region7: #{deconv_block_forward.1} parent=1 // loop_footer_branch
      %10 = sbr.rel target = $region3
    $region8: #{deconv_block_forward.1} parent=1 // loop_exit
      _
    %4945 = vsyncpa [#allocation4], 1
    %s4946 = scalar_lea.sflag [#allocation4], 1
    %4947 = vsyncpa %s4946, 1

</llo_original>
